<compile_context>
chip_gen: v7x
topology: tpu7x:2x2x1
jax: 0.10.0
libtpu: 0.0.40
codegen_flags: <defaults>
</compile_context>

<pallas_src>
import numpy as np
import jax
import jax.numpy as jnp
from jax.experimental import pallas as pl
from jax.experimental.pallas import tpu as pltpu


# ----------------------------- fixed geometry -------------------------------
H0 = W0 = 16          # input spatial size (NCHW input: (N, 3, 16, 16))
C0 = 3
C1, K1 = 32, 7        # conv1
C2, K2 = 64, 3        # conv2
C3, K3 = 128, 3       # conv3

H1 = W1 = H0 - K1 + 1          # 10
H2 = W2 = H1 - K2 + 1          # 8
H2P = W2P = H2 // 2            # 4   (maxpool 2x2)
H3 = W3 = H2P - K3 + 1         # 2
H3P = W3P = H3 // 2            # 1   (maxpool 2x2) -> avgpool(1,1) is identity


# ------------------------------ fused kernel --------------------------------

def _fused_kernel(x_ref, m1_ref, b1_ref, m2_ref, b2_ref, m3_ref, b3_ref,
                  wf_ref, bf_ref, o_ref, cm2_ref, p2_ref):
    x2d = x_ref[0]                                    # (16, 48)   [h, w*3+c]

    # conv1 + ReLU -> (10, W1*C1=320)
    acc1 = jnp.dot(x2d[0:H1, :], m1_ref[0], preferred_element_type=jnp.float32)
    for dh in range(1, K1):
        acc1 = acc1 + jnp.dot(x2d[dh:dh + H1, :], m1_ref[dh],
                              preferred_element_type=jnp.float32)
    h1 = jnp.maximum(acc1 + b1_ref[...], 0.0)

    # conv2 + ReLU -> (8, W2*C2=512), output columns prepacked even/odd-wo first
    acc2 = jnp.dot(h1[0:H2, :], m2_ref[0], preferred_element_type=jnp.float32)
    for dh in range(1, K2):
        acc2 = acc2 + jnp.dot(h1[dh:dh + H2, :], m2_ref[dh],
                              preferred_element_type=jnp.float32)
    h2 = jnp.maximum(acc2 + b2_ref[...], 0.0)

    # maxpool 2x2 -> (4, W2P*C2=256)
    half2 = (W2 // 2) * C2                            # 256 (128-aligned)
    cm2_ref[...] = jnp.maximum(h2[:, 0:half2], h2[:, half2:2 * half2])
    for i in range(H2 // 2):                          # pairwise row max (4 iters)
        p2_ref[pl.ds(i, 1), :] = jnp.maximum(cm2_ref[pl.ds(2 * i, 1), :],
                                             cm2_ref[pl.ds(2 * i + 1, 1), :])
    x3 = p2_ref[...]                                  # (4, 256)

    # conv3 + ReLU -> (2, W3*C3=256)
    acc3 = jnp.dot(x3[0:H3, :], m3_ref[0], preferred_element_type=jnp.float32)
    for dh in range(1, K3):
        acc3 = acc3 + jnp.dot(x3[dh:dh + H3, :], m3_ref[dh],
                              preferred_element_type=jnp.float32)
    h3 = jnp.maximum(acc3 + b3_ref[...], 0.0)

    # maxpool 2x2 -> (1, 128); adaptive avgpool over the 1x1 map is identity
    cm3 = jnp.maximum(h3[:, 0:C3], h3[:, C3:2 * C3])  # (2, 128) max over wo
    feat = jnp.maximum(cm3[0:1, :], cm3[1:2, :])      # (1, 128) max over ho

    # fc
    o_ref[0] = (jnp.dot(feat, wf_ref[...], preferred_element_type=jnp.float32)
                + bf_ref[...])


# ----------------------------- weight prepack -------------------------------

def _toeplitz(w_oihw, w_in, w_out, out_wo_order=None):
    """Block-Toeplitz matmul matrices (one per kernel row dh) so that
       out2d[ho] = sum_dh x2d[ho+dh] @ M[dh]
    computes a VALID stride-1 conv on channels-fastest 2-D row layouts."""
    w = np.asarray(w_oihw, np.float32)
    cout, cin, kh, kw = w.shape
    wt = np.transpose(w, (2, 3, 1, 0))                # (KH, KW, Cin, Cout)
    m = np.zeros((kh, w_in * cin, w_out * cout), np.float32)
    for dh in range(kh):
        for dw in range(kw):
            for wo in range(w_out):
                wi = wo + dw
                m[dh, wi * cin:(wi + 1) * cin, wo * cout:(wo + 1) * cout] = wt[dh, dw]
    if out_wo_order is not None:                      # permute output wo blocks
        cols = np.concatenate([np.arange(wo * cout, (wo + 1) * cout)
                               for wo in out_wo_order])
        m = m[:, :, cols]
    return jnp.asarray(m)


def prepack(params):
    """One-time repack of PyTorch-layout weights into MXU-ready matrices."""
    even_odd = list(range(0, W2, 2)) + list(range(1, W2, 2))   # conv2 out column order
    return {
        "m1": _toeplitz(params["w1"], W0, W1),                       # (7, 48, 320)
        "b1": jnp.tile(params["b1"], W1).reshape(1, W1 * C1),        # (1, 320)
        "m2": _toeplitz(params["w2"], W1, W2, out_wo_order=even_odd),  # (3, 320, 512)
        "b2": jnp.tile(params["b2"], W2).reshape(1, W2 * C2),        # (1, 512)
        "m3": _toeplitz(params["w3"], W2P, W3),                      # (3, 256, 256)
        "b3": jnp.tile(params["b3"], W3).reshape(1, W3 * C3),        # (1, 256)
        "wf": params["wf"],                                          # (128, num_classes)
        "bf": params["bf"].reshape(1, -1),                           # (1, num_classes)
    }


# -------------------------------- forward -----------------------------------

def forward(packed, x_nchw):
    n = x_nchw.shape[0]
    nc = packed["wf"].shape[1]
    assert x_nchw.shape[1:] == (C0, H0, W0)
    # NCHW -> per-sample 2-D rows (H, W*C), channels fastest.  Only XLA glue left.
    x2d = jnp.transpose(x_nchw, (0, 2, 3, 1)).reshape(n, H0, W0 * C0)

    def full(a):
        return pl.BlockSpec(a.shape, lambda i, _nd=a.ndim: (0,) * _nd)

    out = pl.pallas_call(
        _fused_kernel,
        out_shape=jax.ShapeDtypeStruct((n, 1, nc), jnp.float32),
        grid=(n,),
        in_specs=[
            pl.BlockSpec((1, H0, W0 * C0), lambda i: (i, 0, 0)),
            full(packed["m1"]), full(packed["b1"]),
            full(packed["m2"]), full(packed["b2"]),
            full(packed["m3"]), full(packed["b3"]),
            full(packed["wf"]), full(packed["bf"]),
        ],
        out_specs=pl.BlockSpec((1, 1, nc), lambda i: (i, 0, 0)),
        scratch_shapes=[
            pltpu.VMEM((H2, (W2 // 2) * C2), jnp.float32),        # (8, 256)
            pltpu.VMEM((H2 // 2, (W2 // 2) * C2), jnp.float32),   # (4, 256)
        ],
        compiler_params=pltpu.CompilerParams(
            dimension_semantics=("parallel",)),
    )(x2d, packed["m1"], packed["b1"], packed["m2"], packed["b2"],
      packed["m3"], packed["b3"], packed["wf"], packed["bf"])
    return out.reshape(n, nc)


# ------------------------------ params / ref ---------------------------------

def init_params(key, num_classes):
    ks = jax.random.split(key, 8)
    s = 0.05
    return {
        "w1": jax.random.normal(ks[0], (C1, C0, K1, K1), jnp.float32) * s,
        "b1": jax.random.normal(ks[1], (C1,), jnp.float32) * s,
        "w2": jax.random.normal(ks[2], (C2, C1, K2, K2), jnp.float32) * s,
        "b2": jax.random.normal(ks[3], (C2,), jnp.float32) * s,
        "w3": jax.random.normal(ks[4], (C3, C2, K3, K3), jnp.float32) * s,
        "b3": jax.random.normal(ks[5], (C3,), jnp.float32) * s,
        "wf": jax.random.normal(ks[6], (C3, num_classes), jnp.float32) * s,
        "bf": jax.random.normal(ks[7], (num_classes,), jnp.float32) * s,
    }


def reference_forward(params, x_nchw):
    def conv(x, w, b):
        y = jax.lax.conv_general_dilated(
            x, w, (1, 1), "VALID", dimension_numbers=("NCHW", "OIHW", "NCHW"))
        return y + b.reshape(1, -1, 1, 1)

    def maxpool(x):
        n, c, h, w = x.shape
        h2, w2 = h // 2, w // 2
        return x[:, :, :h2 * 2, :w2 * 2].reshape(n, c, h2, 2, w2, 2).max(axis=(3, 5))

    x = jax.nn.relu(conv(x_nchw, params["w1"], params["b1"]))
    x = jax.nn.relu(conv(x, params["w2"], params["b2"]))
    x = maxpool(x)
    x = jax.nn.relu(conv(x, params["w3"], params["b3"]))
    x = maxpool(x)
    pooled = x.mean(axis=(2, 3))                       # (N, 128)
    return pooled @ params["wf"] + params["bf"]


# --------------------------------- main --------------------------------------

if __name__ == "__main__":
    num_classes = 10
    key = jax.random.PRNGKey(0)
    pkey, xkey = jax.random.split(key)
    params = init_params(pkey, num_classes)
    packed = prepack(params)                                   # one-time prepack
    x = jax.random.normal(xkey, (2, C0, H0, W0), jnp.float32)  # NCHW like PyTorch

    fwd = jax.jit(forward)
    out = jax.block_until_ready(fwd(packed, x))
    assert out.shape == (2, num_classes), out.shape

    ref = jax.block_until_ready(reference_forward(params, x))
    assert jnp.allclose(out, ref, atol=1e-3, rtol=1e-3), (
        f"mismatch: max abs err {jnp.max(jnp.abs(out - ref))}")

    print("KERNEL_OK")
</pallas_src>

<mosaic_0001>
module attributes {stable_mosaic.version = 11 : i64} {
  func.func @_fused_kernel(%arg0: i32, %arg1: memref<1x16x48xf32, #tpu.memory_space<vmem>>, %arg2: memref<7x48x320xf32, #tpu.memory_space<vmem>>, %arg3: memref<1x320xf32, #tpu.memory_space<vmem>>, %arg4: memref<3x320x512xf32, #tpu.memory_space<vmem>>, %arg5: memref<1x512xf32, #tpu.memory_space<vmem>>, %arg6: memref<3x256x256xf32, #tpu.memory_space<vmem>>, %arg7: memref<1x256xf32, #tpu.memory_space<vmem>>, %arg8: memref<128x10xf32, #tpu.memory_space<vmem>>, %arg9: memref<1x10xf32, #tpu.memory_space<vmem>>, %arg10: memref<1x1x10xf32, #tpu.memory_space<vmem>>, %arg11: memref<8x256xf32, #tpu.memory_space<vmem>>, %arg12: memref<4x256xf32, #tpu.memory_space<vmem>>) attributes {dimension_semantics = [#tpu.dimension_semantics<parallel>], iteration_bounds = array<i64: 2>, scalar_prefetch = 0 : i64, scratch_operands = 2 : i64, tpu.core_type = #tpu.core_type<tc>, window_params = [{transform_indices = @transform_0, window_bounds = array<i64: 1, 16, 48>}, {pipeline_mode = #tpu.pipeline_mode<synchronous>, transform_indices = @transform_1, window_bounds = array<i64: 7, 48, 320>}, {pipeline_mode = #tpu.pipeline_mode<synchronous>, transform_indices = @transform_2, window_bounds = array<i64: 1, 320>}, {pipeline_mode = #tpu.pipeline_mode<synchronous>, transform_indices = @transform_3, window_bounds = array<i64: 3, 320, 512>}, {pipeline_mode = #tpu.pipeline_mode<synchronous>, transform_indices = @transform_4, window_bounds = array<i64: 1, 512>}, {pipeline_mode = #tpu.pipeline_mode<synchronous>, transform_indices = @transform_5, window_bounds = array<i64: 3, 256, 256>}, {pipeline_mode = #tpu.pipeline_mode<synchronous>, transform_indices = @transform_6, window_bounds = array<i64: 1, 256>}, {pipeline_mode = #tpu.pipeline_mode<synchronous>, transform_indices = @transform_7, window_bounds = array<i64: 128, 10>}, {pipeline_mode = #tpu.pipeline_mode<synchronous>, transform_indices = @transform_8, window_bounds = array<i64: 1, 10>}, {transform_indices = @transform_9, window_bounds = array<i64: 1, 1, 10>}]} {
    %c0 = arith.constant 0 : index
    %c0_0 = arith.constant 0 : index
    %c0_1 = arith.constant 0 : index
    %0 = vector.load %arg1[%c0, %c0_0, %c0_1] : memref<1x16x48xf32, #tpu.memory_space<vmem>>, vector<1x16x48xf32>
    %1 = vector.shape_cast %0 : vector<1x16x48xf32> to vector<16x48xf32>
    %2 = vector.extract_strided_slice %1 {offsets = [0, 0], sizes = [10, 48], strides = [1, 1]} : vector<16x48xf32> to vector<10x48xf32>
    %c0_2 = arith.constant 0 : index
    %c0_3 = arith.constant 0 : index
    %c0_4 = arith.constant 0 : index
    %3 = vector.load %arg2[%c0_2, %c0_3, %c0_4] : memref<7x48x320xf32, #tpu.memory_space<vmem>>, vector<1x48x320xf32>
    %4 = vector.shape_cast %3 : vector<1x48x320xf32> to vector<48x320xf32>
    %cst = arith.constant dense<0.000000e+00> : vector<10x320xf32>
    %5 = tpu.matmul %2, %4, %cst {dimension_numbers = #tpu.dot_dimension_numbers<[1], [0], [0], [1], [0, 0, 1, 1], [], []>} : vector<10x48xf32>, vector<48x320xf32>, vector<10x320xf32> -> vector<10x320xf32>
    %6 = vector.extract_strided_slice %1 {offsets = [1, 0], sizes = [10, 48], strides = [1, 1]} : vector<16x48xf32> to vector<10x48xf32>
    %c1 = arith.constant 1 : index
    %c0_5 = arith.constant 0 : index
    %c0_6 = arith.constant 0 : index
    %7 = vector.load %arg2[%c1, %c0_5, %c0_6] : memref<7x48x320xf32, #tpu.memory_space<vmem>>, vector<1x48x320xf32>
    %8 = vector.shape_cast %7 : vector<1x48x320xf32> to vector<48x320xf32>
    %cst_7 = arith.constant dense<0.000000e+00> : vector<10x320xf32>
    %9 = tpu.matmul %6, %8, %cst_7 {dimension_numbers = #tpu.dot_dimension_numbers<[1], [0], [0], [1], [0, 0, 1, 1], [], []>} : vector<10x48xf32>, vector<48x320xf32>, vector<10x320xf32> -> vector<10x320xf32>
    %10 = arith.addf %5, %9 : vector<10x320xf32>
    %11 = vector.extract_strided_slice %1 {offsets = [2, 0], sizes = [10, 48], strides = [1, 1]} : vector<16x48xf32> to vector<10x48xf32>
    %c2 = arith.constant 2 : index
    %c0_8 = arith.constant 0 : index
    %c0_9 = arith.constant 0 : index
    %12 = vector.load %arg2[%c2, %c0_8, %c0_9] : memref<7x48x320xf32, #tpu.memory_space<vmem>>, vector<1x48x320xf32>
    %13 = vector.shape_cast %12 : vector<1x48x320xf32> to vector<48x320xf32>
    %cst_10 = arith.constant dense<0.000000e+00> : vector<10x320xf32>
    %14 = tpu.matmul %11, %13, %cst_10 {dimension_numbers = #tpu.dot_dimension_numbers<[1], [0], [0], [1], [0, 0, 1, 1], [], []>} : vector<10x48xf32>, vector<48x320xf32>, vector<10x320xf32> -> vector<10x320xf32>
    %15 = arith.addf %10, %14 : vector<10x320xf32>
    %16 = vector.extract_strided_slice %1 {offsets = [3, 0], sizes = [10, 48], strides = [1, 1]} : vector<16x48xf32> to vector<10x48xf32>
    %c3 = arith.constant 3 : index
    %c0_11 = arith.constant 0 : index
    %c0_12 = arith.constant 0 : index
    %17 = vector.load %arg2[%c3, %c0_11, %c0_12] : memref<7x48x320xf32, #tpu.memory_space<vmem>>, vector<1x48x320xf32>
    %18 = vector.shape_cast %17 : vector<1x48x320xf32> to vector<48x320xf32>
    %cst_13 = arith.constant dense<0.000000e+00> : vector<10x320xf32>
    %19 = tpu.matmul %16, %18, %cst_13 {dimension_numbers = #tpu.dot_dimension_numbers<[1], [0], [0], [1], [0, 0, 1, 1], [], []>} : vector<10x48xf32>, vector<48x320xf32>, vector<10x320xf32> -> vector<10x320xf32>
    %20 = arith.addf %15, %19 : vector<10x320xf32>
    %21 = vector.extract_strided_slice %1 {offsets = [4, 0], sizes = [10, 48], strides = [1, 1]} : vector<16x48xf32> to vector<10x48xf32>
    %c4 = arith.constant 4 : index
    %c0_14 = arith.constant 0 : index
    %c0_15 = arith.constant 0 : index
    %22 = vector.load %arg2[%c4, %c0_14, %c0_15] : memref<7x48x320xf32, #tpu.memory_space<vmem>>, vector<1x48x320xf32>
    %23 = vector.shape_cast %22 : vector<1x48x320xf32> to vector<48x320xf32>
    %cst_16 = arith.constant dense<0.000000e+00> : vector<10x320xf32>
    %24 = tpu.matmul %21, %23, %cst_16 {dimension_numbers = #tpu.dot_dimension_numbers<[1], [0], [0], [1], [0, 0, 1, 1], [], []>} : vector<10x48xf32>, vector<48x320xf32>, vector<10x320xf32> -> vector<10x320xf32>
    %25 = arith.addf %20, %24 : vector<10x320xf32>
    %26 = vector.extract_strided_slice %1 {offsets = [5, 0], sizes = [10, 48], strides = [1, 1]} : vector<16x48xf32> to vector<10x48xf32>
    %c5 = arith.constant 5 : index
    %c0_17 = arith.constant 0 : index
    %c0_18 = arith.constant 0 : index
    %27 = vector.load %arg2[%c5, %c0_17, %c0_18] : memref<7x48x320xf32, #tpu.memory_space<vmem>>, vector<1x48x320xf32>
    %28 = vector.shape_cast %27 : vector<1x48x320xf32> to vector<48x320xf32>
    %cst_19 = arith.constant dense<0.000000e+00> : vector<10x320xf32>
    %29 = tpu.matmul %26, %28, %cst_19 {dimension_numbers = #tpu.dot_dimension_numbers<[1], [0], [0], [1], [0, 0, 1, 1], [], []>} : vector<10x48xf32>, vector<48x320xf32>, vector<10x320xf32> -> vector<10x320xf32>
    %30 = arith.addf %25, %29 : vector<10x320xf32>
    %31 = vector.extract_strided_slice %1 {offsets = [6, 0], sizes = [10, 48], strides = [1, 1]} : vector<16x48xf32> to vector<10x48xf32>
    %c6 = arith.constant 6 : index
    %c0_20 = arith.constant 0 : index
    %c0_21 = arith.constant 0 : index
    %32 = vector.load %arg2[%c6, %c0_20, %c0_21] : memref<7x48x320xf32, #tpu.memory_space<vmem>>, vector<1x48x320xf32>
    %33 = vector.shape_cast %32 : vector<1x48x320xf32> to vector<48x320xf32>
    %cst_22 = arith.constant dense<0.000000e+00> : vector<10x320xf32>
    %34 = tpu.matmul %31, %33, %cst_22 {dimension_numbers = #tpu.dot_dimension_numbers<[1], [0], [0], [1], [0, 0, 1, 1], [], []>} : vector<10x48xf32>, vector<48x320xf32>, vector<10x320xf32> -> vector<10x320xf32>
    %35 = arith.addf %30, %34 : vector<10x320xf32>
    %c0_23 = arith.constant 0 : index
    %c0_24 = arith.constant 0 : index
    %36 = vector.load %arg3[%c0_23, %c0_24] : memref<1x320xf32, #tpu.memory_space<vmem>>, vector<1x320xf32>
    %37 = vector.broadcast %36 : vector<1x320xf32> to vector<10x320xf32>
    %38 = arith.addf %35, %37 : vector<10x320xf32>
    %cst_25 = arith.constant 0.000000e+00 : f32
    %39 = vector.broadcast %cst_25 : f32 to vector<10x320xf32>
    %40 = arith.maximumf %38, %39 : vector<10x320xf32>
    %41 = vector.extract_strided_slice %40 {offsets = [0, 0], sizes = [8, 320], strides = [1, 1]} : vector<10x320xf32> to vector<8x320xf32>
    %c0_26 = arith.constant 0 : index
    %c0_27 = arith.constant 0 : index
    %c0_28 = arith.constant 0 : index
    %42 = vector.load %arg4[%c0_26, %c0_27, %c0_28] : memref<3x320x512xf32, #tpu.memory_space<vmem>>, vector<1x320x512xf32>
    %43 = vector.shape_cast %42 : vector<1x320x512xf32> to vector<320x512xf32>
    %cst_29 = arith.constant dense<0.000000e+00> : vector<8x512xf32>
    %44 = tpu.matmul %41, %43, %cst_29 {dimension_numbers = #tpu.dot_dimension_numbers<[1], [0], [0], [1], [0, 0, 1, 1], [], []>} : vector<8x320xf32>, vector<320x512xf32>, vector<8x512xf32> -> vector<8x512xf32>
    %45 = vector.extract_strided_slice %40 {offsets = [1, 0], sizes = [8, 320], strides = [1, 1]} : vector<10x320xf32> to vector<8x320xf32>
    %c1_30 = arith.constant 1 : index
    %c0_31 = arith.constant 0 : index
    %c0_32 = arith.constant 0 : index
    %46 = vector.load %arg4[%c1_30, %c0_31, %c0_32] : memref<3x320x512xf32, #tpu.memory_space<vmem>>, vector<1x320x512xf32>
    %47 = vector.shape_cast %46 : vector<1x320x512xf32> to vector<320x512xf32>
    %cst_33 = arith.constant dense<0.000000e+00> : vector<8x512xf32>
    %48 = tpu.matmul %45, %47, %cst_33 {dimension_numbers = #tpu.dot_dimension_numbers<[1], [0], [0], [1], [0, 0, 1, 1], [], []>} : vector<8x320xf32>, vector<320x512xf32>, vector<8x512xf32> -> vector<8x512xf32>
    %49 = arith.addf %44, %48 : vector<8x512xf32>
    %50 = vector.extract_strided_slice %40 {offsets = [2, 0], sizes = [8, 320], strides = [1, 1]} : vector<10x320xf32> to vector<8x320xf32>
    %c2_34 = arith.constant 2 : index
    %c0_35 = arith.constant 0 : index
    %c0_36 = arith.constant 0 : index
    %51 = vector.load %arg4[%c2_34, %c0_35, %c0_36] : memref<3x320x512xf32, #tpu.memory_space<vmem>>, vector<1x320x512xf32>
    %52 = vector.shape_cast %51 : vector<1x320x512xf32> to vector<320x512xf32>
    %cst_37 = arith.constant dense<0.000000e+00> : vector<8x512xf32>
    %53 = tpu.matmul %50, %52, %cst_37 {dimension_numbers = #tpu.dot_dimension_numbers<[1], [0], [0], [1], [0, 0, 1, 1], [], []>} : vector<8x320xf32>, vector<320x512xf32>, vector<8x512xf32> -> vector<8x512xf32>
    %54 = arith.addf %49, %53 : vector<8x512xf32>
    %c0_38 = arith.constant 0 : index
    %c0_39 = arith.constant 0 : index
    %55 = vector.load %arg5[%c0_38, %c0_39] : memref<1x512xf32, #tpu.memory_space<vmem>>, vector<1x512xf32>
    %56 = vector.broadcast %55 : vector<1x512xf32> to vector<8x512xf32>
    %57 = arith.addf %54, %56 : vector<8x512xf32>
    %cst_40 = arith.constant 0.000000e+00 : f32
    %58 = vector.broadcast %cst_40 : f32 to vector<8x512xf32>
    %59 = arith.maximumf %57, %58 : vector<8x512xf32>
    %60 = vector.extract_strided_slice %59 {offsets = [0, 0], sizes = [8, 256], strides = [1, 1]} : vector<8x512xf32> to vector<8x256xf32>
    %61 = vector.extract_strided_slice %59 {offsets = [0, 256], sizes = [8, 256], strides = [1, 1]} : vector<8x512xf32> to vector<8x256xf32>
    %62 = arith.maximumf %60, %61 : vector<8x256xf32>
    %c0_41 = arith.constant 0 : index
    %c0_42 = arith.constant 0 : index
    %63 = vector.load %arg11[%c0_41, %c0_42] : memref<8x256xf32, #tpu.memory_space<vmem>>, vector<8x256xf32>
    tpu.vector_store %arg11[%c0_41, %c0_42], %62 {strides = array<i32>} : memref<8x256xf32, #tpu.memory_space<vmem>>, vector<8x256xf32>,
    %c0_43 = arith.constant 0 : index
    %c0_44 = arith.constant 0 : index
    %64 = vector.load %arg11[%c0_43, %c0_44] : memref<8x256xf32, #tpu.memory_space<vmem>>, vector<1x256xf32>
    %c1_45 = arith.constant 1 : index
    %c0_46 = arith.constant 0 : index
    %65 = vector.load %arg11[%c1_45, %c0_46] : memref<8x256xf32, #tpu.memory_space<vmem>>, vector<1x256xf32>
    %66 = arith.maximumf %64, %65 : vector<1x256xf32>
    %c0_47 = arith.constant 0 : index
    %c0_48 = arith.constant 0 : index
    %67 = vector.load %arg12[%c0_47, %c0_48] : memref<4x256xf32, #tpu.memory_space<vmem>>, vector<1x256xf32>
    tpu.vector_store %arg12[%c0_47, %c0_48], %66 {strides = array<i32>} : memref<4x256xf32, #tpu.memory_space<vmem>>, vector<1x256xf32>,
    %c2_49 = arith.constant 2 : index
    %c0_50 = arith.constant 0 : index
    %68 = vector.load %arg11[%c2_49, %c0_50] : memref<8x256xf32, #tpu.memory_space<vmem>>, vector<1x256xf32>
    %c3_51 = arith.constant 3 : index
    %c0_52 = arith.constant 0 : index
    %69 = vector.load %arg11[%c3_51, %c0_52] : memref<8x256xf32, #tpu.memory_space<vmem>>, vector<1x256xf32>
    %70 = arith.maximumf %68, %69 : vector<1x256xf32>
    %c1_53 = arith.constant 1 : index
    %c0_54 = arith.constant 0 : index
    %71 = vector.load %arg12[%c1_53, %c0_54] : memref<4x256xf32, #tpu.memory_space<vmem>>, vector<1x256xf32>
    tpu.vector_store %arg12[%c1_53, %c0_54], %70 {strides = array<i32>} : memref<4x256xf32, #tpu.memory_space<vmem>>, vector<1x256xf32>,
    %c4_55 = arith.constant 4 : index
    %c0_56 = arith.constant 0 : index
    %72 = vector.load %arg11[%c4_55, %c0_56] : memref<8x256xf32, #tpu.memory_space<vmem>>, vector<1x256xf32>
    %c5_57 = arith.constant 5 : index
    %c0_58 = arith.constant 0 : index
    %73 = vector.load %arg11[%c5_57, %c0_58] : memref<8x256xf32, #tpu.memory_space<vmem>>, vector<1x256xf32>
    %74 = arith.maximumf %72, %73 : vector<1x256xf32>
    %c2_59 = arith.constant 2 : index
    %c0_60 = arith.constant 0 : index
    %75 = vector.load %arg12[%c2_59, %c0_60] : memref<4x256xf32, #tpu.memory_space<vmem>>, vector<1x256xf32>
    tpu.vector_store %arg12[%c2_59, %c0_60], %74 {strides = array<i32>} : memref<4x256xf32, #tpu.memory_space<vmem>>, vector<1x256xf32>,
    %c6_61 = arith.constant 6 : index
    %c0_62 = arith.constant 0 : index
    %76 = vector.load %arg11[%c6_61, %c0_62] : memref<8x256xf32, #tpu.memory_space<vmem>>, vector<1x256xf32>
    %c7 = arith.constant 7 : index
    %c0_63 = arith.constant 0 : index
    %77 = vector.load %arg11[%c7, %c0_63] : memref<8x256xf32, #tpu.memory_space<vmem>>, vector<1x256xf32>
    %78 = arith.maximumf %76, %77 : vector<1x256xf32>
    %c3_64 = arith.constant 3 : index
    %c0_65 = arith.constant 0 : index
    %79 = vector.load %arg12[%c3_64, %c0_65] : memref<4x256xf32, #tpu.memory_space<vmem>>, vector<1x256xf32>
    tpu.vector_store %arg12[%c3_64, %c0_65], %78 {strides = array<i32>} : memref<4x256xf32, #tpu.memory_space<vmem>>, vector<1x256xf32>,
    %c0_66 = arith.constant 0 : index
    %c0_67 = arith.constant 0 : index
    %80 = vector.load %arg12[%c0_66, %c0_67] : memref<4x256xf32, #tpu.memory_space<vmem>>, vector<4x256xf32>
    %81 = vector.extract_strided_slice %80 {offsets = [0, 0], sizes = [2, 256], strides = [1, 1]} : vector<4x256xf32> to vector<2x256xf32>
    %c0_68 = arith.constant 0 : index
    %c0_69 = arith.constant 0 : index
    %c0_70 = arith.constant 0 : index
    %82 = vector.load %arg6[%c0_68, %c0_69, %c0_70] : memref<3x256x256xf32, #tpu.memory_space<vmem>>, vector<1x256x256xf32>
    %83 = vector.shape_cast %82 : vector<1x256x256xf32> to vector<256x256xf32>
    %cst_71 = arith.constant dense<0.000000e+00> : vector<2x256xf32>
    %84 = tpu.matmul %81, %83, %cst_71 {dimension_numbers = #tpu.dot_dimension_numbers<[1], [0], [0], [1], [0, 0, 1, 1], [], []>} : vector<2x256xf32>, vector<256x256xf32>, vector<2x256xf32> -> vector<2x256xf32>
    %85 = vector.extract_strided_slice %80 {offsets = [1, 0], sizes = [2, 256], strides = [1, 1]} : vector<4x256xf32> to vector<2x256xf32>
    %c1_72 = arith.constant 1 : index
    %c0_73 = arith.constant 0 : index
    %c0_74 = arith.constant 0 : index
    %86 = vector.load %arg6[%c1_72, %c0_73, %c0_74] : memref<3x256x256xf32, #tpu.memory_space<vmem>>, vector<1x256x256xf32>
    %87 = vector.shape_cast %86 : vector<1x256x256xf32> to vector<256x256xf32>
    %cst_75 = arith.constant dense<0.000000e+00> : vector<2x256xf32>
    %88 = tpu.matmul %85, %87, %cst_75 {dimension_numbers = #tpu.dot_dimension_numbers<[1], [0], [0], [1], [0, 0, 1, 1], [], []>} : vector<2x256xf32>, vector<256x256xf32>, vector<2x256xf32> -> vector<2x256xf32>
    %89 = arith.addf %84, %88 : vector<2x256xf32>
    %90 = vector.extract_strided_slice %80 {offsets = [2, 0], sizes = [2, 256], strides = [1, 1]} : vector<4x256xf32> to vector<2x256xf32>
    %c2_76 = arith.constant 2 : index
    %c0_77 = arith.constant 0 : index
    %c0_78 = arith.constant 0 : index
    %91 = vector.load %arg6[%c2_76, %c0_77, %c0_78] : memref<3x256x256xf32, #tpu.memory_space<vmem>>, vector<1x256x256xf32>
    %92 = vector.shape_cast %91 : vector<1x256x256xf32> to vector<256x256xf32>
    %cst_79 = arith.constant dense<0.000000e+00> : vector<2x256xf32>
    %93 = tpu.matmul %90, %92, %cst_79 {dimension_numbers = #tpu.dot_dimension_numbers<[1], [0], [0], [1], [0, 0, 1, 1], [], []>} : vector<2x256xf32>, vector<256x256xf32>, vector<2x256xf32> -> vector<2x256xf32>
    %94 = arith.addf %89, %93 : vector<2x256xf32>
    %c0_80 = arith.constant 0 : index
    %c0_81 = arith.constant 0 : index
    %95 = vector.load %arg7[%c0_80, %c0_81] : memref<1x256xf32, #tpu.memory_space<vmem>>, vector<1x256xf32>
    %96 = vector.broadcast %95 : vector<1x256xf32> to vector<2x256xf32>
    %97 = arith.addf %94, %96 : vector<2x256xf32>
    %cst_82 = arith.constant 0.000000e+00 : f32
    %98 = vector.broadcast %cst_82 : f32 to vector<2x256xf32>
    %99 = arith.maximumf %97, %98 : vector<2x256xf32>
    %100 = vector.extract_strided_slice %99 {offsets = [0, 0], sizes = [2, 128], strides = [1, 1]} : vector<2x256xf32> to vector<2x128xf32>
    %101 = vector.extract_strided_slice %99 {offsets = [0, 128], sizes = [2, 128], strides = [1, 1]} : vector<2x256xf32> to vector<2x128xf32>
    %102 = arith.maximumf %100, %101 : vector<2x128xf32>
    %103 = vector.extract_strided_slice %102 {offsets = [0, 0], sizes = [1, 128], strides = [1, 1]} : vector<2x128xf32> to vector<1x128xf32>
    %104 = vector.extract_strided_slice %102 {offsets = [1, 0], sizes = [1, 128], strides = [1, 1]} : vector<2x128xf32> to vector<1x128xf32>
    %105 = arith.maximumf %103, %104 : vector<1x128xf32>
    %c0_83 = arith.constant 0 : index
    %c0_84 = arith.constant 0 : index
    %106 = vector.load %arg8[%c0_83, %c0_84] : memref<128x10xf32, #tpu.memory_space<vmem>>, vector<128x10xf32>
    %cst_85 = arith.constant dense<0.000000e+00> : vector<1x10xf32>
    %107 = tpu.matmul %105, %106, %cst_85 {dimension_numbers = #tpu.dot_dimension_numbers<[1], [0], [0], [1], [0, 0, 1, 1], [], []>} : vector<1x128xf32>, vector<128x10xf32>, vector<1x10xf32> -> vector<1x10xf32>
    %c0_86 = arith.constant 0 : index
    %c0_87 = arith.constant 0 : index
    %108 = vector.load %arg9[%c0_86, %c0_87] : memref<1x10xf32, #tpu.memory_space<vmem>>, vector<1x10xf32>
    %109 = arith.addf %107, %108 : vector<1x10xf32>
    %c0_88 = arith.constant 0 : index
    %c0_89 = arith.constant 0 : index
    %c0_90 = arith.constant 0 : index
    %110 = vector.load %arg10[%c0_88, %c0_89, %c0_90] : memref<1x1x10xf32, #tpu.memory_space<vmem>>, vector<1x1x10xf32>
    %111 = vector.shape_cast %110 : vector<1x1x10xf32> to vector<1x10xf32>
    %112 = vector.shape_cast %109 : vector<1x10xf32> to vector<1x1x10xf32>
    tpu.vector_store %arg10[%c0_88, %c0_89, %c0_90], %112 {strides = array<i32>} : memref<1x1x10xf32, #tpu.memory_space<vmem>>, vector<1x1x10xf32>,
    return
  }
  func.func @transform_0(%arg0: i32) -> (i32, i32, i32) {
    %c0_i32 = arith.constant 0 : i32
    %c0_i32_0 = arith.constant 0 : i32
    %c0_i32_1 = arith.constant 0 : i32
    return %arg0, %c0_i32, %c0_i32_0 : i32, i32, i32
  }
  func.func @transform_1(%arg0: i32) -> (i32, i32, i32) {
    %c0_i32 = arith.constant 0 : i32
    %c0_i32_0 = arith.constant 0 : i32
    %c0_i32_1 = arith.constant 0 : i32
    %c0_i32_2 = arith.constant 0 : i32
    return %c0_i32, %c0_i32_0, %c0_i32_1 : i32, i32, i32
  }
  func.func @transform_2(%arg0: i32) -> (i32, i32) {
    %c0_i32 = arith.constant 0 : i32
    %c0_i32_0 = arith.constant 0 : i32
    %c0_i32_1 = arith.constant 0 : i32
    return %c0_i32, %c0_i32_0 : i32, i32
  }
  func.func @transform_3(%arg0: i32) -> (i32, i32, i32) {
    %c0_i32 = arith.constant 0 : i32
    %c0_i32_0 = arith.constant 0 : i32
    %c0_i32_1 = arith.constant 0 : i32
    %c0_i32_2 = arith.constant 0 : i32
    return %c0_i32, %c0_i32_0, %c0_i32_1 : i32, i32, i32
  }
  func.func @transform_4(%arg0: i32) -> (i32, i32) {
    %c0_i32 = arith.constant 0 : i32
    %c0_i32_0 = arith.constant 0 : i32
    %c0_i32_1 = arith.constant 0 : i32
    return %c0_i32, %c0_i32_0 : i32, i32
  }
  func.func @transform_5(%arg0: i32) -> (i32, i32, i32) {
    %c0_i32 = arith.constant 0 : i32
    %c0_i32_0 = arith.constant 0 : i32
    %c0_i32_1 = arith.constant 0 : i32
    %c0_i32_2 = arith.constant 0 : i32
    return %c0_i32, %c0_i32_0, %c0_i32_1 : i32, i32, i32
  }
  func.func @transform_6(%arg0: i32) -> (i32, i32) {
    %c0_i32 = arith.constant 0 : i32
    %c0_i32_0 = arith.constant 0 : i32
    %c0_i32_1 = arith.constant 0 : i32
    return %c0_i32, %c0_i32_0 : i32, i32
  }
  func.func @transform_7(%arg0: i32) -> (i32, i32) {
    %c0_i32 = arith.constant 0 : i32
    %c0_i32_0 = arith.constant 0 : i32
    %c0_i32_1 = arith.constant 0 : i32
    return %c0_i32, %c0_i32_0 : i32, i32
  }
  func.func @transform_8(%arg0: i32) -> (i32, i32) {
    %c0_i32 = arith.constant 0 : i32
    %c0_i32_0 = arith.constant 0 : i32
    %c0_i32_1 = arith.constant 0 : i32
    return %c0_i32, %c0_i32_0 : i32, i32
  }
  func.func @transform_9(%arg0: i32) -> (i32, i32, i32) {
    %c0_i32 = arith.constant 0 : i32
    %c0_i32_0 = arith.constant 0 : i32
    %c0_i32_1 = arith.constant 0 : i32
    return %arg0, %c0_i32, %c0_i32_0 : i32, i32, i32
  }
}

</mosaic_0001>

<llo_original>
// kernel: forward.1
$region0: #{forward.1}
  #allocation0 [shape = 'u32[]', space=smem, size = 0x4, offset = 0x4, fixed_abs, tag = 'smem constant byte address 0x4 - core index']
  #allocation1 [shape = 'u32[144,128]{1,0:T(1,128)}', space=vmem, size = 0x12000, scoped, tag = 'internal scratch']
  #allocation2 [shape = 'f32[8,256]{1,0:T(8,128)}', space=vmem, size = 0x2000, scoped, tag = 'scratch operand']
  #allocation3 [shape = 'f32[4,256]{1,0:T(4,128)}', space=vmem, size = 0x1000, scoped, tag = 'scratch operand']
  %s0 = inlined_call_operand.vmem [shape: f32[2,16,48], index: 0, kind: input, shape index: {}]
  %s1 = inlined_call_operand.hbm [shape: f32[7,48,320], index: 1, kind: input, shape index: {}]
  %s2 = inlined_call_operand.hbm [shape: f32[1,320], index: 2, kind: input, shape index: {}]
  %s3 = inlined_call_operand.hbm [shape: f32[3,320,512], index: 3, kind: input, shape index: {}]
  %s4 = inlined_call_operand.hbm [shape: f32[1,512], index: 4, kind: input, shape index: {}]
  %s5 = inlined_call_operand.hbm [shape: f32[3,256,256], index: 5, kind: input, shape index: {}]
  %s6 = inlined_call_operand.hbm [shape: f32[1,256], index: 6, kind: input, shape index: {}]
  %s7 = inlined_call_operand.vmem [shape: f32[128,10], index: 7, kind: input, shape index: {}]
  %s8 = inlined_call_operand.hbm [shape: f32[1,10], index: 8, kind: input, shape index: {}]
  %s9 = inlined_call_operand.hbm [shape: f32[2,1,10], index: 9, kind: output, shape index: {}]
  %s10 = sld [smem:[#allocation0]]
  $region97: #{forward.1} parent=0
    _
  %s12 = ssub.s32 1, %s10
  %s13 = scalar_select 0, %s12, %s10
  $region1: #{forward.1} parent=0
    #allocation4 [shape = 'u8[516096]{0}', space=vmem, size = 0x7e000, scoped, tag = 'input window, operand 1, single buffered']
    #allocation5 [shape = 's32[2]{0}', space=sflag, size = 0x8, scoped, tag = 'scoped memory for forward.1']
    #allocation6 [shape = 's32[2]{0}', space=sflag, size = 0x8, scoped, tag = 'scoped memory for forward.1']
    #allocation7 [shape = 'u8[1536]{0}', space=vmem, size = 0x800, scoped, tag = 'input window, operand 2, single buffered']
    #allocation8 [shape = 's32[1]{0}', space=sflag, size = 0x4, scoped, tag = 'scoped memory for forward.1']
    #allocation9 [shape = 'u8[1966080]{0}', space=vmem, size = 0x1e0000, scoped, tag = 'input window, operand 3, single buffered']
    #allocation10 [shape = 'u8[2048]{0}', space=vmem, size = 0x800, scoped, tag = 'input window, operand 4, single buffered']
    #allocation11 [shape = 's32[1]{0}', space=sflag, size = 0x4, scoped, tag = 'scoped memory for forward.1']
    #allocation12 [shape = 'u8[786432]{0}', space=vmem, size = 0xc0000, scoped, tag = 'input window, operand 5, single buffered']
    #allocation13 [shape = 'u8[1024]{0}', space=vmem, size = 0x400, scoped, tag = 'input window, operand 6, single buffered']
    #allocation14 [shape = 's32[1]{0}', space=sflag, size = 0x4, scoped, tag = 'scoped memory for forward.1']
    #allocation15 [shape = 'u8[512]{0}', space=vmem, size = 0x400, scoped, tag = 'input window, operand 8, single buffered']
    #allocation16 [shape = 'u8[1024]{0}', space=vmem, size = 0x400, scoped, tag = 'output window, operand 0']
    %14 = vsyncpa [#allocation5], 0
    %15 = vsyncpa [#allocation8], 0
    %16 = vsyncpa [#allocation11], 0
    %17 = vsyncpa [#allocation14], 0
    %18 = vsyncpa [#allocation6], 0
    %s19 = scalar_lea.sflag [#allocation6], 1
    %20 = vsyncpa %s19, 0
    loop: start=0, step=1, limit=4
    $region2: #{forward.1} parent=1 // loop_pre_header
      _
    $region3: #{forward.1} parent=1 // loop_header
      %s22 = sphi 0, %s26
      %p23 = scmp.ge.s32.totalorder %s22, 4
      %s32 = sphi 0, %s34
      %s35 = sphi 0, %s32
      %s36 = sphi 0, %s35
      %s52 = sphi 0, %s36
      %s56 = sphi 0, %s56
      %s58 = sphi 0, %s56
      %s59 = sphi 0, %s58
      %s73 = sphi 0, %s59
      %s77 = sphi 0, %s77
      %s79 = sphi 0, %s77
      %s80 = sphi 0, %s79
      %s94 = sphi 0, %s80
      %s98 = sphi 0, %s98
      %s100 = sphi 0, %s98
      %s101 = sphi 0, %s100
      %s115 = sphi 0, %s101
      %s119 = sphi 0, %s119
      %s121 = sphi 0, %s119
      %s122 = sphi 0, %s121
      %s136 = sphi 0, %s122
      %s140 = sphi 0, %s140
      %s142 = sphi 0, %s140
      %s143 = sphi 0, %s142
      %s157 = sphi 0, %s143
      %s161 = sphi 0, %s161
      %s163 = sphi 0, %s161
      %s164 = sphi 0, %s163
      %s178 = sphi 0, %s164
      %s182 = sphi 0, %s182
      %s184 = sphi 0, %s182
      %s185 = sphi 0, %s184
      %s199 = sphi 0, %s185
      %s203 = sphi 0, %s203
      %s205 = sphi 0, %s203
      %s206 = sphi 0, %s205
      %s220 = sphi 0, %s206
      %s226 = sphi 0, %s228
      %s229 = sphi 0, %s226
      %s230 = sphi 0, %s229
      %s246 = sphi 0, %s230
    $region4: #{forward.1} parent=1 // loop_header_branch
      %25 = sbr.rel (%p23) target = $region8
    $region5: #{forward.1} parent=1 // loop_body
      %s27 = ssub.s32 %s22, 1
      %s28 = ssub.s32 %s22, 2
      %s29 = sadd.s32 %s22, 1
      %s30 = ssub.s32 %s22, %s29
      %p31 = scmp.eq.s32.totalorder %s30, 0
      %s33 = sadd.s32 %s32, 1
      %s34 = scalar_select %p31, %s32, %s33
      %p37 = pneg %p31
      %p38 = scmp.eq.s32.totalorder %s22, 1
      %p39 = por %p37, %p38
      %p40 = scmp.ne.s32.totalorder %s32, %s35
      %p41 = scmp.eq.s32.totalorder %s22, 0
      %p42 = por %p40, %p41
      %p43 = scmp.ne.s32.totalorder %s32, %s35
      %p44 = scmp.eq.s32.totalorder %s27, 1
      %p45 = por %p43, %p44
      %p46 = scmp.ne.s32.totalorder %s35, %s36
      %p47 = scmp.eq.s32.totalorder %s27, 0
      %p48 = por %p46, %p47
      %p49 = scmp.ne.s32.totalorder %s35, %s36
      %p50 = scmp.eq.s32.totalorder %s28, 1
      %p51 = por %p49, %p50
      %p53 = scmp.ne.s32.totalorder %s36, %s52
      %p54 = scmp.eq.s32.totalorder %s28, 0
      %p55 = por %p53, %p54
      %s57 = sadd.s32 %s56, 1
      %p60 = scmp.eq.s32.totalorder %s22, 1
      %p61 = scmp.ne.s32.totalorder %s56, %s58
      %p62 = scmp.eq.s32.totalorder %s22, 0
      %p63 = por %p61, %p62
      %p64 = scmp.ne.s32.totalorder %s56, %s58
      %p65 = scmp.eq.s32.totalorder %s27, 1
      %p66 = por %p64, %p65
      %p67 = scmp.ne.s32.totalorder %s58, %s59
      %p68 = scmp.eq.s32.totalorder %s27, 0
      %p69 = por %p67, %p68
      %p70 = scmp.ne.s32.totalorder %s58, %s59
      %p71 = scmp.eq.s32.totalorder %s28, 1
      %p72 = por %p70, %p71
      %p74 = scmp.ne.s32.totalorder %s59, %s73
      %p75 = scmp.eq.s32.totalorder %s28, 0
      %p76 = por %p74, %p75
      %s78 = sadd.s32 %s77, 1
      %p81 = scmp.eq.s32.totalorder %s22, 1
      %p82 = scmp.ne.s32.totalorder %s77, %s79
      %p83 = scmp.eq.s32.totalorder %s22, 0
      %p84 = por %p82, %p83
      %p85 = scmp.ne.s32.totalorder %s77, %s79
      %p86 = scmp.eq.s32.totalorder %s27, 1
      %p87 = por %p85, %p86
      %p88 = scmp.ne.s32.totalorder %s79, %s80
      %p89 = scmp.eq.s32.totalorder %s27, 0
      %p90 = por %p88, %p89
      %p91 = scmp.ne.s32.totalorder %s79, %s80
      %p92 = scmp.eq.s32.totalorder %s28, 1
      %p93 = por %p91, %p92
      %p95 = scmp.ne.s32.totalorder %s80, %s94
      %p96 = scmp.eq.s32.totalorder %s28, 0
      %p97 = por %p95, %p96
      %s99 = sadd.s32 %s98, 1
      %p102 = scmp.eq.s32.totalorder %s22, 1
      %p103 = scmp.ne.s32.totalorder %s98, %s100
      %p104 = scmp.eq.s32.totalorder %s22, 0
      %p105 = por %p103, %p104
      %p106 = scmp.ne.s32.totalorder %s98, %s100
      %p107 = scmp.eq.s32.totalorder %s27, 1
      %p108 = por %p106, %p107
      %p109 = scmp.ne.s32.totalorder %s100, %s101
      %p110 = scmp.eq.s32.totalorder %s27, 0
      %p111 = por %p109, %p110
      %p112 = scmp.ne.s32.totalorder %s100, %s101
      %p113 = scmp.eq.s32.totalorder %s28, 1
      %p114 = por %p112, %p113
      %p116 = scmp.ne.s32.totalorder %s101, %s115
      %p117 = scmp.eq.s32.totalorder %s28, 0
      %p118 = por %p116, %p117
      %s120 = sadd.s32 %s119, 1
      %p123 = scmp.eq.s32.totalorder %s22, 1
      %p124 = scmp.ne.s32.totalorder %s119, %s121
      %p125 = scmp.eq.s32.totalorder %s22, 0
      %p126 = por %p124, %p125
      %p127 = scmp.ne.s32.totalorder %s119, %s121
      %p128 = scmp.eq.s32.totalorder %s27, 1
      %p129 = por %p127, %p128
      %p130 = scmp.ne.s32.totalorder %s121, %s122
      %p131 = scmp.eq.s32.totalorder %s27, 0
      %p132 = por %p130, %p131
      %p133 = scmp.ne.s32.totalorder %s121, %s122
      %p134 = scmp.eq.s32.totalorder %s28, 1
      %p135 = por %p133, %p134
      %p137 = scmp.ne.s32.totalorder %s122, %s136
      %p138 = scmp.eq.s32.totalorder %s28, 0
      %p139 = por %p137, %p138
      %s141 = sadd.s32 %s140, 1
      %p144 = scmp.eq.s32.totalorder %s22, 1
      %p145 = scmp.ne.s32.totalorder %s140, %s142
      %p146 = scmp.eq.s32.totalorder %s22, 0
      %p147 = por %p145, %p146
      %p148 = scmp.ne.s32.totalorder %s140, %s142
      %p149 = scmp.eq.s32.totalorder %s27, 1
      %p150 = por %p148, %p149
      %p151 = scmp.ne.s32.totalorder %s142, %s143
      %p152 = scmp.eq.s32.totalorder %s27, 0
      %p153 = por %p151, %p152
      %p154 = scmp.ne.s32.totalorder %s142, %s143
      %p155 = scmp.eq.s32.totalorder %s28, 1
      %p156 = por %p154, %p155
      %p158 = scmp.ne.s32.totalorder %s143, %s157
      %p159 = scmp.eq.s32.totalorder %s28, 0
      %p160 = por %p158, %p159
      %s162 = sadd.s32 %s161, 1
      %p165 = scmp.eq.s32.totalorder %s22, 1
      %p166 = scmp.ne.s32.totalorder %s161, %s163
      %p167 = scmp.eq.s32.totalorder %s22, 0
      %p168 = por %p166, %p167
      %p169 = scmp.ne.s32.totalorder %s161, %s163
      %p170 = scmp.eq.s32.totalorder %s27, 1
      %p171 = por %p169, %p170
      %p172 = scmp.ne.s32.totalorder %s163, %s164
      %p173 = scmp.eq.s32.totalorder %s27, 0
      %p174 = por %p172, %p173
      %p175 = scmp.ne.s32.totalorder %s163, %s164
      %p176 = scmp.eq.s32.totalorder %s28, 1
      %p177 = por %p175, %p176
      %p179 = scmp.ne.s32.totalorder %s164, %s178
      %p180 = scmp.eq.s32.totalorder %s28, 0
      %p181 = por %p179, %p180
      %s183 = sadd.s32 %s182, 1
      %p186 = scmp.eq.s32.totalorder %s22, 1
      %p187 = scmp.ne.s32.totalorder %s182, %s184
      %p188 = scmp.eq.s32.totalorder %s22, 0
      %p189 = por %p187, %p188
      %p190 = scmp.ne.s32.totalorder %s182, %s184
      %p191 = scmp.eq.s32.totalorder %s27, 1
      %p192 = por %p190, %p191
      %p193 = scmp.ne.s32.totalorder %s184, %s185
      %p194 = scmp.eq.s32.totalorder %s27, 0
      %p195 = por %p193, %p194
      %p196 = scmp.ne.s32.totalorder %s184, %s185
      %p197 = scmp.eq.s32.totalorder %s28, 1
      %p198 = por %p196, %p197
      %p200 = scmp.ne.s32.totalorder %s185, %s199
      %p201 = scmp.eq.s32.totalorder %s28, 0
      %p202 = por %p200, %p201
      %s204 = sadd.s32 %s203, 1
      %p207 = scmp.eq.s32.totalorder %s22, 1
      %p208 = scmp.ne.s32.totalorder %s203, %s205
      %p209 = scmp.eq.s32.totalorder %s22, 0
      %p210 = por %p208, %p209
      %p211 = scmp.ne.s32.totalorder %s203, %s205
      %p212 = scmp.eq.s32.totalorder %s27, 1
      %p213 = por %p211, %p212
      %p214 = scmp.ne.s32.totalorder %s205, %s206
      %p215 = scmp.eq.s32.totalorder %s27, 0
      %p216 = por %p214, %p215
      %p217 = scmp.ne.s32.totalorder %s205, %s206
      %p218 = scmp.eq.s32.totalorder %s28, 1
      %p219 = por %p217, %p218
      %p221 = scmp.ne.s32.totalorder %s206, %s220
      %p222 = scmp.eq.s32.totalorder %s28, 0
      %p223 = por %p221, %p222
      %s224 = ssub.s32 %s22, %s29
      %p225 = scmp.eq.s32.totalorder %s224, 0
      %s227 = sadd.s32 %s226, 1
      %s228 = scalar_select %p225, %s226, %s227
      %p231 = pneg %p225
      %p232 = scmp.eq.s32.totalorder %s22, 1
      %p233 = por %p231, %p232
      %p234 = scmp.ne.s32.totalorder %s226, %s229
      %p235 = scmp.eq.s32.totalorder %s22, 0
      %p236 = por %p234, %p235
      %p237 = scmp.ne.s32.totalorder %s226, %s229
      %p238 = scmp.eq.s32.totalorder %s27, 1
      %p239 = por %p237, %p238
      %p240 = scmp.ne.s32.totalorder %s229, %s230
      %p241 = scmp.eq.s32.totalorder %s27, 0
      %p242 = por %p240, %p241
      %p243 = scmp.ne.s32.totalorder %s229, %s230
      %p244 = scmp.eq.s32.totalorder %s28, 1
      %p245 = por %p243, %p244
      %p247 = scmp.ne.s32.totalorder %s230, %s246
      %p248 = scmp.eq.s32.totalorder %s28, 0
      %p249 = por %p247, %p248
      %p250 = scmp.le.s32.totalorder 1, %s22
      %p251 = scmp.lt.s32.totalorder %s22, 3
      %p252 = pnand %p250, %p251
      %p253 = pneg %p252
      // Predicated region
      $region9: #{forward.1} parent=5 // pred_check
        _
      $region10: #{forward.1} parent=5 // pred_check_branch
        %255 = sbr.rel (%p252) target = $region12
      $region11: #{forward.1} parent=5 // pred_region
        %s256 = ssub.s32 %s22, 1
        // Predicated region
        $region13: #{forward.1} parent=11 // pred_check
          %p257 = pneg %p69
        $region14: #{forward.1} parent=11 // pred_check_branch
          %259 = sbr.rel (%p257) target = $region16
        $region15: #{forward.1} parent=11 // pred_region
          %s261 = ssub.s32 16128, 16128
          %262 = vsyncadd [#allocation5], %s261
          %s263 = sshll.u32 [#allocation4], 4
          %s264 = int_to_ptr.vmem [resolvable:$true] %s263
          %269 = dma.hbm_to_vmem [thread:$0]  %s1, 16128, %s264, [#allocation5], 384, 384, 24
        $region16: #{forward.1} parent=11 // pred_fallthru
          _
        // Predicated region
        $region17: #{forward.1} parent=11 // pred_check
          %p270 = pneg %p90
        $region18: #{forward.1} parent=11 // pred_check_branch
          %272 = sbr.rel (%p270) target = $region20
        $region19: #{forward.1} parent=11 // pred_region
          %s274 = ssub.s32 48, 48
          %275 = vsyncadd [#allocation8], %s274
          %s277 = sshll.u32 [#allocation7], 4
          %s278 = int_to_ptr.vmem [resolvable:$true] %s277
          %280 = dma.hbm_to_vmem [thread:$0]  %s2, 48, %s278, [#allocation8]
        $region20: #{forward.1} parent=11 // pred_fallthru
          _
        // Predicated region
        $region21: #{forward.1} parent=11 // pred_check
          %p281 = pneg %p111
        $region22: #{forward.1} parent=11 // pred_check_branch
          %283 = sbr.rel (%p281) target = $region24
        $region23: #{forward.1} parent=11 // pred_region
          %s285 = ssub.s32 61440, 61440
          %286 = vsyncadd [#allocation8], %s285
          %s287 = sshll.u32 [#allocation9], 4
          %s288 = int_to_ptr.vmem [resolvable:$true] %s287
          %293 = dma.hbm_to_vmem [thread:$0]  %s3, 61440, %s288, [#allocation8], 512, 512, 32
        $region24: #{forward.1} parent=11 // pred_fallthru
          _
        // Predicated region
        $region25: #{forward.1} parent=11 // pred_check
          %p294 = pneg %p132
        $region26: #{forward.1} parent=11 // pred_check_branch
          %296 = sbr.rel (%p294) target = $region28
        $region27: #{forward.1} parent=11 // pred_region
          %s298 = ssub.s32 64, 64
          %299 = vsyncadd [#allocation11], %s298
          %s301 = sshll.u32 [#allocation10], 4
          %s302 = int_to_ptr.vmem [resolvable:$true] %s301
          %304 = dma.hbm_to_vmem [thread:$0]  %s4, 64, %s302, [#allocation11]
        $region28: #{forward.1} parent=11 // pred_fallthru
          _
        // Predicated region
        $region29: #{forward.1} parent=11 // pred_check
          %p305 = pneg %p153
        $region30: #{forward.1} parent=11 // pred_check_branch
          %307 = sbr.rel (%p305) target = $region32
        $region31: #{forward.1} parent=11 // pred_region
          %s309 = ssub.s32 24576, 24576
          %310 = vsyncadd [#allocation11], %s309
          %s311 = sshll.u32 [#allocation12], 4
          %s312 = int_to_ptr.vmem [resolvable:$true] %s311
          %317 = dma.hbm_to_vmem [thread:$0]  %s5, 24576, %s312, [#allocation11], 256, 256, 16
        $region32: #{forward.1} parent=11 // pred_fallthru
          _
        // Predicated region
        $region33: #{forward.1} parent=11 // pred_check
          %p318 = pneg %p174
        $region34: #{forward.1} parent=11 // pred_check_branch
          %320 = sbr.rel (%p318) target = $region36
        $region35: #{forward.1} parent=11 // pred_region
          %s322 = ssub.s32 32, 32
          %323 = vsyncadd [#allocation14], %s322
          %s325 = sshll.u32 [#allocation13], 4
          %s326 = int_to_ptr.vmem [resolvable:$true] %s325
          %328 = dma.hbm_to_vmem [thread:$0]  %s6, 32, %s326, [#allocation14]
        $region36: #{forward.1} parent=11 // pred_fallthru
          _
        // Predicated region
        $region37: #{forward.1} parent=11 // pred_check
          %p329 = pneg %p195
        $region38: #{forward.1} parent=11 // pred_check_branch
          %331 = sbr.rel (%p329) target = $region40
        $region39: #{forward.1} parent=11 // pred_region
          _
        $region40: #{forward.1} parent=11 // pred_fallthru
          _
        // Predicated region
        $region41: #{forward.1} parent=11 // pred_check
          %p332 = pneg %p216
        $region42: #{forward.1} parent=11 // pred_check_branch
          %334 = sbr.rel (%p332) target = $region44
        $region43: #{forward.1} parent=11 // pred_region
          %s336 = ssub.s32 16, 16
          %337 = vsyncadd [#allocation14], %s336
          %s339 = sshll.u32 [#allocation15], 4
          %s340 = int_to_ptr.vmem [resolvable:$true] %s339
          %342 = dma.hbm_to_vmem [thread:$0]  %s8, 16, %s340, [#allocation14]
        $region44: #{forward.1} parent=11 // pred_fallthru
          _
      $region12: #{forward.1} parent=5 // pred_fallthru
        _
      %p343 = scmp.lt.s32.totalorder %s22, 2
      // Predicated region
      $region45: #{forward.1} parent=5 // pred_check
        %p344 = pneg %p343
      $region46: #{forward.1} parent=5 // pred_check_branch
        %346 = sbr.rel (%p344) target = $region48
      $region47: #{forward.1} parent=5 // pred_region
        // Predicated region
        $region49: #{forward.1} parent=47 // pred_check
          %p347 = pneg %p42
        $region50: #{forward.1} parent=47 // pred_check_branch
          %349 = sbr.rel (%p347) target = $region52
        $region51: #{forward.1} parent=47 // pred_region
          %p350 = scmp.lt.s32.totalorder %s22, 1
          %s351 = scalar_select %p350, %s22, 1
          %s352 = smul.addr %s351, 2
          %s353 = smul.addr %s352, 8
          %s354 = scalar_lea.vmem %s0, %s353
        $region52: #{forward.1} parent=47 // pred_fallthru
          _
      $region48: #{forward.1} parent=5 // pred_fallthru
        _
      %p355 = scmp.le.s32.totalorder 1, %s22
      %p356 = scmp.lt.s32.totalorder %s22, 3
      %p357 = pnand %p355, %p356
      %p358 = pneg %p357
      // Predicated region
      $region53: #{forward.1} parent=5 // pred_check
        _
      $region54: #{forward.1} parent=5 // pred_check_branch
        %360 = sbr.rel (%p357) target = $region56
      $region55: #{forward.1} parent=5 // pred_region
        %s361 = ssub.s32 %s22, 1
        // Predicated region
        $region57: #{forward.1} parent=55 // pred_check
          %p362 = pneg %p69
        $region58: #{forward.1} parent=55 // pred_check_branch
          %364 = sbr.rel (%p362) target = $region60
        $region59: #{forward.1} parent=55 // pred_region
          %365 = dma.done [#allocation5], 16128
        $region60: #{forward.1} parent=55 // pred_fallthru
          _
        // Predicated region
        $region61: #{forward.1} parent=55 // pred_check
          %p366 = pneg %p90
        $region62: #{forward.1} parent=55 // pred_check_branch
          %368 = sbr.rel (%p366) target = $region64
        $region63: #{forward.1} parent=55 // pred_region
          %369 = dma.done [#allocation8], 48
        $region64: #{forward.1} parent=55 // pred_fallthru
          _
        // Predicated region
        $region65: #{forward.1} parent=55 // pred_check
          %p370 = pneg %p111
        $region66: #{forward.1} parent=55 // pred_check_branch
          %372 = sbr.rel (%p370) target = $region68
        $region67: #{forward.1} parent=55 // pred_region
          %373 = dma.done [#allocation8], 61440
        $region68: #{forward.1} parent=55 // pred_fallthru
          _
        // Predicated region
        $region69: #{forward.1} parent=55 // pred_check
          %p374 = pneg %p132
        $region70: #{forward.1} parent=55 // pred_check_branch
          %376 = sbr.rel (%p374) target = $region72
        $region71: #{forward.1} parent=55 // pred_region
          %377 = dma.done [#allocation11], 64
        $region72: #{forward.1} parent=55 // pred_fallthru
          _
        // Predicated region
        $region73: #{forward.1} parent=55 // pred_check
          %p378 = pneg %p153
        $region74: #{forward.1} parent=55 // pred_check_branch
          %380 = sbr.rel (%p378) target = $region76
        $region75: #{forward.1} parent=55 // pred_region
          %381 = dma.done [#allocation11], 24576
        $region76: #{forward.1} parent=55 // pred_fallthru
          _
        // Predicated region
        $region77: #{forward.1} parent=55 // pred_check
          %p382 = pneg %p174
        $region78: #{forward.1} parent=55 // pred_check_branch
          %384 = sbr.rel (%p382) target = $region80
        $region79: #{forward.1} parent=55 // pred_region
          %385 = dma.done [#allocation14], 32
        $region80: #{forward.1} parent=55 // pred_fallthru
          _
        // Predicated region
        $region81: #{forward.1} parent=55 // pred_check
          %p386 = pneg %p216
        $region82: #{forward.1} parent=55 // pred_check_branch
          %388 = sbr.rel (%p386) target = $region84
        $region83: #{forward.1} parent=55 // pred_region
          %389 = dma.done [#allocation14], 16
        $region84: #{forward.1} parent=55 // pred_fallthru
          _
        %p390 = scmp.lt.s32.totalorder %s27, 1
        %s391 = scalar_select %p390, %s27, 1
        %s392 = smul.addr %s391, 2
        %s393 = smul.addr %s392, 8
        %s394 = scalar_lea.vmem %s0, %s393
        %p395 = pneg %p48
        %p396 = pneg %p45
        %p397 = pneg %p69
        %p398 = pneg %p66
        %p399 = pneg %p90
        %p400 = pneg %p87
        %p401 = pneg %p111
        %p402 = pneg %p108
        %p403 = pneg %p132
        %p404 = pneg %p129
        %p405 = pneg %p153
        %p406 = pneg %p150
        %p407 = pneg %p174
        %p408 = pneg %p171
        %p409 = pneg %p195
        %p410 = pneg %p192
        %p411 = pneg %p216
        %p412 = pneg %p213
        %p413 = pneg %p242
        %p414 = pneg %p239
        %s415 = sand.u32 %s229, 1
        %s416 = scalar_lea.sflag [#allocation6], %s415
        %s417 = sand.u32 %s229, 1
        %s418 = scalar_lea.vmem [#allocation16], %s417
        %p419 = scmp.lt.s32.totalorder %s27, 1
        %s420 = scalar_select %p419, %s27, 1
        %s421 = smul.addr %s420, 2
        %s422 = smul.addr %s421, 8
        %s423 = scalar_lea.vmem %s0, %s422
        %v424 = vld [vmem:[%s423] sm:$0xff]
        %v425 = vld [vmem:[%s423 + $0x8] sm:$0xff]
        %v426 = vld [vmem:[#allocation4] sm:$0xff]
        %v427 = vld [vmem:[#allocation4 + $0x8] sm:$0xff]
        %v428 = vld [vmem:[#allocation4 + $0x10] sm:$0xff]
        %v429 = vld [vmem:[#allocation4 + $0x18] sm:$0xff]
        %v430 = vld [vmem:[#allocation4 + $0x20] sm:$0xff]
        %v431 = vld [vmem:[#allocation4 + $0x28] sm:$0xff]
        %v432 = vld [vmem:[#allocation4 + $0x30] sm:$0xff]
        %v433 = vld [vmem:[#allocation4 + $0x38] sm:$0xff]
        %v434 = vld [vmem:[#allocation4 + $0x40] sm:$0xff]
        %v435 = vld [vmem:[#allocation4 + $0x48] sm:$0xff]
        %v436 = vld [vmem:[#allocation4 + $0x50] sm:$0xff]
        %v437 = vld [vmem:[#allocation4 + $0x58] sm:$0xff]
        %v438 = vld [vmem:[#allocation4 + $0x60] sm:$0xff]
        %v439 = vld [vmem:[#allocation4 + $0x68] sm:$0xff]
        %v440 = vld [vmem:[#allocation4 + $0x70] sm:$0xff]
        %v441 = vld [vmem:[#allocation4 + $0x78] sm:$0xff]
        %v442 = vld [vmem:[#allocation4 + $0x80] sm:$0xff]
        %v443 = vld [vmem:[#allocation4 + $0x88] sm:$0xff]
        %s444 = scalar_lea.vmem [#allocation4], 144
        %v445 = vld [vmem:[%s444] sm:$0xff]
        %v446 = vld [vmem:[%s444 + $0x8] sm:$0xff]
        %v447 = vld [vmem:[%s444 + $0x10] sm:$0xff]
        %v448 = vld [vmem:[%s444 + $0x18] sm:$0xff]
        %v449 = vld [vmem:[%s444 + $0x20] sm:$0xff]
        %v450 = vld [vmem:[%s444 + $0x28] sm:$0xff]
        %v451 = vld [vmem:[%s444 + $0x30] sm:$0xff]
        %v452 = vld [vmem:[%s444 + $0x38] sm:$0xff]
        %v453 = vld [vmem:[%s444 + $0x40] sm:$0xff]
        %v454 = vld [vmem:[%s444 + $0x48] sm:$0xff]
        %v455 = vld [vmem:[%s444 + $0x50] sm:$0xff]
        %v456 = vld [vmem:[%s444 + $0x58] sm:$0xff]
        %v457 = vld [vmem:[%s444 + $0x60] sm:$0xff]
        %v458 = vld [vmem:[%s444 + $0x68] sm:$0xff]
        %v459 = vld [vmem:[%s444 + $0x70] sm:$0xff]
        %v460 = vld [vmem:[%s444 + $0x78] sm:$0xff]
        %v461 = vld [vmem:[%s444 + $0x80] sm:$0xff]
        %v462 = vld [vmem:[%s444 + $0x88] sm:$0xff]
        %vm465 = vcmask 1046528
        %v466 = vrot.slane %v424, 1
        %v467 = vrot.slane %v425, 1
        %v468 = vsel %vm465, %v466, %v467
        %vm469 = vcmask 392192
        %v470 = vsel %vm469, %v468, 0
        %v472 = vsel %vm469, %v467, 0
        %474 = vmatprep.subr.mxu0 %v446
        %475 = vmatpush1.msra.mxu0 %v445
        %476 = vmatprep.subr.mxu0 %v449
        %477 = vmatpush1.msra.mxu0 %v448
        %478 = vmatprep.subr.mxu0 %v452
        %479 = vmatpush1.msra.mxu0 %v451
        %480 = vmatprep.subr.mxu0 %v455
        %481 = vmatpush1.msra.mxu0 %v454
        %482 = vmatprep.subr.mxu0 %v458
        %483 = vmatpush1.msra.mxu0 %v457
        %484 = vmatprep.subr.mxu0 %v461
        %485 = vmatpush1.msra.mxu0 %v460
        %486 = vmatprep.subr.mxu0 0.0
        %487 = vmatpush1.msra.mxu0 0.0
        %488 = vmatprep.subr.mxu0 0.0
        %489 = vmatpush1.msra.mxu0 0.0
        %490 = vmatprep.subr.mxu0 0.0
        %491 = vmatpush1.msra.mxu0 0.0
        %492 = vmatprep.subr.mxu0 0.0
        %493 = vmatpush1.msra.mxu0 0.0
        %494 = vmatprep.subr.mxu0 0.0
        %495 = vmatpush1.msra.mxu0 0.0
        %496 = vmatprep.subr.mxu0 0.0
        %497 = vmatpush1.msra.mxu0 0.0
        %498 = vmatprep.subr.mxu0 0.0
        %499 = vmatpush1.msra.mxu0 0.0
        %500 = vmatprep.subr.mxu0 0.0
        %501 = vmatpush1.msra.mxu0 0.0
        %502 = vmatprep.subr.mxu0 0.0
        %503 = vmatpush1.msra.mxu0 0.0
        %504 = vmatprep.subr.mxu0 0.0
        %505 = vmatpush1.msra.mxu0 0.0
        %506 = vmatprep.subr.mxu0 0.0
        %507 = vmatpush1.msra.mxu0 0.0
        %508 = vmatprep.subr.mxu0 0.0
        %509 = vmatpush1.msra.mxu0 0.0
        %510 = vmatprep.subr.mxu0 0.0
        %511 = vmatpush1.msra.mxu0 0.0
        %512 = vmatprep.subr.mxu0 0.0
        %513 = vmatpush1.msra.mxu0 0.0
        %514 = vmatprep.subr.mxu0 0.0
        %515 = vmatpush1.msra.mxu0 0.0
        %516 = vmatprep.subr.mxu0 0.0
        %517 = vmatpush1.msra.mxu0 0.0
        %518 = vmatprep.subr.mxu0 0.0
        %519 = vmatpush1.msra.mxu0 0.0
        %520 = vmatprep.subr.mxu0 0.0
        %521 = vmatpush1.msra.mxu0 0.0
        %522 = vmatprep.subr.mxu0 0.0
        %523 = vmatpush1.msra.mxu0 0.0
        %524 = vmatprep.subr.mxu0 0.0
        %525 = vmatpush1.msra.mxu0 0.0
        %526 = vmatprep.subr.mxu0 0.0
        %527 = vmatpush1.msra.mxu0 0.0
        %528 = vmatprep.subr.mxu0 0.0
        %529 = vmatpush1.msra.mxu0 0.0
        %530 = vmatprep.subr.mxu0 0.0
        %531 = vmatpush1.msra.mxu0 0.0
        %532 = vmatprep.subr.mxu0 0.0
        %533 = vmatpush1.msra.mxu0 0.0
        %534 = vmatprep.subr.mxu0 0.0
        %535 = vmatpush1.msra.mxu0 0.0
        %536 = vmatprep.subr.mxu0 0.0
        %537 = vmatpush1.msra.mxu0 0.0
        %538 = vmatprep.mubr.f32.mxu0 0.0
        %539 = vmatmul.mubr.f32.gmra.mrb[0].mxu0 %v470
        %v540 = vpop.f32.mrb[0].mxu0
        %v541 = vadd.f32 0.0, %v540
        %v542 = vpop.f32.mrb[0].mxu0
        %v543 = vadd.f32 0.0, %v542
        %544 = vmatprep.mubr.f32.mxu0 0.0
        %545 = vmatmul.mubr.f32.gmra.mrb[0].mxu0 %v472
        %v546 = vpop.f32.mrb[0].mxu0
        %v547 = vadd.f32 0.0, %v546
        %v548 = vpop.f32.mrb[0].mxu0
        %v549 = vadd.f32 0.0, %v548
        %550 = vdwg.mxu0
        %551 = vmatprep.subr.mxu0 0.0
        %552 = vmatpush1.msra.mxu0 %v447
        %553 = vmatprep.subr.mxu0 0.0
        %554 = vmatpush1.msra.mxu0 %v450
        %555 = vmatprep.subr.mxu0 0.0
        %556 = vmatpush1.msra.mxu0 %v453
        %557 = vmatprep.subr.mxu0 0.0
        %558 = vmatpush1.msra.mxu0 %v456
        %559 = vmatprep.subr.mxu0 0.0
        %560 = vmatpush1.msra.mxu0 %v459
        %561 = vmatprep.subr.mxu0 0.0
        %562 = vmatpush1.msra.mxu0 %v462
        %563 = vmatprep.subr.mxu0 0.0
        %564 = vmatpush1.msra.mxu0 0.0
        %565 = vmatprep.subr.mxu0 0.0
        %566 = vmatpush1.msra.mxu0 0.0
        %567 = vmatprep.subr.mxu0 0.0
        %568 = vmatpush1.msra.mxu0 0.0
        %569 = vmatprep.subr.mxu0 0.0
        %570 = vmatpush1.msra.mxu0 0.0
        %571 = vmatprep.subr.mxu0 0.0
        %572 = vmatpush1.msra.mxu0 0.0
        %573 = vmatprep.subr.mxu0 0.0
        %574 = vmatpush1.msra.mxu0 0.0
        %575 = vmatprep.subr.mxu0 0.0
        %576 = vmatpush1.msra.mxu0 0.0
        %577 = vmatprep.subr.mxu0 0.0
        %578 = vmatpush1.msra.mxu0 0.0
        %579 = vmatprep.subr.mxu0 0.0
        %580 = vmatpush1.msra.mxu0 0.0
        %581 = vmatprep.subr.mxu0 0.0
        %582 = vmatpush1.msra.mxu0 0.0
        %583 = vmatprep.subr.mxu0 0.0
        %584 = vmatpush1.msra.mxu0 0.0
        %585 = vmatprep.subr.mxu0 0.0
        %586 = vmatpush1.msra.mxu0 0.0
        %587 = vmatprep.subr.mxu0 0.0
        %588 = vmatpush1.msra.mxu0 0.0
        %589 = vmatprep.subr.mxu0 0.0
        %590 = vmatpush1.msra.mxu0 0.0
        %591 = vmatprep.subr.mxu0 0.0
        %592 = vmatpush1.msra.mxu0 0.0
        %593 = vmatprep.subr.mxu0 0.0
        %594 = vmatpush1.msra.mxu0 0.0
        %595 = vmatprep.subr.mxu0 0.0
        %596 = vmatpush1.msra.mxu0 0.0
        %597 = vmatprep.subr.mxu0 0.0
        %598 = vmatpush1.msra.mxu0 0.0
        %599 = vmatprep.subr.mxu0 0.0
        %600 = vmatpush1.msra.mxu0 0.0
        %601 = vmatprep.subr.mxu0 0.0
        %602 = vmatpush1.msra.mxu0 0.0
        %603 = vmatprep.subr.mxu0 0.0
        %604 = vmatpush1.msra.mxu0 0.0
        %605 = vmatprep.subr.mxu0 0.0
        %606 = vmatpush1.msra.mxu0 0.0
        %607 = vmatprep.subr.mxu0 0.0
        %608 = vmatpush1.msra.mxu0 0.0
        %609 = vmatprep.subr.mxu0 0.0
        %610 = vmatpush1.msra.mxu0 0.0
        %611 = vmatprep.subr.mxu0 0.0
        %612 = vmatpush1.msra.mxu0 0.0
        %613 = vmatprep.subr.mxu0 0.0
        %614 = vmatpush1.msra.mxu0 0.0
        %615 = vmatprep.mubr.f32.mxu0 0.0
        %616 = vmatmul.mubr.f32.gmra.mrb[0].mxu0 %v470
        %v617 = vpop.f32.mrb[0].mxu0
        %v618 = vadd.f32 0.0, %v617
        %v619 = vpop.f32.mrb[0].mxu0
        %620 = vmatprep.mubr.f32.mxu0 0.0
        %621 = vmatmul.mubr.f32.gmra.mrb[0].mxu0 %v472
        %v622 = vpop.f32.mrb[0].mxu0
        %v623 = vadd.f32 0.0, %v622
        %v624 = vpop.f32.mrb[0].mxu0
        %625 = vdwg.mxu0
        %v626 = vsel %vm469, %v424, 0
        %v628 = vsel %vm469, %v425, 0
        %630 = vmatprep.subr.mxu0 %v427
        %631 = vmatpush1.msra.mxu0 %v426
        %632 = vmatprep.subr.mxu0 %v430
        %633 = vmatpush1.msra.mxu0 %v429
        %634 = vmatprep.subr.mxu0 %v433
        %635 = vmatpush1.msra.mxu0 %v432
        %636 = vmatprep.subr.mxu0 %v436
        %637 = vmatpush1.msra.mxu0 %v435
        %638 = vmatprep.subr.mxu0 %v439
        %639 = vmatpush1.msra.mxu0 %v438
        %640 = vmatprep.subr.mxu0 %v442
        %641 = vmatpush1.msra.mxu0 %v441
        %642 = vmatprep.subr.mxu0 0.0
        %643 = vmatpush1.msra.mxu0 0.0
        %644 = vmatprep.subr.mxu0 0.0
        %645 = vmatpush1.msra.mxu0 0.0
        %646 = vmatprep.subr.mxu0 0.0
        %647 = vmatpush1.msra.mxu0 0.0
        %648 = vmatprep.subr.mxu0 0.0
        %649 = vmatpush1.msra.mxu0 0.0
        %650 = vmatprep.subr.mxu0 0.0
        %651 = vmatpush1.msra.mxu0 0.0
        %652 = vmatprep.subr.mxu0 0.0
        %653 = vmatpush1.msra.mxu0 0.0
        %654 = vmatprep.subr.mxu0 0.0
        %655 = vmatpush1.msra.mxu0 0.0
        %656 = vmatprep.subr.mxu0 0.0
        %657 = vmatpush1.msra.mxu0 0.0
        %658 = vmatprep.subr.mxu0 0.0
        %659 = vmatpush1.msra.mxu0 0.0
        %660 = vmatprep.subr.mxu0 0.0
        %661 = vmatpush1.msra.mxu0 0.0
        %662 = vmatprep.subr.mxu0 0.0
        %663 = vmatpush1.msra.mxu0 0.0
        %664 = vmatprep.subr.mxu0 0.0
        %665 = vmatpush1.msra.mxu0 0.0
        %666 = vmatprep.subr.mxu0 0.0
        %667 = vmatpush1.msra.mxu0 0.0
        %668 = vmatprep.subr.mxu0 0.0
        %669 = vmatpush1.msra.mxu0 0.0
        %670 = vmatprep.subr.mxu0 0.0
        %671 = vmatpush1.msra.mxu0 0.0
        %672 = vmatprep.subr.mxu0 0.0
        %673 = vmatpush1.msra.mxu0 0.0
        %674 = vmatprep.subr.mxu0 0.0
        %675 = vmatpush1.msra.mxu0 0.0
        %676 = vmatprep.subr.mxu0 0.0
        %677 = vmatpush1.msra.mxu0 0.0
        %678 = vmatprep.subr.mxu0 0.0
        %679 = vmatpush1.msra.mxu0 0.0
        %680 = vmatprep.subr.mxu0 0.0
        %681 = vmatpush1.msra.mxu0 0.0
        %682 = vmatprep.subr.mxu0 0.0
        %683 = vmatpush1.msra.mxu0 0.0
        %684 = vmatprep.subr.mxu0 0.0
        %685 = vmatpush1.msra.mxu0 0.0
        %686 = vmatprep.subr.mxu0 0.0
        %687 = vmatpush1.msra.mxu0 0.0
        %688 = vmatprep.subr.mxu0 0.0
        %689 = vmatpush1.msra.mxu0 0.0
        %690 = vmatprep.subr.mxu0 0.0
        %691 = vmatpush1.msra.mxu0 0.0
        %692 = vmatprep.subr.mxu0 0.0
        %693 = vmatpush1.msra.mxu0 0.0
        %694 = vmatprep.mubr.f32.mxu0 0.0
        %695 = vmatmul.mubr.f32.gmra.mrb[0].mxu0 %v626
        %v696 = vpop.f32.mrb[0].mxu0
        %v697 = vadd.f32 %v541, %v696
        %v698 = vpop.f32.mrb[0].mxu0
        %v699 = vadd.f32 %v543, %v698
        %700 = vmatprep.mubr.f32.mxu0 0.0
        %701 = vmatmul.mubr.f32.gmra.mrb[0].mxu0 %v628
        %v702 = vpop.f32.mrb[0].mxu0
        %v703 = vadd.f32 %v547, %v702
        %v704 = vpop.f32.mrb[0].mxu0
        %v705 = vadd.f32 %v549, %v704
        %706 = vdwg.mxu0
        %707 = vmatprep.subr.mxu0 0.0
        %708 = vmatpush1.msra.mxu0 %v428
        %709 = vmatprep.subr.mxu0 0.0
        %710 = vmatpush1.msra.mxu0 %v431
        %711 = vmatprep.subr.mxu0 0.0
        %712 = vmatpush1.msra.mxu0 %v434
        %713 = vmatprep.subr.mxu0 0.0
        %714 = vmatpush1.msra.mxu0 %v437
        %715 = vmatprep.subr.mxu0 0.0
        %716 = vmatpush1.msra.mxu0 %v440
        %717 = vmatprep.subr.mxu0 0.0
        %718 = vmatpush1.msra.mxu0 %v443
        %719 = vmatprep.subr.mxu0 0.0
        %720 = vmatpush1.msra.mxu0 0.0
        %721 = vmatprep.subr.mxu0 0.0
        %722 = vmatpush1.msra.mxu0 0.0
        %723 = vmatprep.subr.mxu0 0.0
        %724 = vmatpush1.msra.mxu0 0.0
        %725 = vmatprep.subr.mxu0 0.0
        %726 = vmatpush1.msra.mxu0 0.0
        %727 = vmatprep.subr.mxu0 0.0
        %728 = vmatpush1.msra.mxu0 0.0
        %729 = vmatprep.subr.mxu0 0.0
        %730 = vmatpush1.msra.mxu0 0.0
        %731 = vmatprep.subr.mxu0 0.0
        %732 = vmatpush1.msra.mxu0 0.0
        %733 = vmatprep.subr.mxu0 0.0
        %734 = vmatpush1.msra.mxu0 0.0
        %735 = vmatprep.subr.mxu0 0.0
        %736 = vmatpush1.msra.mxu0 0.0
        %737 = vmatprep.subr.mxu0 0.0
        %738 = vmatpush1.msra.mxu0 0.0
        %739 = vmatprep.subr.mxu0 0.0
        %740 = vmatpush1.msra.mxu0 0.0
        %741 = vmatprep.subr.mxu0 0.0
        %742 = vmatpush1.msra.mxu0 0.0
        %743 = vmatprep.subr.mxu0 0.0
        %744 = vmatpush1.msra.mxu0 0.0
        %745 = vmatprep.subr.mxu0 0.0
        %746 = vmatpush1.msra.mxu0 0.0
        %747 = vmatprep.subr.mxu0 0.0
        %748 = vmatpush1.msra.mxu0 0.0
        %749 = vmatprep.subr.mxu0 0.0
        %750 = vmatpush1.msra.mxu0 0.0
        %751 = vmatprep.subr.mxu0 0.0
        %752 = vmatpush1.msra.mxu0 0.0
        %753 = vmatprep.subr.mxu0 0.0
        %754 = vmatpush1.msra.mxu0 0.0
        %755 = vmatprep.subr.mxu0 0.0
        %756 = vmatpush1.msra.mxu0 0.0
        %757 = vmatprep.subr.mxu0 0.0
        %758 = vmatpush1.msra.mxu0 0.0
        %759 = vmatprep.subr.mxu0 0.0
        %760 = vmatpush1.msra.mxu0 0.0
        %761 = vmatprep.subr.mxu0 0.0
        %762 = vmatpush1.msra.mxu0 0.0
        %763 = vmatprep.subr.mxu0 0.0
        %764 = vmatpush1.msra.mxu0 0.0
        %765 = vmatprep.subr.mxu0 0.0
        %766 = vmatpush1.msra.mxu0 0.0
        %767 = vmatprep.subr.mxu0 0.0
        %768 = vmatpush1.msra.mxu0 0.0
        %769 = vmatprep.subr.mxu0 0.0
        %770 = vmatpush1.msra.mxu0 0.0
        %771 = vmatprep.mubr.f32.mxu0 0.0
        %772 = vmatmul.mubr.f32.gmra.mrb[0].mxu0 %v626
        %v773 = vpop.f32.mrb[0].mxu0
        %v774 = vadd.f32 %v618, %v773
        %v775 = vpop.f32.mrb[0].mxu0
        %776 = vmatprep.mubr.f32.mxu0 0.0
        %777 = vmatmul.mubr.f32.gmra.mrb[0].mxu0 %v628
        %v778 = vpop.f32.mrb[0].mxu0
        %v779 = vadd.f32 %v623, %v778
        %v780 = vpop.f32.mrb[0].mxu0
        %781 = vdwg.mxu0
        %s782 = scalar_lea.vmem [#allocation4], 288
        %v783 = vld [vmem:[%s782] sm:$0xff]
        %v784 = vld [vmem:[%s782 + $0x8] sm:$0xff]
        %v785 = vld [vmem:[%s782 + $0x10] sm:$0xff]
        %v786 = vld [vmem:[%s782 + $0x18] sm:$0xff]
        %v787 = vld [vmem:[%s782 + $0x20] sm:$0xff]
        %v788 = vld [vmem:[%s782 + $0x28] sm:$0xff]
        %v789 = vld [vmem:[%s782 + $0x30] sm:$0xff]
        %v790 = vld [vmem:[%s782 + $0x38] sm:$0xff]
        %v791 = vld [vmem:[%s782 + $0x40] sm:$0xff]
        %v792 = vld [vmem:[%s782 + $0x48] sm:$0xff]
        %v793 = vld [vmem:[%s782 + $0x50] sm:$0xff]
        %v794 = vld [vmem:[%s782 + $0x58] sm:$0xff]
        %v795 = vld [vmem:[%s782 + $0x60] sm:$0xff]
        %v796 = vld [vmem:[%s782 + $0x68] sm:$0xff]
        %v797 = vld [vmem:[%s782 + $0x70] sm:$0xff]
        %v798 = vld [vmem:[%s782 + $0x78] sm:$0xff]
        %v799 = vld [vmem:[%s782 + $0x80] sm:$0xff]
        %v800 = vld [vmem:[%s782 + $0x88] sm:$0xff]
        %vm801 = vcmask 1045504
        %v802 = vrot.slane %v424, 2
        %v803 = vrot.slane %v425, 2
        %v804 = vsel %vm801, %v802, %v803
        %v805 = vsel %vm469, %v804, 0
        %v807 = vsel %vm469, %v803, 0
        %809 = vmatprep.subr.mxu0 %v784
        %810 = vmatpush1.msra.mxu0 %v783
        %811 = vmatprep.subr.mxu0 %v787
        %812 = vmatpush1.msra.mxu0 %v786
        %813 = vmatprep.subr.mxu0 %v790
        %814 = vmatpush1.msra.mxu0 %v789
        %815 = vmatprep.subr.mxu0 %v793
        %816 = vmatpush1.msra.mxu0 %v792
        %817 = vmatprep.subr.mxu0 %v796
        %818 = vmatpush1.msra.mxu0 %v795
        %819 = vmatprep.subr.mxu0 %v799
        %820 = vmatpush1.msra.mxu0 %v798
        %821 = vmatprep.subr.mxu0 0.0
        %822 = vmatpush1.msra.mxu0 0.0
        %823 = vmatprep.subr.mxu0 0.0
        %824 = vmatpush1.msra.mxu0 0.0
        %825 = vmatprep.subr.mxu0 0.0
        %826 = vmatpush1.msra.mxu0 0.0
        %827 = vmatprep.subr.mxu0 0.0
        %828 = vmatpush1.msra.mxu0 0.0
        %829 = vmatprep.subr.mxu0 0.0
        %830 = vmatpush1.msra.mxu0 0.0
        %831 = vmatprep.subr.mxu0 0.0
        %832 = vmatpush1.msra.mxu0 0.0
        %833 = vmatprep.subr.mxu0 0.0
        %834 = vmatpush1.msra.mxu0 0.0
        %835 = vmatprep.subr.mxu0 0.0
        %836 = vmatpush1.msra.mxu0 0.0
        %837 = vmatprep.subr.mxu0 0.0
        %838 = vmatpush1.msra.mxu0 0.0
        %839 = vmatprep.subr.mxu0 0.0
        %840 = vmatpush1.msra.mxu0 0.0
        %841 = vmatprep.subr.mxu0 0.0
        %842 = vmatpush1.msra.mxu0 0.0
        %843 = vmatprep.subr.mxu0 0.0
        %844 = vmatpush1.msra.mxu0 0.0
        %845 = vmatprep.subr.mxu0 0.0
        %846 = vmatpush1.msra.mxu0 0.0
        %847 = vmatprep.subr.mxu0 0.0
        %848 = vmatpush1.msra.mxu0 0.0
        %849 = vmatprep.subr.mxu0 0.0
        %850 = vmatpush1.msra.mxu0 0.0
        %851 = vmatprep.subr.mxu0 0.0
        %852 = vmatpush1.msra.mxu0 0.0
        %853 = vmatprep.subr.mxu0 0.0
        %854 = vmatpush1.msra.mxu0 0.0
        %855 = vmatprep.subr.mxu0 0.0
        %856 = vmatpush1.msra.mxu0 0.0
        %857 = vmatprep.subr.mxu0 0.0
        %858 = vmatpush1.msra.mxu0 0.0
        %859 = vmatprep.subr.mxu0 0.0
        %860 = vmatpush1.msra.mxu0 0.0
        %861 = vmatprep.subr.mxu0 0.0
        %862 = vmatpush1.msra.mxu0 0.0
        %863 = vmatprep.subr.mxu0 0.0
        %864 = vmatpush1.msra.mxu0 0.0
        %865 = vmatprep.subr.mxu0 0.0
        %866 = vmatpush1.msra.mxu0 0.0
        %867 = vmatprep.subr.mxu0 0.0
        %868 = vmatpush1.msra.mxu0 0.0
        %869 = vmatprep.subr.mxu0 0.0
        %870 = vmatpush1.msra.mxu0 0.0
        %871 = vmatprep.subr.mxu0 0.0
        %872 = vmatpush1.msra.mxu0 0.0
        %873 = vmatprep.mubr.f32.mxu0 0.0
        %874 = vmatmul.mubr.f32.gmra.mrb[0].mxu0 %v805
        %v875 = vpop.f32.mrb[0].mxu0
        %v876 = vadd.f32 0.0, %v875
        %v877 = vpop.f32.mrb[0].mxu0
        %v878 = vadd.f32 0.0, %v877
        %879 = vmatprep.mubr.f32.mxu0 0.0
        %880 = vmatmul.mubr.f32.gmra.mrb[0].mxu0 %v807
        %v881 = vpop.f32.mrb[0].mxu0
        %v882 = vadd.f32 0.0, %v881
        %v883 = vpop.f32.mrb[0].mxu0
        %v884 = vadd.f32 0.0, %v883
        %885 = vdwg.mxu0
        %886 = vmatprep.subr.mxu0 0.0
        %887 = vmatpush1.msra.mxu0 %v785
        %888 = vmatprep.subr.mxu0 0.0
        %889 = vmatpush1.msra.mxu0 %v788
        %890 = vmatprep.subr.mxu0 0.0
        %891 = vmatpush1.msra.mxu0 %v791
        %892 = vmatprep.subr.mxu0 0.0
        %893 = vmatpush1.msra.mxu0 %v794
        %894 = vmatprep.subr.mxu0 0.0
        %895 = vmatpush1.msra.mxu0 %v797
        %896 = vmatprep.subr.mxu0 0.0
        %897 = vmatpush1.msra.mxu0 %v800
        %898 = vmatprep.subr.mxu0 0.0
        %899 = vmatpush1.msra.mxu0 0.0
        %900 = vmatprep.subr.mxu0 0.0
        %901 = vmatpush1.msra.mxu0 0.0
        %902 = vmatprep.subr.mxu0 0.0
        %903 = vmatpush1.msra.mxu0 0.0
        %904 = vmatprep.subr.mxu0 0.0
        %905 = vmatpush1.msra.mxu0 0.0
        %906 = vmatprep.subr.mxu0 0.0
        %907 = vmatpush1.msra.mxu0 0.0
        %908 = vmatprep.subr.mxu0 0.0
        %909 = vmatpush1.msra.mxu0 0.0
        %910 = vmatprep.subr.mxu0 0.0
        %911 = vmatpush1.msra.mxu0 0.0
        %912 = vmatprep.subr.mxu0 0.0
        %913 = vmatpush1.msra.mxu0 0.0
        %914 = vmatprep.subr.mxu0 0.0
        %915 = vmatpush1.msra.mxu0 0.0
        %916 = vmatprep.subr.mxu0 0.0
        %917 = vmatpush1.msra.mxu0 0.0
        %918 = vmatprep.subr.mxu0 0.0
        %919 = vmatpush1.msra.mxu0 0.0
        %920 = vmatprep.subr.mxu0 0.0
        %921 = vmatpush1.msra.mxu0 0.0
        %922 = vmatprep.subr.mxu0 0.0
        %923 = vmatpush1.msra.mxu0 0.0
        %924 = vmatprep.subr.mxu0 0.0
        %925 = vmatpush1.msra.mxu0 0.0
        %926 = vmatprep.subr.mxu0 0.0
        %927 = vmatpush1.msra.mxu0 0.0
        %928 = vmatprep.subr.mxu0 0.0
        %929 = vmatpush1.msra.mxu0 0.0
        %930 = vmatprep.subr.mxu0 0.0
        %931 = vmatpush1.msra.mxu0 0.0
        %932 = vmatprep.subr.mxu0 0.0
        %933 = vmatpush1.msra.mxu0 0.0
        %934 = vmatprep.subr.mxu0 0.0
        %935 = vmatpush1.msra.mxu0 0.0
        %936 = vmatprep.subr.mxu0 0.0
        %937 = vmatpush1.msra.mxu0 0.0
        %938 = vmatprep.subr.mxu0 0.0
        %939 = vmatpush1.msra.mxu0 0.0
        %940 = vmatprep.subr.mxu0 0.0
        %941 = vmatpush1.msra.mxu0 0.0
        %942 = vmatprep.subr.mxu0 0.0
        %943 = vmatpush1.msra.mxu0 0.0
        %944 = vmatprep.subr.mxu0 0.0
        %945 = vmatpush1.msra.mxu0 0.0
        %946 = vmatprep.subr.mxu0 0.0
        %947 = vmatpush1.msra.mxu0 0.0
        %948 = vmatprep.subr.mxu0 0.0
        %949 = vmatpush1.msra.mxu0 0.0
        %950 = vmatprep.mubr.f32.mxu0 0.0
        %951 = vmatmul.mubr.f32.gmra.mrb[0].mxu0 %v805
        %v952 = vpop.f32.mrb[0].mxu0
        %v953 = vadd.f32 0.0, %v952
        %v954 = vpop.f32.mrb[0].mxu0
        %955 = vmatprep.mubr.f32.mxu0 0.0
        %956 = vmatmul.mubr.f32.gmra.mrb[0].mxu0 %v807
        %v957 = vpop.f32.mrb[0].mxu0
        %v958 = vadd.f32 0.0, %v957
        %v959 = vpop.f32.mrb[0].mxu0
        %960 = vdwg.mxu0
        %v961 = vadd.f32 %v697, %v876
        %v962 = vadd.f32 %v699, %v878
        %v963 = vadd.f32 %v774, %v953
        %v964 = vadd.f32 %v703, %v882
        %v965 = vadd.f32 %v705, %v884
        %v966 = vadd.f32 %v779, %v958
        %s967 = scalar_lea.vmem [#allocation4], 432
        %v968 = vld [vmem:[%s967] sm:$0xff]
        %v969 = vld [vmem:[%s967 + $0x8] sm:$0xff]
        %v970 = vld [vmem:[%s967 + $0x10] sm:$0xff]
        %v971 = vld [vmem:[%s967 + $0x18] sm:$0xff]
        %v972 = vld [vmem:[%s967 + $0x20] sm:$0xff]
        %v973 = vld [vmem:[%s967 + $0x28] sm:$0xff]
        %v974 = vld [vmem:[%s967 + $0x30] sm:$0xff]
        %v975 = vld [vmem:[%s967 + $0x38] sm:$0xff]
        %v976 = vld [vmem:[%s967 + $0x40] sm:$0xff]
        %v977 = vld [vmem:[%s967 + $0x48] sm:$0xff]
        %v978 = vld [vmem:[%s967 + $0x50] sm:$0xff]
        %v979 = vld [vmem:[%s967 + $0x58] sm:$0xff]
        %v980 = vld [vmem:[%s967 + $0x60] sm:$0xff]
        %v981 = vld [vmem:[%s967 + $0x68] sm:$0xff]
        %v982 = vld [vmem:[%s967 + $0x70] sm:$0xff]
        %v983 = vld [vmem:[%s967 + $0x78] sm:$0xff]
        %v984 = vld [vmem:[%s967 + $0x80] sm:$0xff]
        %v985 = vld [vmem:[%s967 + $0x88] sm:$0xff]
        %vm986 = vcmask 1044480
        %v987 = vrot.slane %v424, 3
        %v988 = vrot.slane %v425, 3
        %v989 = vsel %vm986, %v987, %v988
        %v990 = vsel %vm469, %v989, 0
        %v992 = vsel %vm469, %v988, 0
        %994 = vmatprep.subr.mxu0 %v969
        %995 = vmatpush1.msra.mxu0 %v968
        %996 = vmatprep.subr.mxu0 %v972
        %997 = vmatpush1.msra.mxu0 %v971
        %998 = vmatprep.subr.mxu0 %v975
        %999 = vmatpush1.msra.mxu0 %v974
        %1000 = vmatprep.subr.mxu0 %v978
        %1001 = vmatpush1.msra.mxu0 %v977
        %1002 = vmatprep.subr.mxu0 %v981
        %1003 = vmatpush1.msra.mxu0 %v980
        %1004 = vmatprep.subr.mxu0 %v984
        %1005 = vmatpush1.msra.mxu0 %v983
        %1006 = vmatprep.subr.mxu0 0.0
        %1007 = vmatpush1.msra.mxu0 0.0
        %1008 = vmatprep.subr.mxu0 0.0
        %1009 = vmatpush1.msra.mxu0 0.0
        %1010 = vmatprep.subr.mxu0 0.0
        %1011 = vmatpush1.msra.mxu0 0.0
        %1012 = vmatprep.subr.mxu0 0.0
        %1013 = vmatpush1.msra.mxu0 0.0
        %1014 = vmatprep.subr.mxu0 0.0
        %1015 = vmatpush1.msra.mxu0 0.0
        %1016 = vmatprep.subr.mxu0 0.0
        %1017 = vmatpush1.msra.mxu0 0.0
        %1018 = vmatprep.subr.mxu0 0.0
        %1019 = vmatpush1.msra.mxu0 0.0
        %1020 = vmatprep.subr.mxu0 0.0
        %1021 = vmatpush1.msra.mxu0 0.0
        %1022 = vmatprep.subr.mxu0 0.0
        %1023 = vmatpush1.msra.mxu0 0.0
        %1024 = vmatprep.subr.mxu0 0.0
        %1025 = vmatpush1.msra.mxu0 0.0
        %1026 = vmatprep.subr.mxu0 0.0
        %1027 = vmatpush1.msra.mxu0 0.0
        %1028 = vmatprep.subr.mxu0 0.0
        %1029 = vmatpush1.msra.mxu0 0.0
        %1030 = vmatprep.subr.mxu0 0.0
        %1031 = vmatpush1.msra.mxu0 0.0
        %1032 = vmatprep.subr.mxu0 0.0
        %1033 = vmatpush1.msra.mxu0 0.0
        %1034 = vmatprep.subr.mxu0 0.0
        %1035 = vmatpush1.msra.mxu0 0.0
        %1036 = vmatprep.subr.mxu0 0.0
        %1037 = vmatpush1.msra.mxu0 0.0
        %1038 = vmatprep.subr.mxu0 0.0
        %1039 = vmatpush1.msra.mxu0 0.0
        %1040 = vmatprep.subr.mxu0 0.0
        %1041 = vmatpush1.msra.mxu0 0.0
        %1042 = vmatprep.subr.mxu0 0.0
        %1043 = vmatpush1.msra.mxu0 0.0
        %1044 = vmatprep.subr.mxu0 0.0
        %1045 = vmatpush1.msra.mxu0 0.0
        %1046 = vmatprep.subr.mxu0 0.0
        %1047 = vmatpush1.msra.mxu0 0.0
        %1048 = vmatprep.subr.mxu0 0.0
        %1049 = vmatpush1.msra.mxu0 0.0
        %1050 = vmatprep.subr.mxu0 0.0
        %1051 = vmatpush1.msra.mxu0 0.0
        %1052 = vmatprep.subr.mxu0 0.0
        %1053 = vmatpush1.msra.mxu0 0.0
        %1054 = vmatprep.subr.mxu0 0.0
        %1055 = vmatpush1.msra.mxu0 0.0
        %1056 = vmatprep.subr.mxu0 0.0
        %1057 = vmatpush1.msra.mxu0 0.0
        %1058 = vmatprep.mubr.f32.mxu0 0.0
        %1059 = vmatmul.mubr.f32.gmra.mrb[0].mxu0 %v990
        %v1060 = vpop.f32.mrb[0].mxu0
        %v1061 = vadd.f32 0.0, %v1060
        %v1062 = vpop.f32.mrb[0].mxu0
        %v1063 = vadd.f32 0.0, %v1062
        %1064 = vmatprep.mubr.f32.mxu0 0.0
        %1065 = vmatmul.mubr.f32.gmra.mrb[0].mxu0 %v992
        %v1066 = vpop.f32.mrb[0].mxu0
        %v1067 = vadd.f32 0.0, %v1066
        %v1068 = vpop.f32.mrb[0].mxu0
        %v1069 = vadd.f32 0.0, %v1068
        %1070 = vdwg.mxu0
        %1071 = vmatprep.subr.mxu0 0.0
        %1072 = vmatpush1.msra.mxu0 %v970
        %1073 = vmatprep.subr.mxu0 0.0
        %1074 = vmatpush1.msra.mxu0 %v973
        %1075 = vmatprep.subr.mxu0 0.0
        %1076 = vmatpush1.msra.mxu0 %v976
        %1077 = vmatprep.subr.mxu0 0.0
        %1078 = vmatpush1.msra.mxu0 %v979
        %1079 = vmatprep.subr.mxu0 0.0
        %1080 = vmatpush1.msra.mxu0 %v982
        %1081 = vmatprep.subr.mxu0 0.0
        %1082 = vmatpush1.msra.mxu0 %v985
        %1083 = vmatprep.subr.mxu0 0.0
        %1084 = vmatpush1.msra.mxu0 0.0
        %1085 = vmatprep.subr.mxu0 0.0
        %1086 = vmatpush1.msra.mxu0 0.0
        %1087 = vmatprep.subr.mxu0 0.0
        %1088 = vmatpush1.msra.mxu0 0.0
        %1089 = vmatprep.subr.mxu0 0.0
        %1090 = vmatpush1.msra.mxu0 0.0
        %1091 = vmatprep.subr.mxu0 0.0
        %1092 = vmatpush1.msra.mxu0 0.0
        %1093 = vmatprep.subr.mxu0 0.0
        %1094 = vmatpush1.msra.mxu0 0.0
        %1095 = vmatprep.subr.mxu0 0.0
        %1096 = vmatpush1.msra.mxu0 0.0
        %1097 = vmatprep.subr.mxu0 0.0
        %1098 = vmatpush1.msra.mxu0 0.0
        %1099 = vmatprep.subr.mxu0 0.0
        %1100 = vmatpush1.msra.mxu0 0.0
        %1101 = vmatprep.subr.mxu0 0.0
        %1102 = vmatpush1.msra.mxu0 0.0
        %1103 = vmatprep.subr.mxu0 0.0
        %1104 = vmatpush1.msra.mxu0 0.0
        %1105 = vmatprep.subr.mxu0 0.0
        %1106 = vmatpush1.msra.mxu0 0.0
        %1107 = vmatprep.subr.mxu0 0.0
        %1108 = vmatpush1.msra.mxu0 0.0
        %1109 = vmatprep.subr.mxu0 0.0
        %1110 = vmatpush1.msra.mxu0 0.0
        %1111 = vmatprep.subr.mxu0 0.0
        %1112 = vmatpush1.msra.mxu0 0.0
        %1113 = vmatprep.subr.mxu0 0.0
        %1114 = vmatpush1.msra.mxu0 0.0
        %1115 = vmatprep.subr.mxu0 0.0
        %1116 = vmatpush1.msra.mxu0 0.0
        %1117 = vmatprep.subr.mxu0 0.0
        %1118 = vmatpush1.msra.mxu0 0.0
        %1119 = vmatprep.subr.mxu0 0.0
        %1120 = vmatpush1.msra.mxu0 0.0
        %1121 = vmatprep.subr.mxu0 0.0
        %1122 = vmatpush1.msra.mxu0 0.0
        %1123 = vmatprep.subr.mxu0 0.0
        %1124 = vmatpush1.msra.mxu0 0.0
        %1125 = vmatprep.subr.mxu0 0.0
        %1126 = vmatpush1.msra.mxu0 0.0
        %1127 = vmatprep.subr.mxu0 0.0
        %1128 = vmatpush1.msra.mxu0 0.0
        %1129 = vmatprep.subr.mxu0 0.0
        %1130 = vmatpush1.msra.mxu0 0.0
        %1131 = vmatprep.subr.mxu0 0.0
        %1132 = vmatpush1.msra.mxu0 0.0
        %1133 = vmatprep.subr.mxu0 0.0
        %1134 = vmatpush1.msra.mxu0 0.0
        %1135 = vmatprep.mubr.f32.mxu0 0.0
        %1136 = vmatmul.mubr.f32.gmra.mrb[0].mxu0 %v990
        %v1137 = vpop.f32.mrb[0].mxu0
        %v1138 = vadd.f32 0.0, %v1137
        %v1139 = vpop.f32.mrb[0].mxu0
        %1140 = vmatprep.mubr.f32.mxu0 0.0
        %1141 = vmatmul.mubr.f32.gmra.mrb[0].mxu0 %v992
        %v1142 = vpop.f32.mrb[0].mxu0
        %v1143 = vadd.f32 0.0, %v1142
        %v1144 = vpop.f32.mrb[0].mxu0
        %1145 = vdwg.mxu0
        %v1146 = vadd.f32 %v961, %v1061
        %v1147 = vadd.f32 %v962, %v1063
        %v1148 = vadd.f32 %v963, %v1138
        %v1149 = vadd.f32 %v964, %v1067
        %v1150 = vadd.f32 %v965, %v1069
        %v1151 = vadd.f32 %v966, %v1143
        %s1152 = scalar_lea.vmem [#allocation4], 576
        %v1153 = vld [vmem:[%s1152] sm:$0xff]
        %v1154 = vld [vmem:[%s1152 + $0x8] sm:$0xff]
        %v1155 = vld [vmem:[%s1152 + $0x10] sm:$0xff]
        %v1156 = vld [vmem:[%s1152 + $0x18] sm:$0xff]
        %v1157 = vld [vmem:[%s1152 + $0x20] sm:$0xff]
        %v1158 = vld [vmem:[%s1152 + $0x28] sm:$0xff]
        %v1159 = vld [vmem:[%s1152 + $0x30] sm:$0xff]
        %v1160 = vld [vmem:[%s1152 + $0x38] sm:$0xff]
        %v1161 = vld [vmem:[%s1152 + $0x40] sm:$0xff]
        %v1162 = vld [vmem:[%s1152 + $0x48] sm:$0xff]
        %v1163 = vld [vmem:[%s1152 + $0x50] sm:$0xff]
        %v1164 = vld [vmem:[%s1152 + $0x58] sm:$0xff]
        %v1165 = vld [vmem:[%s1152 + $0x60] sm:$0xff]
        %v1166 = vld [vmem:[%s1152 + $0x68] sm:$0xff]
        %v1167 = vld [vmem:[%s1152 + $0x70] sm:$0xff]
        %v1168 = vld [vmem:[%s1152 + $0x78] sm:$0xff]
        %v1169 = vld [vmem:[%s1152 + $0x80] sm:$0xff]
        %v1170 = vld [vmem:[%s1152 + $0x88] sm:$0xff]
        %vm1171 = vcmask 1043456
        %v1172 = vrot.slane %v424, 4
        %v1173 = vrot.slane %v425, 4
        %v1174 = vsel %vm1171, %v1172, %v1173
        %v1175 = vsel %vm469, %v1174, 0
        %v1177 = vsel %vm469, %v1173, 0
        %1179 = vmatprep.subr.mxu0 %v1154
        %1180 = vmatpush1.msra.mxu0 %v1153
        %1181 = vmatprep.subr.mxu0 %v1157
        %1182 = vmatpush1.msra.mxu0 %v1156
        %1183 = vmatprep.subr.mxu0 %v1160
        %1184 = vmatpush1.msra.mxu0 %v1159
        %1185 = vmatprep.subr.mxu0 %v1163
        %1186 = vmatpush1.msra.mxu0 %v1162
        %1187 = vmatprep.subr.mxu0 %v1166
        %1188 = vmatpush1.msra.mxu0 %v1165
        %1189 = vmatprep.subr.mxu0 %v1169
        %1190 = vmatpush1.msra.mxu0 %v1168
        %1191 = vmatprep.subr.mxu0 0.0
        %1192 = vmatpush1.msra.mxu0 0.0
        %1193 = vmatprep.subr.mxu0 0.0
        %1194 = vmatpush1.msra.mxu0 0.0
        %1195 = vmatprep.subr.mxu0 0.0
        %1196 = vmatpush1.msra.mxu0 0.0
        %1197 = vmatprep.subr.mxu0 0.0
        %1198 = vmatpush1.msra.mxu0 0.0
        %1199 = vmatprep.subr.mxu0 0.0
        %1200 = vmatpush1.msra.mxu0 0.0
        %1201 = vmatprep.subr.mxu0 0.0
        %1202 = vmatpush1.msra.mxu0 0.0
        %1203 = vmatprep.subr.mxu0 0.0
        %1204 = vmatpush1.msra.mxu0 0.0
        %1205 = vmatprep.subr.mxu0 0.0
        %1206 = vmatpush1.msra.mxu0 0.0
        %1207 = vmatprep.subr.mxu0 0.0
        %1208 = vmatpush1.msra.mxu0 0.0
        %1209 = vmatprep.subr.mxu0 0.0
        %1210 = vmatpush1.msra.mxu0 0.0
        %1211 = vmatprep.subr.mxu0 0.0
        %1212 = vmatpush1.msra.mxu0 0.0
        %1213 = vmatprep.subr.mxu0 0.0
        %1214 = vmatpush1.msra.mxu0 0.0
        %1215 = vmatprep.subr.mxu0 0.0
        %1216 = vmatpush1.msra.mxu0 0.0
        %1217 = vmatprep.subr.mxu0 0.0
        %1218 = vmatpush1.msra.mxu0 0.0
        %1219 = vmatprep.subr.mxu0 0.0
        %1220 = vmatpush1.msra.mxu0 0.0
        %1221 = vmatprep.subr.mxu0 0.0
        %1222 = vmatpush1.msra.mxu0 0.0
        %1223 = vmatprep.subr.mxu0 0.0
        %1224 = vmatpush1.msra.mxu0 0.0
        %1225 = vmatprep.subr.mxu0 0.0
        %1226 = vmatpush1.msra.mxu0 0.0
        %1227 = vmatprep.subr.mxu0 0.0
        %1228 = vmatpush1.msra.mxu0 0.0
        %1229 = vmatprep.subr.mxu0 0.0
        %1230 = vmatpush1.msra.mxu0 0.0
        %1231 = vmatprep.subr.mxu0 0.0
        %1232 = vmatpush1.msra.mxu0 0.0
        %1233 = vmatprep.subr.mxu0 0.0
        %1234 = vmatpush1.msra.mxu0 0.0
        %1235 = vmatprep.subr.mxu0 0.0
        %1236 = vmatpush1.msra.mxu0 0.0
        %1237 = vmatprep.subr.mxu0 0.0
        %1238 = vmatpush1.msra.mxu0 0.0
        %1239 = vmatprep.subr.mxu0 0.0
        %1240 = vmatpush1.msra.mxu0 0.0
        %1241 = vmatprep.subr.mxu0 0.0
        %1242 = vmatpush1.msra.mxu0 0.0
        %1243 = vmatprep.mubr.f32.mxu0 0.0
        %1244 = vmatmul.mubr.f32.gmra.mrb[0].mxu0 %v1175
        %v1245 = vpop.f32.mrb[0].mxu0
        %v1246 = vadd.f32 0.0, %v1245
        %v1247 = vpop.f32.mrb[0].mxu0
        %v1248 = vadd.f32 0.0, %v1247
        %1249 = vmatprep.mubr.f32.mxu0 0.0
        %1250 = vmatmul.mubr.f32.gmra.mrb[0].mxu0 %v1177
        %v1251 = vpop.f32.mrb[0].mxu0
        %v1252 = vadd.f32 0.0, %v1251
        %v1253 = vpop.f32.mrb[0].mxu0
        %v1254 = vadd.f32 0.0, %v1253
        %1255 = vdwg.mxu0
        %1256 = vmatprep.subr.mxu0 0.0
        %1257 = vmatpush1.msra.mxu0 %v1155
        %1258 = vmatprep.subr.mxu0 0.0
        %1259 = vmatpush1.msra.mxu0 %v1158
        %1260 = vmatprep.subr.mxu0 0.0
        %1261 = vmatpush1.msra.mxu0 %v1161
        %1262 = vmatprep.subr.mxu0 0.0
        %1263 = vmatpush1.msra.mxu0 %v1164
        %1264 = vmatprep.subr.mxu0 0.0
        %1265 = vmatpush1.msra.mxu0 %v1167
        %1266 = vmatprep.subr.mxu0 0.0
        %1267 = vmatpush1.msra.mxu0 %v1170
        %1268 = vmatprep.subr.mxu0 0.0
        %1269 = vmatpush1.msra.mxu0 0.0
        %1270 = vmatprep.subr.mxu0 0.0
        %1271 = vmatpush1.msra.mxu0 0.0
        %1272 = vmatprep.subr.mxu0 0.0
        %1273 = vmatpush1.msra.mxu0 0.0
        %1274 = vmatprep.subr.mxu0 0.0
        %1275 = vmatpush1.msra.mxu0 0.0
        %1276 = vmatprep.subr.mxu0 0.0
        %1277 = vmatpush1.msra.mxu0 0.0
        %1278 = vmatprep.subr.mxu0 0.0
        %1279 = vmatpush1.msra.mxu0 0.0
        %1280 = vmatprep.subr.mxu0 0.0
        %1281 = vmatpush1.msra.mxu0 0.0
        %1282 = vmatprep.subr.mxu0 0.0
        %1283 = vmatpush1.msra.mxu0 0.0
        %1284 = vmatprep.subr.mxu0 0.0
        %1285 = vmatpush1.msra.mxu0 0.0
        %1286 = vmatprep.subr.mxu0 0.0
        %1287 = vmatpush1.msra.mxu0 0.0
        %1288 = vmatprep.subr.mxu0 0.0
        %1289 = vmatpush1.msra.mxu0 0.0
        %1290 = vmatprep.subr.mxu0 0.0
        %1291 = vmatpush1.msra.mxu0 0.0
        %1292 = vmatprep.subr.mxu0 0.0
        %1293 = vmatpush1.msra.mxu0 0.0
        %1294 = vmatprep.subr.mxu0 0.0
        %1295 = vmatpush1.msra.mxu0 0.0
        %1296 = vmatprep.subr.mxu0 0.0
        %1297 = vmatpush1.msra.mxu0 0.0
        %1298 = vmatprep.subr.mxu0 0.0
        %1299 = vmatpush1.msra.mxu0 0.0
        %1300 = vmatprep.subr.mxu0 0.0
        %1301 = vmatpush1.msra.mxu0 0.0
        %1302 = vmatprep.subr.mxu0 0.0
        %1303 = vmatpush1.msra.mxu0 0.0
        %1304 = vmatprep.subr.mxu0 0.0
        %1305 = vmatpush1.msra.mxu0 0.0
        %1306 = vmatprep.subr.mxu0 0.0
        %1307 = vmatpush1.msra.mxu0 0.0
        %1308 = vmatprep.subr.mxu0 0.0
        %1309 = vmatpush1.msra.mxu0 0.0
        %1310 = vmatprep.subr.mxu0 0.0
        %1311 = vmatpush1.msra.mxu0 0.0
        %1312 = vmatprep.subr.mxu0 0.0
        %1313 = vmatpush1.msra.mxu0 0.0
        %1314 = vmatprep.subr.mxu0 0.0
        %1315 = vmatpush1.msra.mxu0 0.0
        %1316 = vmatprep.subr.mxu0 0.0
        %1317 = vmatpush1.msra.mxu0 0.0
        %1318 = vmatprep.subr.mxu0 0.0
        %1319 = vmatpush1.msra.mxu0 0.0
        %1320 = vmatprep.mubr.f32.mxu0 0.0
        %1321 = vmatmul.mubr.f32.gmra.mrb[0].mxu0 %v1175
        %v1322 = vpop.f32.mrb[0].mxu0
        %v1323 = vadd.f32 0.0, %v1322
        %v1324 = vpop.f32.mrb[0].mxu0
        %1325 = vmatprep.mubr.f32.mxu0 0.0
        %1326 = vmatmul.mubr.f32.gmra.mrb[0].mxu0 %v1177
        %v1327 = vpop.f32.mrb[0].mxu0
        %v1328 = vadd.f32 0.0, %v1327
        %v1329 = vpop.f32.mrb[0].mxu0
        %1330 = vdwg.mxu0
        %v1331 = vadd.f32 %v1146, %v1246
        %v1332 = vadd.f32 %v1147, %v1248
        %v1333 = vadd.f32 %v1148, %v1323
        %v1334 = vadd.f32 %v1149, %v1252
        %v1335 = vadd.f32 %v1150, %v1254
        %v1336 = vadd.f32 %v1151, %v1328
        %s1337 = scalar_lea.vmem [#allocation4], 720
        %v1338 = vld [vmem:[%s1337] sm:$0xff]
        %v1339 = vld [vmem:[%s1337 + $0x8] sm:$0xff]
        %v1340 = vld [vmem:[%s1337 + $0x10] sm:$0xff]
        %v1341 = vld [vmem:[%s1337 + $0x18] sm:$0xff]
        %v1342 = vld [vmem:[%s1337 + $0x20] sm:$0xff]
        %v1343 = vld [vmem:[%s1337 + $0x28] sm:$0xff]
        %v1344 = vld [vmem:[%s1337 + $0x30] sm:$0xff]
        %v1345 = vld [vmem:[%s1337 + $0x38] sm:$0xff]
        %v1346 = vld [vmem:[%s1337 + $0x40] sm:$0xff]
        %v1347 = vld [vmem:[%s1337 + $0x48] sm:$0xff]
        %v1348 = vld [vmem:[%s1337 + $0x50] sm:$0xff]
        %v1349 = vld [vmem:[%s1337 + $0x58] sm:$0xff]
        %v1350 = vld [vmem:[%s1337 + $0x60] sm:$0xff]
        %v1351 = vld [vmem:[%s1337 + $0x68] sm:$0xff]
        %v1352 = vld [vmem:[%s1337 + $0x70] sm:$0xff]
        %v1353 = vld [vmem:[%s1337 + $0x78] sm:$0xff]
        %v1354 = vld [vmem:[%s1337 + $0x80] sm:$0xff]
        %v1355 = vld [vmem:[%s1337 + $0x88] sm:$0xff]
        %vm1356 = vcmask 1042432
        %v1357 = vrot.slane %v424, 5
        %v1358 = vrot.slane %v425, 5
        %v1359 = vsel %vm1356, %v1357, %v1358
        %v1360 = vsel %vm469, %v1359, 0
        %v1362 = vsel %vm469, %v1358, 0
        %1364 = vmatprep.subr.mxu0 %v1339
        %1365 = vmatpush1.msra.mxu0 %v1338
        %1366 = vmatprep.subr.mxu0 %v1342
        %1367 = vmatpush1.msra.mxu0 %v1341
        %1368 = vmatprep.subr.mxu0 %v1345
        %1369 = vmatpush1.msra.mxu0 %v1344
        %1370 = vmatprep.subr.mxu0 %v1348
        %1371 = vmatpush1.msra.mxu0 %v1347
        %1372 = vmatprep.subr.mxu0 %v1351
        %1373 = vmatpush1.msra.mxu0 %v1350
        %1374 = vmatprep.subr.mxu0 %v1354
        %1375 = vmatpush1.msra.mxu0 %v1353
        %1376 = vmatprep.subr.mxu0 0.0
        %1377 = vmatpush1.msra.mxu0 0.0
        %1378 = vmatprep.subr.mxu0 0.0
        %1379 = vmatpush1.msra.mxu0 0.0
        %1380 = vmatprep.subr.mxu0 0.0
        %1381 = vmatpush1.msra.mxu0 0.0
        %1382 = vmatprep.subr.mxu0 0.0
        %1383 = vmatpush1.msra.mxu0 0.0
        %1384 = vmatprep.subr.mxu0 0.0
        %1385 = vmatpush1.msra.mxu0 0.0
        %1386 = vmatprep.subr.mxu0 0.0
        %1387 = vmatpush1.msra.mxu0 0.0
        %1388 = vmatprep.subr.mxu0 0.0
        %1389 = vmatpush1.msra.mxu0 0.0
        %1390 = vmatprep.subr.mxu0 0.0
        %1391 = vmatpush1.msra.mxu0 0.0
        %1392 = vmatprep.subr.mxu0 0.0
        %1393 = vmatpush1.msra.mxu0 0.0
        %1394 = vmatprep.subr.mxu0 0.0
        %1395 = vmatpush1.msra.mxu0 0.0
        %1396 = vmatprep.subr.mxu0 0.0
        %1397 = vmatpush1.msra.mxu0 0.0
        %1398 = vmatprep.subr.mxu0 0.0
        %1399 = vmatpush1.msra.mxu0 0.0
        %1400 = vmatprep.subr.mxu0 0.0
        %1401 = vmatpush1.msra.mxu0 0.0
        %1402 = vmatprep.subr.mxu0 0.0
        %1403 = vmatpush1.msra.mxu0 0.0
        %1404 = vmatprep.subr.mxu0 0.0
        %1405 = vmatpush1.msra.mxu0 0.0
        %1406 = vmatprep.subr.mxu0 0.0
        %1407 = vmatpush1.msra.mxu0 0.0
        %1408 = vmatprep.subr.mxu0 0.0
        %1409 = vmatpush1.msra.mxu0 0.0
        %1410 = vmatprep.subr.mxu0 0.0
        %1411 = vmatpush1.msra.mxu0 0.0
        %1412 = vmatprep.subr.mxu0 0.0
        %1413 = vmatpush1.msra.mxu0 0.0
        %1414 = vmatprep.subr.mxu0 0.0
        %1415 = vmatpush1.msra.mxu0 0.0
        %1416 = vmatprep.subr.mxu0 0.0
        %1417 = vmatpush1.msra.mxu0 0.0
        %1418 = vmatprep.subr.mxu0 0.0
        %1419 = vmatpush1.msra.mxu0 0.0
        %1420 = vmatprep.subr.mxu0 0.0
        %1421 = vmatpush1.msra.mxu0 0.0
        %1422 = vmatprep.subr.mxu0 0.0
        %1423 = vmatpush1.msra.mxu0 0.0
        %1424 = vmatprep.subr.mxu0 0.0
        %1425 = vmatpush1.msra.mxu0 0.0
        %1426 = vmatprep.subr.mxu0 0.0
        %1427 = vmatpush1.msra.mxu0 0.0
        %1428 = vmatprep.mubr.f32.mxu0 0.0
        %1429 = vmatmul.mubr.f32.gmra.mrb[0].mxu0 %v1360
        %v1430 = vpop.f32.mrb[0].mxu0
        %v1431 = vadd.f32 0.0, %v1430
        %v1432 = vpop.f32.mrb[0].mxu0
        %v1433 = vadd.f32 0.0, %v1432
        %1434 = vmatprep.mubr.f32.mxu0 0.0
        %1435 = vmatmul.mubr.f32.gmra.mrb[0].mxu0 %v1362
        %v1436 = vpop.f32.mrb[0].mxu0
        %v1437 = vadd.f32 0.0, %v1436
        %v1438 = vpop.f32.mrb[0].mxu0
        %v1439 = vadd.f32 0.0, %v1438
        %1440 = vdwg.mxu0
        %1441 = vmatprep.subr.mxu0 0.0
        %1442 = vmatpush1.msra.mxu0 %v1340
        %1443 = vmatprep.subr.mxu0 0.0
        %1444 = vmatpush1.msra.mxu0 %v1343
        %1445 = vmatprep.subr.mxu0 0.0
        %1446 = vmatpush1.msra.mxu0 %v1346
        %1447 = vmatprep.subr.mxu0 0.0
        %1448 = vmatpush1.msra.mxu0 %v1349
        %1449 = vmatprep.subr.mxu0 0.0
        %1450 = vmatpush1.msra.mxu0 %v1352
        %1451 = vmatprep.subr.mxu0 0.0
        %1452 = vmatpush1.msra.mxu0 %v1355
        %1453 = vmatprep.subr.mxu0 0.0
        %1454 = vmatpush1.msra.mxu0 0.0
        %1455 = vmatprep.subr.mxu0 0.0
        %1456 = vmatpush1.msra.mxu0 0.0
        %1457 = vmatprep.subr.mxu0 0.0
        %1458 = vmatpush1.msra.mxu0 0.0
        %1459 = vmatprep.subr.mxu0 0.0
        %1460 = vmatpush1.msra.mxu0 0.0
        %1461 = vmatprep.subr.mxu0 0.0
        %1462 = vmatpush1.msra.mxu0 0.0
        %1463 = vmatprep.subr.mxu0 0.0
        %1464 = vmatpush1.msra.mxu0 0.0
        %1465 = vmatprep.subr.mxu0 0.0
        %1466 = vmatpush1.msra.mxu0 0.0
        %1467 = vmatprep.subr.mxu0 0.0
        %1468 = vmatpush1.msra.mxu0 0.0
        %1469 = vmatprep.subr.mxu0 0.0
        %1470 = vmatpush1.msra.mxu0 0.0
        %1471 = vmatprep.subr.mxu0 0.0
        %1472 = vmatpush1.msra.mxu0 0.0
        %1473 = vmatprep.subr.mxu0 0.0
        %1474 = vmatpush1.msra.mxu0 0.0
        %1475 = vmatprep.subr.mxu0 0.0
        %1476 = vmatpush1.msra.mxu0 0.0
        %1477 = vmatprep.subr.mxu0 0.0
        %1478 = vmatpush1.msra.mxu0 0.0
        %1479 = vmatprep.subr.mxu0 0.0
        %1480 = vmatpush1.msra.mxu0 0.0
        %1481 = vmatprep.subr.mxu0 0.0
        %1482 = vmatpush1.msra.mxu0 0.0
        %1483 = vmatprep.subr.mxu0 0.0
        %1484 = vmatpush1.msra.mxu0 0.0
        %1485 = vmatprep.subr.mxu0 0.0
        %1486 = vmatpush1.msra.mxu0 0.0
        %1487 = vmatprep.subr.mxu0 0.0
        %1488 = vmatpush1.msra.mxu0 0.0
        %1489 = vmatprep.subr.mxu0 0.0
        %1490 = vmatpush1.msra.mxu0 0.0
        %1491 = vmatprep.subr.mxu0 0.0
        %1492 = vmatpush1.msra.mxu0 0.0
        %1493 = vmatprep.subr.mxu0 0.0
        %1494 = vmatpush1.msra.mxu0 0.0
        %1495 = vmatprep.subr.mxu0 0.0
        %1496 = vmatpush1.msra.mxu0 0.0
        %1497 = vmatprep.subr.mxu0 0.0
        %1498 = vmatpush1.msra.mxu0 0.0
        %1499 = vmatprep.subr.mxu0 0.0
        %1500 = vmatpush1.msra.mxu0 0.0
        %1501 = vmatprep.subr.mxu0 0.0
        %1502 = vmatpush1.msra.mxu0 0.0
        %1503 = vmatprep.subr.mxu0 0.0
        %1504 = vmatpush1.msra.mxu0 0.0
        %1505 = vmatprep.mubr.f32.mxu0 0.0
        %1506 = vmatmul.mubr.f32.gmra.mrb[0].mxu0 %v1360
        %v1507 = vpop.f32.mrb[0].mxu0
        %v1508 = vadd.f32 0.0, %v1507
        %v1509 = vpop.f32.mrb[0].mxu0
        %1510 = vmatprep.mubr.f32.mxu0 0.0
        %1511 = vmatmul.mubr.f32.gmra.mrb[0].mxu0 %v1362
        %v1512 = vpop.f32.mrb[0].mxu0
        %v1513 = vadd.f32 0.0, %v1512
        %v1514 = vpop.f32.mrb[0].mxu0
        %1515 = vdwg.mxu0
        %v1516 = vadd.f32 %v1331, %v1431
        %v1517 = vadd.f32 %v1332, %v1433
        %v1518 = vadd.f32 %v1333, %v1508
        %v1519 = vadd.f32 %v1334, %v1437
        %v1520 = vadd.f32 %v1335, %v1439
        %v1521 = vadd.f32 %v1336, %v1513
        %s1522 = scalar_lea.vmem [#allocation4], 864
        %v1523 = vld [vmem:[%s1522] sm:$0xff]
        %v1524 = vld [vmem:[%s1522 + $0x8] sm:$0xff]
        %v1525 = vld [vmem:[%s1522 + $0x10] sm:$0xff]
        %v1526 = vld [vmem:[%s1522 + $0x18] sm:$0xff]
        %v1527 = vld [vmem:[%s1522 + $0x20] sm:$0xff]
        %v1528 = vld [vmem:[%s1522 + $0x28] sm:$0xff]
        %v1529 = vld [vmem:[%s1522 + $0x30] sm:$0xff]
        %v1530 = vld [vmem:[%s1522 + $0x38] sm:$0xff]
        %v1531 = vld [vmem:[%s1522 + $0x40] sm:$0xff]
        %v1532 = vld [vmem:[%s1522 + $0x48] sm:$0xff]
        %v1533 = vld [vmem:[%s1522 + $0x50] sm:$0xff]
        %v1534 = vld [vmem:[%s1522 + $0x58] sm:$0xff]
        %v1535 = vld [vmem:[%s1522 + $0x60] sm:$0xff]
        %v1536 = vld [vmem:[%s1522 + $0x68] sm:$0xff]
        %v1537 = vld [vmem:[%s1522 + $0x70] sm:$0xff]
        %v1538 = vld [vmem:[%s1522 + $0x78] sm:$0xff]
        %v1539 = vld [vmem:[%s1522 + $0x80] sm:$0xff]
        %v1540 = vld [vmem:[%s1522 + $0x88] sm:$0xff]
        %vm1541 = vcmask 1041408
        %v1542 = vrot.slane %v424, 6
        %v1543 = vrot.slane %v425, 6
        %v1544 = vsel %vm1541, %v1542, %v1543
        %v1545 = vsel %vm469, %v1544, 0
        %v1547 = vsel %vm469, %v1543, 0
        %1549 = vmatprep.subr.mxu0 %v1524
        %1550 = vmatpush1.msra.mxu0 %v1523
        %1551 = vmatprep.subr.mxu0 %v1527
        %1552 = vmatpush1.msra.mxu0 %v1526
        %1553 = vmatprep.subr.mxu0 %v1530
        %1554 = vmatpush1.msra.mxu0 %v1529
        %1555 = vmatprep.subr.mxu0 %v1533
        %1556 = vmatpush1.msra.mxu0 %v1532
        %1557 = vmatprep.subr.mxu0 %v1536
        %1558 = vmatpush1.msra.mxu0 %v1535
        %1559 = vmatprep.subr.mxu0 %v1539
        %1560 = vmatpush1.msra.mxu0 %v1538
        %1561 = vmatprep.subr.mxu0 0.0
        %1562 = vmatpush1.msra.mxu0 0.0
        %1563 = vmatprep.subr.mxu0 0.0
        %1564 = vmatpush1.msra.mxu0 0.0
        %1565 = vmatprep.subr.mxu0 0.0
        %1566 = vmatpush1.msra.mxu0 0.0
        %1567 = vmatprep.subr.mxu0 0.0
        %1568 = vmatpush1.msra.mxu0 0.0
        %1569 = vmatprep.subr.mxu0 0.0
        %1570 = vmatpush1.msra.mxu0 0.0
        %1571 = vmatprep.subr.mxu0 0.0
        %1572 = vmatpush1.msra.mxu0 0.0
        %1573 = vmatprep.subr.mxu0 0.0
        %1574 = vmatpush1.msra.mxu0 0.0
        %1575 = vmatprep.subr.mxu0 0.0
        %1576 = vmatpush1.msra.mxu0 0.0
        %1577 = vmatprep.subr.mxu0 0.0
        %1578 = vmatpush1.msra.mxu0 0.0
        %1579 = vmatprep.subr.mxu0 0.0
        %1580 = vmatpush1.msra.mxu0 0.0
        %1581 = vmatprep.subr.mxu0 0.0
        %1582 = vmatpush1.msra.mxu0 0.0
        %1583 = vmatprep.subr.mxu0 0.0
        %1584 = vmatpush1.msra.mxu0 0.0
        %1585 = vmatprep.subr.mxu0 0.0
        %1586 = vmatpush1.msra.mxu0 0.0
        %1587 = vmatprep.subr.mxu0 0.0
        %1588 = vmatpush1.msra.mxu0 0.0
        %1589 = vmatprep.subr.mxu0 0.0
        %1590 = vmatpush1.msra.mxu0 0.0
        %1591 = vmatprep.subr.mxu0 0.0
        %1592 = vmatpush1.msra.mxu0 0.0
        %1593 = vmatprep.subr.mxu0 0.0
        %1594 = vmatpush1.msra.mxu0 0.0
        %1595 = vmatprep.subr.mxu0 0.0
        %1596 = vmatpush1.msra.mxu0 0.0
        %1597 = vmatprep.subr.mxu0 0.0
        %1598 = vmatpush1.msra.mxu0 0.0
        %1599 = vmatprep.subr.mxu0 0.0
        %1600 = vmatpush1.msra.mxu0 0.0
        %1601 = vmatprep.subr.mxu0 0.0
        %1602 = vmatpush1.msra.mxu0 0.0
        %1603 = vmatprep.subr.mxu0 0.0
        %1604 = vmatpush1.msra.mxu0 0.0
        %1605 = vmatprep.subr.mxu0 0.0
        %1606 = vmatpush1.msra.mxu0 0.0
        %1607 = vmatprep.subr.mxu0 0.0
        %1608 = vmatpush1.msra.mxu0 0.0
        %1609 = vmatprep.subr.mxu0 0.0
        %1610 = vmatpush1.msra.mxu0 0.0
        %1611 = vmatprep.subr.mxu0 0.0
        %1612 = vmatpush1.msra.mxu0 0.0
        %1613 = vmatprep.mubr.f32.mxu0 0.0
        %1614 = vmatmul.mubr.f32.gmra.mrb[0].mxu0 %v1545
        %v1615 = vpop.f32.mrb[0].mxu0
        %v1616 = vadd.f32 0.0, %v1615
        %v1617 = vpop.f32.mrb[0].mxu0
        %v1618 = vadd.f32 0.0, %v1617
        %1619 = vmatprep.mubr.f32.mxu0 0.0
        %1620 = vmatmul.mubr.f32.gmra.mrb[0].mxu0 %v1547
        %v1621 = vpop.f32.mrb[0].mxu0
        %v1622 = vadd.f32 0.0, %v1621
        %v1623 = vpop.f32.mrb[0].mxu0
        %v1624 = vadd.f32 0.0, %v1623
        %1625 = vdwg.mxu0
        %1626 = vmatprep.subr.mxu0 0.0
        %1627 = vmatpush1.msra.mxu0 %v1525
        %1628 = vmatprep.subr.mxu0 0.0
        %1629 = vmatpush1.msra.mxu0 %v1528
        %1630 = vmatprep.subr.mxu0 0.0
        %1631 = vmatpush1.msra.mxu0 %v1531
        %1632 = vmatprep.subr.mxu0 0.0
        %1633 = vmatpush1.msra.mxu0 %v1534
        %1634 = vmatprep.subr.mxu0 0.0
        %1635 = vmatpush1.msra.mxu0 %v1537
        %1636 = vmatprep.subr.mxu0 0.0
        %1637 = vmatpush1.msra.mxu0 %v1540
        %1638 = vmatprep.subr.mxu0 0.0
        %1639 = vmatpush1.msra.mxu0 0.0
        %1640 = vmatprep.subr.mxu0 0.0
        %1641 = vmatpush1.msra.mxu0 0.0
        %1642 = vmatprep.subr.mxu0 0.0
        %1643 = vmatpush1.msra.mxu0 0.0
        %1644 = vmatprep.subr.mxu0 0.0
        %1645 = vmatpush1.msra.mxu0 0.0
        %1646 = vmatprep.subr.mxu0 0.0
        %1647 = vmatpush1.msra.mxu0 0.0
        %1648 = vmatprep.subr.mxu0 0.0
        %1649 = vmatpush1.msra.mxu0 0.0
        %1650 = vmatprep.subr.mxu0 0.0
        %1651 = vmatpush1.msra.mxu0 0.0
        %1652 = vmatprep.subr.mxu0 0.0
        %1653 = vmatpush1.msra.mxu0 0.0
        %1654 = vmatprep.subr.mxu0 0.0
        %1655 = vmatpush1.msra.mxu0 0.0
        %1656 = vmatprep.subr.mxu0 0.0
        %1657 = vmatpush1.msra.mxu0 0.0
        %1658 = vmatprep.subr.mxu0 0.0
        %1659 = vmatpush1.msra.mxu0 0.0
        %1660 = vmatprep.subr.mxu0 0.0
        %1661 = vmatpush1.msra.mxu0 0.0
        %1662 = vmatprep.subr.mxu0 0.0
        %1663 = vmatpush1.msra.mxu0 0.0
        %1664 = vmatprep.subr.mxu0 0.0
        %1665 = vmatpush1.msra.mxu0 0.0
        %1666 = vmatprep.subr.mxu0 0.0
        %1667 = vmatpush1.msra.mxu0 0.0
        %1668 = vmatprep.subr.mxu0 0.0
        %1669 = vmatpush1.msra.mxu0 0.0
        %1670 = vmatprep.subr.mxu0 0.0
        %1671 = vmatpush1.msra.mxu0 0.0
        %1672 = vmatprep.subr.mxu0 0.0
        %1673 = vmatpush1.msra.mxu0 0.0
        %1674 = vmatprep.subr.mxu0 0.0
        %1675 = vmatpush1.msra.mxu0 0.0
        %1676 = vmatprep.subr.mxu0 0.0
        %1677 = vmatpush1.msra.mxu0 0.0
        %1678 = vmatprep.subr.mxu0 0.0
        %1679 = vmatpush1.msra.mxu0 0.0
        %1680 = vmatprep.subr.mxu0 0.0
        %1681 = vmatpush1.msra.mxu0 0.0
        %1682 = vmatprep.subr.mxu0 0.0
        %1683 = vmatpush1.msra.mxu0 0.0
        %1684 = vmatprep.subr.mxu0 0.0
        %1685 = vmatpush1.msra.mxu0 0.0
        %1686 = vmatprep.subr.mxu0 0.0
        %1687 = vmatpush1.msra.mxu0 0.0
        %1688 = vmatprep.subr.mxu0 0.0
        %1689 = vmatpush1.msra.mxu0 0.0
        %1690 = vmatprep.mubr.f32.mxu0 0.0
        %1691 = vmatmul.mubr.f32.gmra.mrb[0].mxu0 %v1545
        %v1692 = vpop.f32.mrb[0].mxu0
        %v1693 = vadd.f32 0.0, %v1692
        %v1694 = vpop.f32.mrb[0].mxu0
        %1695 = vmatprep.mubr.f32.mxu0 0.0
        %1696 = vmatmul.mubr.f32.gmra.mrb[0].mxu0 %v1547
        %v1697 = vpop.f32.mrb[0].mxu0
        %v1698 = vadd.f32 0.0, %v1697
        %v1699 = vpop.f32.mrb[0].mxu0
        %1700 = vdwg.mxu0
        %v1701 = vadd.f32 %v1516, %v1616
        %v1702 = vadd.f32 %v1517, %v1618
        %v1703 = vadd.f32 %v1518, %v1693
        %v1704 = vadd.f32 %v1519, %v1622
        %v1705 = vadd.f32 %v1520, %v1624
        %v1706 = vadd.f32 %v1521, %v1698
        %v1707 = vld [vmem:[#allocation7] sm:$0x7]
        %v1709 = vlaneseq
        %v1710 = vshrl.u32 %v1709, 7
        %v1711 = vsub.s32 0, %v1710
        %v1712 = vrot.slane %v1707, %v1711
        %v1713 = vlaneseq
        %v1714 = vshrl.u32 %v1713, 7
        %v1715 = vsub.s32 1, %v1714
        %v1716 = vrot.slane %v1707, %v1715
        %v1717 = vlaneseq
        %v1718 = vshrl.u32 %v1717, 7
        %v1719 = vsub.s32 2, %v1718
        %v1720 = vrot.slane %v1707, %v1719
        %v1724 = vadd.f32 %v1701, %v1712
        %v1725 = vadd.f32 %v1702, %v1716
        %v1726 = vadd.f32 %v1703, %v1720
        %v1727 = vadd.f32 %v1704, %v1712
        %v1728 = vadd.f32 %v1705, %v1716
        %v1729 = vadd.f32 %v1706, %v1720
        %v1730 = vmax.f32 %v1724, 0.0
        %v1731 = vmax.f32 %v1725, 0.0
        %v1732 = vmax.f32 %v1726, 0.0
        %v1733 = vmax.f32 %v1727, 0.0
        %v1734 = vmax.f32 %v1728, 0.0
        %v1735 = vmax.f32 %v1729, 0.0
        %v1736 = vld [vmem:[#allocation9] sm:$0xff]
        %v1737 = vld [vmem:[#allocation9 + $0x8] sm:$0xff]
        %v1738 = vld [vmem:[#allocation9 + $0x10] sm:$0xff]
        %v1739 = vld [vmem:[#allocation9 + $0x18] sm:$0xff]
        %v1740 = vld [vmem:[#allocation9 + $0x20] sm:$0xff]
        %v1741 = vld [vmem:[#allocation9 + $0x28] sm:$0xff]
        %v1742 = vld [vmem:[#allocation9 + $0x30] sm:$0xff]
        %v1743 = vld [vmem:[#allocation9 + $0x38] sm:$0xff]
        %v1744 = vld [vmem:[#allocation9 + $0x40] sm:$0xff]
        %v1745 = vld [vmem:[#allocation9 + $0x48] sm:$0xff]
        %v1746 = vld [vmem:[#allocation9 + $0x50] sm:$0xff]
        %v1747 = vld [vmem:[#allocation9 + $0x58] sm:$0xff]
        %v1748 = vld [vmem:[#allocation9 + $0x60] sm:$0xff]
        %v1749 = vld [vmem:[#allocation9 + $0x68] sm:$0xff]
        %v1750 = vld [vmem:[#allocation9 + $0x70] sm:$0xff]
        %v1751 = vld [vmem:[#allocation9 + $0x78] sm:$0xff]
        %v1752 = vld [vmem:[#allocation9 + $0x80] sm:$0xff]
        %v1753 = vld [vmem:[#allocation9 + $0x88] sm:$0xff]
        %v1754 = vld [vmem:[#allocation9 + $0x90] sm:$0xff]
        %v1755 = vld [vmem:[#allocation9 + $0x98] sm:$0xff]
        %v1756 = vld [vmem:[#allocation9 + $0xa0] sm:$0xff]
        %v1757 = vld [vmem:[#allocation9 + $0xa8] sm:$0xff]
        %v1758 = vld [vmem:[#allocation9 + $0xb0] sm:$0xff]
        %v1759 = vld [vmem:[#allocation9 + $0xb8] sm:$0xff]
        %v1760 = vld [vmem:[#allocation9 + $0xc0] sm:$0xff]
        %v1761 = vld [vmem:[#allocation9 + $0xc8] sm:$0xff]
        %v1762 = vld [vmem:[#allocation9 + $0xd0] sm:$0xff]
        %v1763 = vld [vmem:[#allocation9 + $0xd8] sm:$0xff]
        %v1764 = vld [vmem:[#allocation9 + $0xe0] sm:$0xff]
        %v1765 = vld [vmem:[#allocation9 + $0xe8] sm:$0xff]
        %v1766 = vld [vmem:[#allocation9 + $0xf0] sm:$0xff]
        %v1767 = vld [vmem:[#allocation9 + $0xf8] sm:$0xff]
        %v1768 = vld [vmem:[#allocation9 + $0x100] sm:$0xff]
        %v1769 = vld [vmem:[#allocation9 + $0x108] sm:$0xff]
        %v1770 = vld [vmem:[#allocation9 + $0x110] sm:$0xff]
        %v1771 = vld [vmem:[#allocation9 + $0x118] sm:$0xff]
        %v1772 = vld [vmem:[#allocation9 + $0x120] sm:$0xff]
        %v1773 = vld [vmem:[#allocation9 + $0x128] sm:$0xff]
        %v1774 = vld [vmem:[#allocation9 + $0x130] sm:$0xff]
        %v1775 = vld [vmem:[#allocation9 + $0x138] sm:$0xff]
        %v1776 = vld [vmem:[#allocation9 + $0x140] sm:$0xff]
        %v1777 = vld [vmem:[#allocation9 + $0x148] sm:$0xff]
        %v1778 = vld [vmem:[#allocation9 + $0x150] sm:$0xff]
        %v1779 = vld [vmem:[#allocation9 + $0x158] sm:$0xff]
        %v1780 = vld [vmem:[#allocation9 + $0x160] sm:$0xff]
        %v1781 = vld [vmem:[#allocation9 + $0x168] sm:$0xff]
        %v1782 = vld [vmem:[#allocation9 + $0x170] sm:$0xff]
        %v1783 = vld [vmem:[#allocation9 + $0x178] sm:$0xff]
        %v1784 = vld [vmem:[#allocation9 + $0x180] sm:$0xff]
        %v1785 = vld [vmem:[#allocation9 + $0x188] sm:$0xff]
        %v1786 = vld [vmem:[#allocation9 + $0x190] sm:$0xff]
        %v1787 = vld [vmem:[#allocation9 + $0x198] sm:$0xff]
        %v1788 = vld [vmem:[#allocation9 + $0x1a0] sm:$0xff]
        %v1789 = vld [vmem:[#allocation9 + $0x1a8] sm:$0xff]
        %v1790 = vld [vmem:[#allocation9 + $0x1b0] sm:$0xff]
        %v1791 = vld [vmem:[#allocation9 + $0x1b8] sm:$0xff]
        %v1792 = vld [vmem:[#allocation9 + $0x1c0] sm:$0xff]
        %v1793 = vld [vmem:[#allocation9 + $0x1c8] sm:$0xff]
        %v1794 = vld [vmem:[#allocation9 + $0x1d0] sm:$0xff]
        %v1795 = vld [vmem:[#allocation9 + $0x1d8] sm:$0xff]
        %v1796 = vld [vmem:[#allocation9 + $0x1e0] sm:$0xff]
        %v1797 = vld [vmem:[#allocation9 + $0x1e8] sm:$0xff]
        %v1798 = vld [vmem:[#allocation9 + $0x1f0] sm:$0xff]
        %v1799 = vld [vmem:[#allocation9 + $0x1f8] sm:$0xff]
        %v1800 = vld [vmem:[#allocation9 + $0x200] sm:$0xff]
        %v1801 = vld [vmem:[#allocation9 + $0x208] sm:$0xff]
        %v1802 = vld [vmem:[#allocation9 + $0x210] sm:$0xff]
        %v1803 = vld [vmem:[#allocation9 + $0x218] sm:$0xff]
        %v1804 = vld [vmem:[#allocation9 + $0x220] sm:$0xff]
        %v1805 = vld [vmem:[#allocation9 + $0x228] sm:$0xff]
        %v1806 = vld [vmem:[#allocation9 + $0x230] sm:$0xff]
        %v1807 = vld [vmem:[#allocation9 + $0x238] sm:$0xff]
        %v1808 = vld [vmem:[#allocation9 + $0x240] sm:$0xff]
        %v1809 = vld [vmem:[#allocation9 + $0x248] sm:$0xff]
        %v1810 = vld [vmem:[#allocation9 + $0x250] sm:$0xff]
        %v1811 = vld [vmem:[#allocation9 + $0x258] sm:$0xff]
        %v1812 = vld [vmem:[#allocation9 + $0x260] sm:$0xff]
        %v1813 = vld [vmem:[#allocation9 + $0x268] sm:$0xff]
        %v1814 = vld [vmem:[#allocation9 + $0x270] sm:$0xff]
        %v1815 = vld [vmem:[#allocation9 + $0x278] sm:$0xff]
        %v1816 = vld [vmem:[#allocation9 + $0x280] sm:$0xff]
        %v1817 = vld [vmem:[#allocation9 + $0x288] sm:$0xff]
        %v1818 = vld [vmem:[#allocation9 + $0x290] sm:$0xff]
        %v1819 = vld [vmem:[#allocation9 + $0x298] sm:$0xff]
        %v1820 = vld [vmem:[#allocation9 + $0x2a0] sm:$0xff]
        %v1821 = vld [vmem:[#allocation9 + $0x2a8] sm:$0xff]
        %v1822 = vld [vmem:[#allocation9 + $0x2b0] sm:$0xff]
        %v1823 = vld [vmem:[#allocation9 + $0x2b8] sm:$0xff]
        %v1824 = vld [vmem:[#allocation9 + $0x2c0] sm:$0xff]
        %v1825 = vld [vmem:[#allocation9 + $0x2c8] sm:$0xff]
        %v1826 = vld [vmem:[#allocation9 + $0x2d0] sm:$0xff]
        %v1827 = vld [vmem:[#allocation9 + $0x2d8] sm:$0xff]
        %v1828 = vld [vmem:[#allocation9 + $0x2e0] sm:$0xff]
        %v1829 = vld [vmem:[#allocation9 + $0x2e8] sm:$0xff]
        %v1830 = vld [vmem:[#allocation9 + $0x2f0] sm:$0xff]
        %v1831 = vld [vmem:[#allocation9 + $0x2f8] sm:$0xff]
        %v1832 = vld [vmem:[#allocation9 + $0x300] sm:$0xff]
        %v1833 = vld [vmem:[#allocation9 + $0x308] sm:$0xff]
        %v1834 = vld [vmem:[#allocation9 + $0x310] sm:$0xff]
        %v1835 = vld [vmem:[#allocation9 + $0x318] sm:$0xff]
        %v1836 = vld [vmem:[#allocation9 + $0x320] sm:$0xff]
        %v1837 = vld [vmem:[#allocation9 + $0x328] sm:$0xff]
        %v1838 = vld [vmem:[#allocation9 + $0x330] sm:$0xff]
        %v1839 = vld [vmem:[#allocation9 + $0x338] sm:$0xff]
        %v1840 = vld [vmem:[#allocation9 + $0x340] sm:$0xff]
        %v1841 = vld [vmem:[#allocation9 + $0x348] sm:$0xff]
        %v1842 = vld [vmem:[#allocation9 + $0x350] sm:$0xff]
        %v1843 = vld [vmem:[#allocation9 + $0x358] sm:$0xff]
        %v1844 = vld [vmem:[#allocation9 + $0x360] sm:$0xff]
        %v1845 = vld [vmem:[#allocation9 + $0x368] sm:$0xff]
        %v1846 = vld [vmem:[#allocation9 + $0x370] sm:$0xff]
        %v1847 = vld [vmem:[#allocation9 + $0x378] sm:$0xff]
        %v1848 = vld [vmem:[#allocation9 + $0x380] sm:$0xff]
        %v1849 = vld [vmem:[#allocation9 + $0x388] sm:$0xff]
        %v1850 = vld [vmem:[#allocation9 + $0x390] sm:$0xff]
        %v1851 = vld [vmem:[#allocation9 + $0x398] sm:$0xff]
        %v1852 = vld [vmem:[#allocation9 + $0x3a0] sm:$0xff]
        %v1853 = vld [vmem:[#allocation9 + $0x3a8] sm:$0xff]
        %v1854 = vld [vmem:[#allocation9 + $0x3b0] sm:$0xff]
        %v1855 = vld [vmem:[#allocation9 + $0x3b8] sm:$0xff]
        %v1856 = vld [vmem:[#allocation9 + $0x3c0] sm:$0xff]
        %v1857 = vld [vmem:[#allocation9 + $0x3c8] sm:$0xff]
        %v1858 = vld [vmem:[#allocation9 + $0x3d0] sm:$0xff]
        %v1859 = vld [vmem:[#allocation9 + $0x3d8] sm:$0xff]
        %v1860 = vld [vmem:[#allocation9 + $0x3e0] sm:$0xff]
        %v1861 = vld [vmem:[#allocation9 + $0x3e8] sm:$0xff]
        %v1862 = vld [vmem:[#allocation9 + $0x3f0] sm:$0xff]
        %v1863 = vld [vmem:[#allocation9 + $0x3f8] sm:$0xff]
        %v1864 = vld [vmem:[#allocation9 + $0x400] sm:$0xff]
        %v1865 = vld [vmem:[#allocation9 + $0x408] sm:$0xff]
        %v1866 = vld [vmem:[#allocation9 + $0x410] sm:$0xff]
        %v1867 = vld [vmem:[#allocation9 + $0x418] sm:$0xff]
        %v1868 = vld [vmem:[#allocation9 + $0x420] sm:$0xff]
        %v1869 = vld [vmem:[#allocation9 + $0x428] sm:$0xff]
        %v1870 = vld [vmem:[#allocation9 + $0x430] sm:$0xff]
        %v1871 = vld [vmem:[#allocation9 + $0x438] sm:$0xff]
        %v1872 = vld [vmem:[#allocation9 + $0x440] sm:$0xff]
        %v1873 = vld [vmem:[#allocation9 + $0x448] sm:$0xff]
        %v1874 = vld [vmem:[#allocation9 + $0x450] sm:$0xff]
        %v1875 = vld [vmem:[#allocation9 + $0x458] sm:$0xff]
        %v1876 = vld [vmem:[#allocation9 + $0x460] sm:$0xff]
        %v1877 = vld [vmem:[#allocation9 + $0x468] sm:$0xff]
        %v1878 = vld [vmem:[#allocation9 + $0x470] sm:$0xff]
        %v1879 = vld [vmem:[#allocation9 + $0x478] sm:$0xff]
        %v1880 = vld [vmem:[#allocation9 + $0x480] sm:$0xff]
        %v1881 = vld [vmem:[#allocation9 + $0x488] sm:$0xff]
        %v1882 = vld [vmem:[#allocation9 + $0x490] sm:$0xff]
        %v1883 = vld [vmem:[#allocation9 + $0x498] sm:$0xff]
        %v1884 = vld [vmem:[#allocation9 + $0x4a0] sm:$0xff]
        %v1885 = vld [vmem:[#allocation9 + $0x4a8] sm:$0xff]
        %v1886 = vld [vmem:[#allocation9 + $0x4b0] sm:$0xff]
        %v1887 = vld [vmem:[#allocation9 + $0x4b8] sm:$0xff]
        %v1888 = vld [vmem:[#allocation9 + $0x4c0] sm:$0xff]
        %v1889 = vld [vmem:[#allocation9 + $0x4c8] sm:$0xff]
        %v1890 = vld [vmem:[#allocation9 + $0x4d0] sm:$0xff]
        %v1891 = vld [vmem:[#allocation9 + $0x4d8] sm:$0xff]
        %v1892 = vld [vmem:[#allocation9 + $0x4e0] sm:$0xff]
        %v1893 = vld [vmem:[#allocation9 + $0x4e8] sm:$0xff]
        %v1894 = vld [vmem:[#allocation9 + $0x4f0] sm:$0xff]
        %v1895 = vld [vmem:[#allocation9 + $0x4f8] sm:$0xff]
        %s1896 = scalar_lea.vmem [#allocation9], 1280
        %v1897 = vld [vmem:[%s1896] sm:$0xff]
        %v1898 = vld [vmem:[%s1896 + $0x8] sm:$0xff]
        %v1899 = vld [vmem:[%s1896 + $0x10] sm:$0xff]
        %v1900 = vld [vmem:[%s1896 + $0x18] sm:$0xff]
        %v1901 = vld [vmem:[%s1896 + $0x20] sm:$0xff]
        %v1902 = vld [vmem:[%s1896 + $0x28] sm:$0xff]
        %v1903 = vld [vmem:[%s1896 + $0x30] sm:$0xff]
        %v1904 = vld [vmem:[%s1896 + $0x38] sm:$0xff]
        %v1905 = vld [vmem:[%s1896 + $0x40] sm:$0xff]
        %v1906 = vld [vmem:[%s1896 + $0x48] sm:$0xff]
        %v1907 = vld [vmem:[%s1896 + $0x50] sm:$0xff]
        %v1908 = vld [vmem:[%s1896 + $0x58] sm:$0xff]
        %v1909 = vld [vmem:[%s1896 + $0x60] sm:$0xff]
        %v1910 = vld [vmem:[%s1896 + $0x68] sm:$0xff]
        %v1911 = vld [vmem:[%s1896 + $0x70] sm:$0xff]
        %v1912 = vld [vmem:[%s1896 + $0x78] sm:$0xff]
        %v1913 = vld [vmem:[%s1896 + $0x80] sm:$0xff]
        %v1914 = vld [vmem:[%s1896 + $0x88] sm:$0xff]
        %v1915 = vld [vmem:[%s1896 + $0x90] sm:$0xff]
        %v1916 = vld [vmem:[%s1896 + $0x98] sm:$0xff]
        %v1917 = vld [vmem:[%s1896 + $0xa0] sm:$0xff]
        %v1918 = vld [vmem:[%s1896 + $0xa8] sm:$0xff]
        %v1919 = vld [vmem:[%s1896 + $0xb0] sm:$0xff]
        %v1920 = vld [vmem:[%s1896 + $0xb8] sm:$0xff]
        %v1921 = vld [vmem:[%s1896 + $0xc0] sm:$0xff]
        %v1922 = vld [vmem:[%s1896 + $0xc8] sm:$0xff]
        %v1923 = vld [vmem:[%s1896 + $0xd0] sm:$0xff]
        %v1924 = vld [vmem:[%s1896 + $0xd8] sm:$0xff]
        %v1925 = vld [vmem:[%s1896 + $0xe0] sm:$0xff]
        %v1926 = vld [vmem:[%s1896 + $0xe8] sm:$0xff]
        %v1927 = vld [vmem:[%s1896 + $0xf0] sm:$0xff]
        %v1928 = vld [vmem:[%s1896 + $0xf8] sm:$0xff]
        %v1929 = vld [vmem:[%s1896 + $0x100] sm:$0xff]
        %v1930 = vld [vmem:[%s1896 + $0x108] sm:$0xff]
        %v1931 = vld [vmem:[%s1896 + $0x110] sm:$0xff]
        %v1932 = vld [vmem:[%s1896 + $0x118] sm:$0xff]
        %v1933 = vld [vmem:[%s1896 + $0x120] sm:$0xff]
        %v1934 = vld [vmem:[%s1896 + $0x128] sm:$0xff]
        %v1935 = vld [vmem:[%s1896 + $0x130] sm:$0xff]
        %v1936 = vld [vmem:[%s1896 + $0x138] sm:$0xff]
        %v1937 = vld [vmem:[%s1896 + $0x140] sm:$0xff]
        %v1938 = vld [vmem:[%s1896 + $0x148] sm:$0xff]
        %v1939 = vld [vmem:[%s1896 + $0x150] sm:$0xff]
        %v1940 = vld [vmem:[%s1896 + $0x158] sm:$0xff]
        %v1941 = vld [vmem:[%s1896 + $0x160] sm:$0xff]
        %v1942 = vld [vmem:[%s1896 + $0x168] sm:$0xff]
        %v1943 = vld [vmem:[%s1896 + $0x170] sm:$0xff]
        %v1944 = vld [vmem:[%s1896 + $0x178] sm:$0xff]
        %v1945 = vld [vmem:[%s1896 + $0x180] sm:$0xff]
        %v1946 = vld [vmem:[%s1896 + $0x188] sm:$0xff]
        %v1947 = vld [vmem:[%s1896 + $0x190] sm:$0xff]
        %v1948 = vld [vmem:[%s1896 + $0x198] sm:$0xff]
        %v1949 = vld [vmem:[%s1896 + $0x1a0] sm:$0xff]
        %v1950 = vld [vmem:[%s1896 + $0x1a8] sm:$0xff]
        %v1951 = vld [vmem:[%s1896 + $0x1b0] sm:$0xff]
        %v1952 = vld [vmem:[%s1896 + $0x1b8] sm:$0xff]
        %v1953 = vld [vmem:[%s1896 + $0x1c0] sm:$0xff]
        %v1954 = vld [vmem:[%s1896 + $0x1c8] sm:$0xff]
        %v1955 = vld [vmem:[%s1896 + $0x1d0] sm:$0xff]
        %v1956 = vld [vmem:[%s1896 + $0x1d8] sm:$0xff]
        %v1957 = vld [vmem:[%s1896 + $0x1e0] sm:$0xff]
        %v1958 = vld [vmem:[%s1896 + $0x1e8] sm:$0xff]
        %v1959 = vld [vmem:[%s1896 + $0x1f0] sm:$0xff]
        %v1960 = vld [vmem:[%s1896 + $0x1f8] sm:$0xff]
        %v1961 = vld [vmem:[%s1896 + $0x200] sm:$0xff]
        %v1962 = vld [vmem:[%s1896 + $0x208] sm:$0xff]
        %v1963 = vld [vmem:[%s1896 + $0x210] sm:$0xff]
        %v1964 = vld [vmem:[%s1896 + $0x218] sm:$0xff]
        %v1965 = vld [vmem:[%s1896 + $0x220] sm:$0xff]
        %v1966 = vld [vmem:[%s1896 + $0x228] sm:$0xff]
        %v1967 = vld [vmem:[%s1896 + $0x230] sm:$0xff]
        %v1968 = vld [vmem:[%s1896 + $0x238] sm:$0xff]
        %v1969 = vld [vmem:[%s1896 + $0x240] sm:$0xff]
        %v1970 = vld [vmem:[%s1896 + $0x248] sm:$0xff]
        %v1971 = vld [vmem:[%s1896 + $0x250] sm:$0xff]
        %v1972 = vld [vmem:[%s1896 + $0x258] sm:$0xff]
        %v1973 = vld [vmem:[%s1896 + $0x260] sm:$0xff]
        %v1974 = vld [vmem:[%s1896 + $0x268] sm:$0xff]
        %v1975 = vld [vmem:[%s1896 + $0x270] sm:$0xff]
        %v1976 = vld [vmem:[%s1896 + $0x278] sm:$0xff]
        %v1977 = vld [vmem:[%s1896 + $0x280] sm:$0xff]
        %v1978 = vld [vmem:[%s1896 + $0x288] sm:$0xff]
        %v1979 = vld [vmem:[%s1896 + $0x290] sm:$0xff]
        %v1980 = vld [vmem:[%s1896 + $0x298] sm:$0xff]
        %v1981 = vld [vmem:[%s1896 + $0x2a0] sm:$0xff]
        %v1982 = vld [vmem:[%s1896 + $0x2a8] sm:$0xff]
        %v1983 = vld [vmem:[%s1896 + $0x2b0] sm:$0xff]
        %v1984 = vld [vmem:[%s1896 + $0x2b8] sm:$0xff]
        %v1985 = vld [vmem:[%s1896 + $0x2c0] sm:$0xff]
        %v1986 = vld [vmem:[%s1896 + $0x2c8] sm:$0xff]
        %v1987 = vld [vmem:[%s1896 + $0x2d0] sm:$0xff]
        %v1988 = vld [vmem:[%s1896 + $0x2d8] sm:$0xff]
        %v1989 = vld [vmem:[%s1896 + $0x2e0] sm:$0xff]
        %v1990 = vld [vmem:[%s1896 + $0x2e8] sm:$0xff]
        %v1991 = vld [vmem:[%s1896 + $0x2f0] sm:$0xff]
        %v1992 = vld [vmem:[%s1896 + $0x2f8] sm:$0xff]
        %v1993 = vld [vmem:[%s1896 + $0x300] sm:$0xff]
        %v1994 = vld [vmem:[%s1896 + $0x308] sm:$0xff]
        %v1995 = vld [vmem:[%s1896 + $0x310] sm:$0xff]
        %v1996 = vld [vmem:[%s1896 + $0x318] sm:$0xff]
        %v1997 = vld [vmem:[%s1896 + $0x320] sm:$0xff]
        %v1998 = vld [vmem:[%s1896 + $0x328] sm:$0xff]
        %v1999 = vld [vmem:[%s1896 + $0x330] sm:$0xff]
        %v2000 = vld [vmem:[%s1896 + $0x338] sm:$0xff]
        %v2001 = vld [vmem:[%s1896 + $0x340] sm:$0xff]
        %v2002 = vld [vmem:[%s1896 + $0x348] sm:$0xff]
        %v2003 = vld [vmem:[%s1896 + $0x350] sm:$0xff]
        %v2004 = vld [vmem:[%s1896 + $0x358] sm:$0xff]
        %v2005 = vld [vmem:[%s1896 + $0x360] sm:$0xff]
        %v2006 = vld [vmem:[%s1896 + $0x368] sm:$0xff]
        %v2007 = vld [vmem:[%s1896 + $0x370] sm:$0xff]
        %v2008 = vld [vmem:[%s1896 + $0x378] sm:$0xff]
        %v2009 = vld [vmem:[%s1896 + $0x380] sm:$0xff]
        %v2010 = vld [vmem:[%s1896 + $0x388] sm:$0xff]
        %v2011 = vld [vmem:[%s1896 + $0x390] sm:$0xff]
        %v2012 = vld [vmem:[%s1896 + $0x398] sm:$0xff]
        %v2013 = vld [vmem:[%s1896 + $0x3a0] sm:$0xff]
        %v2014 = vld [vmem:[%s1896 + $0x3a8] sm:$0xff]
        %v2015 = vld [vmem:[%s1896 + $0x3b0] sm:$0xff]
        %v2016 = vld [vmem:[%s1896 + $0x3b8] sm:$0xff]
        %v2017 = vld [vmem:[%s1896 + $0x3c0] sm:$0xff]
        %v2018 = vld [vmem:[%s1896 + $0x3c8] sm:$0xff]
        %v2019 = vld [vmem:[%s1896 + $0x3d0] sm:$0xff]
        %v2020 = vld [vmem:[%s1896 + $0x3d8] sm:$0xff]
        %v2021 = vld [vmem:[%s1896 + $0x3e0] sm:$0xff]
        %v2022 = vld [vmem:[%s1896 + $0x3e8] sm:$0xff]
        %v2023 = vld [vmem:[%s1896 + $0x3f0] sm:$0xff]
        %v2024 = vld [vmem:[%s1896 + $0x3f8] sm:$0xff]
        %v2025 = vld [vmem:[%s1896 + $0x400] sm:$0xff]
        %v2026 = vld [vmem:[%s1896 + $0x408] sm:$0xff]
        %v2027 = vld [vmem:[%s1896 + $0x410] sm:$0xff]
        %v2028 = vld [vmem:[%s1896 + $0x418] sm:$0xff]
        %v2029 = vld [vmem:[%s1896 + $0x420] sm:$0xff]
        %v2030 = vld [vmem:[%s1896 + $0x428] sm:$0xff]
        %v2031 = vld [vmem:[%s1896 + $0x430] sm:$0xff]
        %v2032 = vld [vmem:[%s1896 + $0x438] sm:$0xff]
        %v2033 = vld [vmem:[%s1896 + $0x440] sm:$0xff]
        %v2034 = vld [vmem:[%s1896 + $0x448] sm:$0xff]
        %v2035 = vld [vmem:[%s1896 + $0x450] sm:$0xff]
        %v2036 = vld [vmem:[%s1896 + $0x458] sm:$0xff]
        %v2037 = vld [vmem:[%s1896 + $0x460] sm:$0xff]
        %v2038 = vld [vmem:[%s1896 + $0x468] sm:$0xff]
        %v2039 = vld [vmem:[%s1896 + $0x470] sm:$0xff]
        %v2040 = vld [vmem:[%s1896 + $0x478] sm:$0xff]
        %v2041 = vld [vmem:[%s1896 + $0x480] sm:$0xff]
        %v2042 = vld [vmem:[%s1896 + $0x488] sm:$0xff]
        %v2043 = vld [vmem:[%s1896 + $0x490] sm:$0xff]
        %v2044 = vld [vmem:[%s1896 + $0x498] sm:$0xff]
        %v2045 = vld [vmem:[%s1896 + $0x4a0] sm:$0xff]
        %v2046 = vld [vmem:[%s1896 + $0x4a8] sm:$0xff]
        %v2047 = vld [vmem:[%s1896 + $0x4b0] sm:$0xff]
        %v2048 = vld [vmem:[%s1896 + $0x4b8] sm:$0xff]
        %v2049 = vld [vmem:[%s1896 + $0x4c0] sm:$0xff]
        %v2050 = vld [vmem:[%s1896 + $0x4c8] sm:$0xff]
        %v2051 = vld [vmem:[%s1896 + $0x4d0] sm:$0xff]
        %v2052 = vld [vmem:[%s1896 + $0x4d8] sm:$0xff]
        %v2053 = vld [vmem:[%s1896 + $0x4e0] sm:$0xff]
        %v2054 = vld [vmem:[%s1896 + $0x4e8] sm:$0xff]
        %v2055 = vld [vmem:[%s1896 + $0x4f0] sm:$0xff]
        %v2056 = vld [vmem:[%s1896 + $0x4f8] sm:$0xff]
        %v2063 = vrot.slane %v1730, 1
        %v2064 = vrot.slane %v1733, 1
        %v2065 = vsel %vm465, %v2063, %v2064
        %v2066 = vrot.slane %v1731, 1
        %v2067 = vrot.slane %v1734, 1
        %v2068 = vsel %vm465, %v2066, %v2067
        %v2069 = vrot.slane %v1732, 1
        %v2070 = vrot.slane %v1735, 1
        %v2071 = vsel %vm465, %v2069, %v2070
        %vm2074 = vcmask 523264
        %v2075 = vsel %vm2074, %v2071, 0
        %2077 = vmatprep.subr.mxu0 %v1898
        %2078 = vmatpush1.msra.mxu0 %v1897
        %2079 = vmatprep.subr.mxu0 %v1902
        %2080 = vmatpush1.msra.mxu0 %v1901
        %2081 = vmatprep.subr.mxu0 %v1906
        %2082 = vmatpush1.msra.mxu0 %v1905
        %2083 = vmatprep.subr.mxu0 %v1910
        %2084 = vmatpush1.msra.mxu0 %v1909
        %2085 = vmatprep.subr.mxu0 %v1914
        %2086 = vmatpush1.msra.mxu0 %v1913
        %2087 = vmatprep.subr.mxu0 %v1918
        %2088 = vmatpush1.msra.mxu0 %v1917
        %2089 = vmatprep.subr.mxu0 %v1922
        %2090 = vmatpush1.msra.mxu0 %v1921
        %2091 = vmatprep.subr.mxu0 %v1926
        %2092 = vmatpush1.msra.mxu0 %v1925
        %2093 = vmatprep.subr.mxu0 %v1930
        %2094 = vmatpush1.msra.mxu0 %v1929
        %2095 = vmatprep.subr.mxu0 %v1934
        %2096 = vmatpush1.msra.mxu0 %v1933
        %2097 = vmatprep.subr.mxu0 %v1938
        %2098 = vmatpush1.msra.mxu0 %v1937
        %2099 = vmatprep.subr.mxu0 %v1942
        %2100 = vmatpush1.msra.mxu0 %v1941
        %2101 = vmatprep.subr.mxu0 %v1946
        %2102 = vmatpush1.msra.mxu0 %v1945
        %2103 = vmatprep.subr.mxu0 %v1950
        %2104 = vmatpush1.msra.mxu0 %v1949
        %2105 = vmatprep.subr.mxu0 %v1954
        %2106 = vmatpush1.msra.mxu0 %v1953
        %2107 = vmatprep.subr.mxu0 %v1958
        %2108 = vmatpush1.msra.mxu0 %v1957
        %2109 = vmatprep.subr.mxu0 %v1962
        %2110 = vmatpush1.msra.mxu0 %v1961
        %2111 = vmatprep.subr.mxu0 %v1966
        %2112 = vmatpush1.msra.mxu0 %v1965
        %2113 = vmatprep.subr.mxu0 %v1970
        %2114 = vmatpush1.msra.mxu0 %v1969
        %2115 = vmatprep.subr.mxu0 %v1974
        %2116 = vmatpush1.msra.mxu0 %v1973
        %2117 = vmatprep.subr.mxu0 %v1978
        %2118 = vmatpush1.msra.mxu0 %v1977
        %2119 = vmatprep.subr.mxu0 %v1982
        %2120 = vmatpush1.msra.mxu0 %v1981
        %2121 = vmatprep.subr.mxu0 %v1986
        %2122 = vmatpush1.msra.mxu0 %v1985
        %2123 = vmatprep.subr.mxu0 %v1990
        %2124 = vmatpush1.msra.mxu0 %v1989
        %2125 = vmatprep.subr.mxu0 %v1994
        %2126 = vmatpush1.msra.mxu0 %v1993
        %2127 = vmatprep.subr.mxu0 %v1998
        %2128 = vmatpush1.msra.mxu0 %v1997
        %2129 = vmatprep.subr.mxu0 %v2002
        %2130 = vmatpush1.msra.mxu0 %v2001
        %2131 = vmatprep.subr.mxu0 %v2006
        %2132 = vmatpush1.msra.mxu0 %v2005
        %2133 = vmatprep.subr.mxu0 %v2010
        %2134 = vmatpush1.msra.mxu0 %v2009
        %2135 = vmatprep.subr.mxu0 %v2014
        %2136 = vmatpush1.msra.mxu0 %v2013
        %2137 = vmatprep.subr.mxu0 %v2018
        %2138 = vmatpush1.msra.mxu0 %v2017
        %2139 = vmatprep.subr.mxu0 %v2022
        %2140 = vmatpush1.msra.mxu0 %v2021
        %2141 = vmatprep.mubr.f32.mxu0 %v2068
        %2142 = vmatmul.mubr.f32.gmra.mrb[0].mxu0 %v2065
        %v2143 = vpop.f32.mrb[0].mxu0
        %v2144 = vadd.f32 0.0, %v2143
        %v2145 = vpop.f32.mrb[0].mxu0
        %v2146 = vadd.f32 0.0, %v2145
        %2147 = vdwg.mxu0
        %2148 = vmatprep.subr.mxu0 %v2026
        %2149 = vmatpush1.msra.mxu0 %v2025
        %2150 = vmatprep.subr.mxu0 %v2030
        %2151 = vmatpush1.msra.mxu0 %v2029
        %2152 = vmatprep.subr.mxu0 %v2034
        %2153 = vmatpush1.msra.mxu0 %v2033
        %2154 = vmatprep.subr.mxu0 %v2038
        %2155 = vmatpush1.msra.mxu0 %v2037
        %2156 = vmatprep.subr.mxu0 %v2042
        %2157 = vmatpush1.msra.mxu0 %v2041
        %2158 = vmatprep.subr.mxu0 %v2046
        %2159 = vmatpush1.msra.mxu0 %v2045
        %2160 = vmatprep.subr.mxu0 %v2050
        %2161 = vmatpush1.msra.mxu0 %v2049
        %2162 = vmatprep.subr.mxu0 %v2054
        %2163 = vmatpush1.msra.mxu0 %v2053
        %2164 = vmatprep.subr.mxu0 0.0
        %2165 = vmatpush1.msra.mxu0 0.0
        %2166 = vmatprep.subr.mxu0 0.0
        %2167 = vmatpush1.msra.mxu0 0.0
        %2168 = vmatprep.subr.mxu0 0.0
        %2169 = vmatpush1.msra.mxu0 0.0
        %2170 = vmatprep.subr.mxu0 0.0
        %2171 = vmatpush1.msra.mxu0 0.0
        %2172 = vmatprep.subr.mxu0 0.0
        %2173 = vmatpush1.msra.mxu0 0.0
        %2174 = vmatprep.subr.mxu0 0.0
        %2175 = vmatpush1.msra.mxu0 0.0
        %2176 = vmatprep.subr.mxu0 0.0
        %2177 = vmatpush1.msra.mxu0 0.0
        %2178 = vmatprep.subr.mxu0 0.0
        %2179 = vmatpush1.msra.mxu0 0.0
        %2180 = vmatprep.subr.mxu0 0.0
        %2181 = vmatpush1.msra.mxu0 0.0
        %2182 = vmatprep.subr.mxu0 0.0
        %2183 = vmatpush1.msra.mxu0 0.0
        %2184 = vmatprep.subr.mxu0 0.0
        %2185 = vmatpush1.msra.mxu0 0.0
        %2186 = vmatprep.subr.mxu0 0.0
        %2187 = vmatpush1.msra.mxu0 0.0
        %2188 = vmatprep.subr.mxu0 0.0
        %2189 = vmatpush1.msra.mxu0 0.0
        %2190 = vmatprep.subr.mxu0 0.0
        %2191 = vmatpush1.msra.mxu0 0.0
        %2192 = vmatprep.subr.mxu0 0.0
        %2193 = vmatpush1.msra.mxu0 0.0
        %2194 = vmatprep.subr.mxu0 0.0
        %2195 = vmatpush1.msra.mxu0 0.0
        %2196 = vmatprep.subr.mxu0 0.0
        %2197 = vmatpush1.msra.mxu0 0.0
        %2198 = vmatprep.subr.mxu0 0.0
        %2199 = vmatpush1.msra.mxu0 0.0
        %2200 = vmatprep.subr.mxu0 0.0
        %2201 = vmatpush1.msra.mxu0 0.0
        %2202 = vmatprep.subr.mxu0 0.0
        %2203 = vmatpush1.msra.mxu0 0.0
        %2204 = vmatprep.subr.mxu0 0.0
        %2205 = vmatpush1.msra.mxu0 0.0
        %2206 = vmatprep.subr.mxu0 0.0
        %2207 = vmatpush1.msra.mxu0 0.0
        %2208 = vmatprep.subr.mxu0 0.0
        %2209 = vmatpush1.msra.mxu0 0.0
        %2210 = vmatprep.subr.mxu0 0.0
        %2211 = vmatpush1.msra.mxu0 0.0
        %2212 = vmatprep.mubr.f32.mxu0 0.0
        %2213 = vmatmul.mubr.f32.gmra.mrb[0].mxu0 %v2075
        %v2214 = vpop.f32.mrb[0].mxu0
        %v2215 = vadd.f32 %v2144, %v2214
        %v2216 = vpop.f32.mrb[0].mxu0
        %v2217 = vadd.f32 %v2146, %v2216
        %2218 = vdwg.mxu0
        %2219 = vmatprep.subr.mxu0 %v1900
        %2220 = vmatpush1.msra.mxu0 %v1899
        %2221 = vmatprep.subr.mxu0 %v1904
        %2222 = vmatpush1.msra.mxu0 %v1903
        %2223 = vmatprep.subr.mxu0 %v1908
        %2224 = vmatpush1.msra.mxu0 %v1907
        %2225 = vmatprep.subr.mxu0 %v1912
        %2226 = vmatpush1.msra.mxu0 %v1911
        %2227 = vmatprep.subr.mxu0 %v1916
        %2228 = vmatpush1.msra.mxu0 %v1915
        %2229 = vmatprep.subr.mxu0 %v1920
        %2230 = vmatpush1.msra.mxu0 %v1919
        %2231 = vmatprep.subr.mxu0 %v1924
        %2232 = vmatpush1.msra.mxu0 %v1923
        %2233 = vmatprep.subr.mxu0 %v1928
        %2234 = vmatpush1.msra.mxu0 %v1927
        %2235 = vmatprep.subr.mxu0 %v1932
        %2236 = vmatpush1.msra.mxu0 %v1931
        %2237 = vmatprep.subr.mxu0 %v1936
        %2238 = vmatpush1.msra.mxu0 %v1935
        %2239 = vmatprep.subr.mxu0 %v1940
        %2240 = vmatpush1.msra.mxu0 %v1939
        %2241 = vmatprep.subr.mxu0 %v1944
        %2242 = vmatpush1.msra.mxu0 %v1943
        %2243 = vmatprep.subr.mxu0 %v1948
        %2244 = vmatpush1.msra.mxu0 %v1947
        %2245 = vmatprep.subr.mxu0 %v1952
        %2246 = vmatpush1.msra.mxu0 %v1951
        %2247 = vmatprep.subr.mxu0 %v1956
        %2248 = vmatpush1.msra.mxu0 %v1955
        %2249 = vmatprep.subr.mxu0 %v1960
        %2250 = vmatpush1.msra.mxu0 %v1959
        %2251 = vmatprep.subr.mxu0 %v1964
        %2252 = vmatpush1.msra.mxu0 %v1963
        %2253 = vmatprep.subr.mxu0 %v1968
        %2254 = vmatpush1.msra.mxu0 %v1967
        %2255 = vmatprep.subr.mxu0 %v1972
        %2256 = vmatpush1.msra.mxu0 %v1971
        %2257 = vmatprep.subr.mxu0 %v1976
        %2258 = vmatpush1.msra.mxu0 %v1975
        %2259 = vmatprep.subr.mxu0 %v1980
        %2260 = vmatpush1.msra.mxu0 %v1979
        %2261 = vmatprep.subr.mxu0 %v1984
        %2262 = vmatpush1.msra.mxu0 %v1983
        %2263 = vmatprep.subr.mxu0 %v1988
        %2264 = vmatpush1.msra.mxu0 %v1987
        %2265 = vmatprep.subr.mxu0 %v1992
        %2266 = vmatpush1.msra.mxu0 %v1991
        %2267 = vmatprep.subr.mxu0 %v1996
        %2268 = vmatpush1.msra.mxu0 %v1995
        %2269 = vmatprep.subr.mxu0 %v2000
        %2270 = vmatpush1.msra.mxu0 %v1999
        %2271 = vmatprep.subr.mxu0 %v2004
        %2272 = vmatpush1.msra.mxu0 %v2003
        %2273 = vmatprep.subr.mxu0 %v2008
        %2274 = vmatpush1.msra.mxu0 %v2007
        %2275 = vmatprep.subr.mxu0 %v2012
        %2276 = vmatpush1.msra.mxu0 %v2011
        %2277 = vmatprep.subr.mxu0 %v2016
        %2278 = vmatpush1.msra.mxu0 %v2015
        %2279 = vmatprep.subr.mxu0 %v2020
        %2280 = vmatpush1.msra.mxu0 %v2019
        %2281 = vmatprep.subr.mxu0 %v2024
        %2282 = vmatpush1.msra.mxu0 %v2023
        %2283 = vmatprep.mubr.f32.mxu0 %v2068
        %2284 = vmatmul.mubr.f32.gmra.mrb[0].mxu0 %v2065
        %v2285 = vpop.f32.mrb[0].mxu0
        %v2286 = vadd.f32 0.0, %v2285
        %v2287 = vpop.f32.mrb[0].mxu0
        %v2288 = vadd.f32 0.0, %v2287
        %2289 = vdwg.mxu0
        %2290 = vmatprep.subr.mxu0 %v2028
        %2291 = vmatpush1.msra.mxu0 %v2027
        %2292 = vmatprep.subr.mxu0 %v2032
        %2293 = vmatpush1.msra.mxu0 %v2031
        %2294 = vmatprep.subr.mxu0 %v2036
        %2295 = vmatpush1.msra.mxu0 %v2035
        %2296 = vmatprep.subr.mxu0 %v2040
        %2297 = vmatpush1.msra.mxu0 %v2039
        %2298 = vmatprep.subr.mxu0 %v2044
        %2299 = vmatpush1.msra.mxu0 %v2043
        %2300 = vmatprep.subr.mxu0 %v2048
        %2301 = vmatpush1.msra.mxu0 %v2047
        %2302 = vmatprep.subr.mxu0 %v2052
        %2303 = vmatpush1.msra.mxu0 %v2051
        %2304 = vmatprep.subr.mxu0 %v2056
        %2305 = vmatpush1.msra.mxu0 %v2055
        %2306 = vmatprep.subr.mxu0 0.0
        %2307 = vmatpush1.msra.mxu0 0.0
        %2308 = vmatprep.subr.mxu0 0.0
        %2309 = vmatpush1.msra.mxu0 0.0
        %2310 = vmatprep.subr.mxu0 0.0
        %2311 = vmatpush1.msra.mxu0 0.0
        %2312 = vmatprep.subr.mxu0 0.0
        %2313 = vmatpush1.msra.mxu0 0.0
        %2314 = vmatprep.subr.mxu0 0.0
        %2315 = vmatpush1.msra.mxu0 0.0
        %2316 = vmatprep.subr.mxu0 0.0
        %2317 = vmatpush1.msra.mxu0 0.0
        %2318 = vmatprep.subr.mxu0 0.0
        %2319 = vmatpush1.msra.mxu0 0.0
        %2320 = vmatprep.subr.mxu0 0.0
        %2321 = vmatpush1.msra.mxu0 0.0
        %2322 = vmatprep.subr.mxu0 0.0
        %2323 = vmatpush1.msra.mxu0 0.0
        %2324 = vmatprep.subr.mxu0 0.0
        %2325 = vmatpush1.msra.mxu0 0.0
        %2326 = vmatprep.subr.mxu0 0.0
        %2327 = vmatpush1.msra.mxu0 0.0
        %2328 = vmatprep.subr.mxu0 0.0
        %2329 = vmatpush1.msra.mxu0 0.0
        %2330 = vmatprep.subr.mxu0 0.0
        %2331 = vmatpush1.msra.mxu0 0.0
        %2332 = vmatprep.subr.mxu0 0.0
        %2333 = vmatpush1.msra.mxu0 0.0
        %2334 = vmatprep.subr.mxu0 0.0
        %2335 = vmatpush1.msra.mxu0 0.0
        %2336 = vmatprep.subr.mxu0 0.0
        %2337 = vmatpush1.msra.mxu0 0.0
        %2338 = vmatprep.subr.mxu0 0.0
        %2339 = vmatpush1.msra.mxu0 0.0
        %2340 = vmatprep.subr.mxu0 0.0
        %2341 = vmatpush1.msra.mxu0 0.0
        %2342 = vmatprep.subr.mxu0 0.0
        %2343 = vmatpush1.msra.mxu0 0.0
        %2344 = vmatprep.subr.mxu0 0.0
        %2345 = vmatpush1.msra.mxu0 0.0
        %2346 = vmatprep.subr.mxu0 0.0
        %2347 = vmatpush1.msra.mxu0 0.0
        %2348 = vmatprep.subr.mxu0 0.0
        %2349 = vmatpush1.msra.mxu0 0.0
        %2350 = vmatprep.subr.mxu0 0.0
        %2351 = vmatpush1.msra.mxu0 0.0
        %2352 = vmatprep.subr.mxu0 0.0
        %2353 = vmatpush1.msra.mxu0 0.0
        %2354 = vmatprep.mubr.f32.mxu0 0.0
        %2355 = vmatmul.mubr.f32.gmra.mrb[0].mxu0 %v2075
        %v2356 = vpop.f32.mrb[0].mxu0
        %v2357 = vadd.f32 %v2286, %v2356
        %v2358 = vpop.f32.mrb[0].mxu0
        %v2359 = vadd.f32 %v2288, %v2358
        %2360 = vdwg.mxu0
        %v2361 = vsel %vm2074, %v1732, 0
        %2363 = vmatprep.subr.mxu0 %v1737
        %2364 = vmatpush1.msra.mxu0 %v1736
        %2365 = vmatprep.subr.mxu0 %v1741
        %2366 = vmatpush1.msra.mxu0 %v1740
        %2367 = vmatprep.subr.mxu0 %v1745
        %2368 = vmatpush1.msra.mxu0 %v1744
        %2369 = vmatprep.subr.mxu0 %v1749
        %2370 = vmatpush1.msra.mxu0 %v1748
        %2371 = vmatprep.subr.mxu0 %v1753
        %2372 = vmatpush1.msra.mxu0 %v1752
        %2373 = vmatprep.subr.mxu0 %v1757
        %2374 = vmatpush1.msra.mxu0 %v1756
        %2375 = vmatprep.subr.mxu0 %v1761
        %2376 = vmatpush1.msra.mxu0 %v1760
        %2377 = vmatprep.subr.mxu0 %v1765
        %2378 = vmatpush1.msra.mxu0 %v1764
        %2379 = vmatprep.subr.mxu0 %v1769
        %2380 = vmatpush1.msra.mxu0 %v1768
        %2381 = vmatprep.subr.mxu0 %v1773
        %2382 = vmatpush1.msra.mxu0 %v1772
        %2383 = vmatprep.subr.mxu0 %v1777
        %2384 = vmatpush1.msra.mxu0 %v1776
        %2385 = vmatprep.subr.mxu0 %v1781
        %2386 = vmatpush1.msra.mxu0 %v1780
        %2387 = vmatprep.subr.mxu0 %v1785
        %2388 = vmatpush1.msra.mxu0 %v1784
        %2389 = vmatprep.subr.mxu0 %v1789
        %2390 = vmatpush1.msra.mxu0 %v1788
        %2391 = vmatprep.subr.mxu0 %v1793
        %2392 = vmatpush1.msra.mxu0 %v1792
        %2393 = vmatprep.subr.mxu0 %v1797
        %2394 = vmatpush1.msra.mxu0 %v1796
        %2395 = vmatprep.subr.mxu0 %v1801
        %2396 = vmatpush1.msra.mxu0 %v1800
        %2397 = vmatprep.subr.mxu0 %v1805
        %2398 = vmatpush1.msra.mxu0 %v1804
        %2399 = vmatprep.subr.mxu0 %v1809
        %2400 = vmatpush1.msra.mxu0 %v1808
        %2401 = vmatprep.subr.mxu0 %v1813
        %2402 = vmatpush1.msra.mxu0 %v1812
        %2403 = vmatprep.subr.mxu0 %v1817
        %2404 = vmatpush1.msra.mxu0 %v1816
        %2405 = vmatprep.subr.mxu0 %v1821
        %2406 = vmatpush1.msra.mxu0 %v1820
        %2407 = vmatprep.subr.mxu0 %v1825
        %2408 = vmatpush1.msra.mxu0 %v1824
        %2409 = vmatprep.subr.mxu0 %v1829
        %2410 = vmatpush1.msra.mxu0 %v1828
        %2411 = vmatprep.subr.mxu0 %v1833
        %2412 = vmatpush1.msra.mxu0 %v1832
        %2413 = vmatprep.subr.mxu0 %v1837
        %2414 = vmatpush1.msra.mxu0 %v1836
        %2415 = vmatprep.subr.mxu0 %v1841
        %2416 = vmatpush1.msra.mxu0 %v1840
        %2417 = vmatprep.subr.mxu0 %v1845
        %2418 = vmatpush1.msra.mxu0 %v1844
        %2419 = vmatprep.subr.mxu0 %v1849
        %2420 = vmatpush1.msra.mxu0 %v1848
        %2421 = vmatprep.subr.mxu0 %v1853
        %2422 = vmatpush1.msra.mxu0 %v1852
        %2423 = vmatprep.subr.mxu0 %v1857
        %2424 = vmatpush1.msra.mxu0 %v1856
        %2425 = vmatprep.subr.mxu0 %v1861
        %2426 = vmatpush1.msra.mxu0 %v1860
        %2427 = vmatprep.mubr.f32.mxu0 %v1731
        %2428 = vmatmul.mubr.f32.gmra.mrb[0].mxu0 %v1730
        %v2429 = vpop.f32.mrb[0].mxu0
        %v2430 = vadd.f32 %v2215, %v2429
        %v2431 = vpop.f32.mrb[0].mxu0
        %v2432 = vadd.f32 %v2217, %v2431
        %2433 = vdwg.mxu0
        %2434 = vmatprep.subr.mxu0 %v1865
        %2435 = vmatpush1.msra.mxu0 %v1864
        %2436 = vmatprep.subr.mxu0 %v1869
        %2437 = vmatpush1.msra.mxu0 %v1868
        %2438 = vmatprep.subr.mxu0 %v1873
        %2439 = vmatpush1.msra.mxu0 %v1872
        %2440 = vmatprep.subr.mxu0 %v1877
        %2441 = vmatpush1.msra.mxu0 %v1876
        %2442 = vmatprep.subr.mxu0 %v1881
        %2443 = vmatpush1.msra.mxu0 %v1880
        %2444 = vmatprep.subr.mxu0 %v1885
        %2445 = vmatpush1.msra.mxu0 %v1884
        %2446 = vmatprep.subr.mxu0 %v1889
        %2447 = vmatpush1.msra.mxu0 %v1888
        %2448 = vmatprep.subr.mxu0 %v1893
        %2449 = vmatpush1.msra.mxu0 %v1892
        %2450 = vmatprep.subr.mxu0 0.0
        %2451 = vmatpush1.msra.mxu0 0.0
        %2452 = vmatprep.subr.mxu0 0.0
        %2453 = vmatpush1.msra.mxu0 0.0
        %2454 = vmatprep.subr.mxu0 0.0
        %2455 = vmatpush1.msra.mxu0 0.0
        %2456 = vmatprep.subr.mxu0 0.0
        %2457 = vmatpush1.msra.mxu0 0.0
        %2458 = vmatprep.subr.mxu0 0.0
        %2459 = vmatpush1.msra.mxu0 0.0
        %2460 = vmatprep.subr.mxu0 0.0
        %2461 = vmatpush1.msra.mxu0 0.0
        %2462 = vmatprep.subr.mxu0 0.0
        %2463 = vmatpush1.msra.mxu0 0.0
        %2464 = vmatprep.subr.mxu0 0.0
        %2465 = vmatpush1.msra.mxu0 0.0
        %2466 = vmatprep.subr.mxu0 0.0
        %2467 = vmatpush1.msra.mxu0 0.0
        %2468 = vmatprep.subr.mxu0 0.0
        %2469 = vmatpush1.msra.mxu0 0.0
        %2470 = vmatprep.subr.mxu0 0.0
        %2471 = vmatpush1.msra.mxu0 0.0
        %2472 = vmatprep.subr.mxu0 0.0
        %2473 = vmatpush1.msra.mxu0 0.0
        %2474 = vmatprep.subr.mxu0 0.0
        %2475 = vmatpush1.msra.mxu0 0.0
        %2476 = vmatprep.subr.mxu0 0.0
        %2477 = vmatpush1.msra.mxu0 0.0
        %2478 = vmatprep.subr.mxu0 0.0
        %2479 = vmatpush1.msra.mxu0 0.0
        %2480 = vmatprep.subr.mxu0 0.0
        %2481 = vmatpush1.msra.mxu0 0.0
        %2482 = vmatprep.subr.mxu0 0.0
        %2483 = vmatpush1.msra.mxu0 0.0
        %2484 = vmatprep.subr.mxu0 0.0
        %2485 = vmatpush1.msra.mxu0 0.0
        %2486 = vmatprep.subr.mxu0 0.0
        %2487 = vmatpush1.msra.mxu0 0.0
        %2488 = vmatprep.subr.mxu0 0.0
        %2489 = vmatpush1.msra.mxu0 0.0
        %2490 = vmatprep.subr.mxu0 0.0
        %2491 = vmatpush1.msra.mxu0 0.0
        %2492 = vmatprep.subr.mxu0 0.0
        %2493 = vmatpush1.msra.mxu0 0.0
        %2494 = vmatprep.subr.mxu0 0.0
        %2495 = vmatpush1.msra.mxu0 0.0
        %2496 = vmatprep.subr.mxu0 0.0
        %2497 = vmatpush1.msra.mxu0 0.0
        %2498 = vmatprep.mubr.f32.mxu0 0.0
        %2499 = vmatmul.mubr.f32.gmra.mrb[0].mxu0 %v2361
        %v2500 = vpop.f32.mrb[0].mxu0
        %v2501 = vadd.f32 %v2430, %v2500
        %v2502 = vpop.f32.mrb[0].mxu0
        %v2503 = vadd.f32 %v2432, %v2502
        %2504 = vdwg.mxu0
        %2505 = vmatprep.subr.mxu0 %v1739
        %2506 = vmatpush1.msra.mxu0 %v1738
        %2507 = vmatprep.subr.mxu0 %v1743
        %2508 = vmatpush1.msra.mxu0 %v1742
        %2509 = vmatprep.subr.mxu0 %v1747
        %2510 = vmatpush1.msra.mxu0 %v1746
        %2511 = vmatprep.subr.mxu0 %v1751
        %2512 = vmatpush1.msra.mxu0 %v1750
        %2513 = vmatprep.subr.mxu0 %v1755
        %2514 = vmatpush1.msra.mxu0 %v1754
        %2515 = vmatprep.subr.mxu0 %v1759
        %2516 = vmatpush1.msra.mxu0 %v1758
        %2517 = vmatprep.subr.mxu0 %v1763
        %2518 = vmatpush1.msra.mxu0 %v1762
        %2519 = vmatprep.subr.mxu0 %v1767
        %2520 = vmatpush1.msra.mxu0 %v1766
        %2521 = vmatprep.subr.mxu0 %v1771
        %2522 = vmatpush1.msra.mxu0 %v1770
        %2523 = vmatprep.subr.mxu0 %v1775
        %2524 = vmatpush1.msra.mxu0 %v1774
        %2525 = vmatprep.subr.mxu0 %v1779
        %2526 = vmatpush1.msra.mxu0 %v1778
        %2527 = vmatprep.subr.mxu0 %v1783
        %2528 = vmatpush1.msra.mxu0 %v1782
        %2529 = vmatprep.subr.mxu0 %v1787
        %2530 = vmatpush1.msra.mxu0 %v1786
        %2531 = vmatprep.subr.mxu0 %v1791
        %2532 = vmatpush1.msra.mxu0 %v1790
        %2533 = vmatprep.subr.mxu0 %v1795
        %2534 = vmatpush1.msra.mxu0 %v1794
        %2535 = vmatprep.subr.mxu0 %v1799
        %2536 = vmatpush1.msra.mxu0 %v1798
        %2537 = vmatprep.subr.mxu0 %v1803
        %2538 = vmatpush1.msra.mxu0 %v1802
        %2539 = vmatprep.subr.mxu0 %v1807
        %2540 = vmatpush1.msra.mxu0 %v1806
        %2541 = vmatprep.subr.mxu0 %v1811
        %2542 = vmatpush1.msra.mxu0 %v1810
        %2543 = vmatprep.subr.mxu0 %v1815
        %2544 = vmatpush1.msra.mxu0 %v1814
        %2545 = vmatprep.subr.mxu0 %v1819
        %2546 = vmatpush1.msra.mxu0 %v1818
        %2547 = vmatprep.subr.mxu0 %v1823
        %2548 = vmatpush1.msra.mxu0 %v1822
        %2549 = vmatprep.subr.mxu0 %v1827
        %2550 = vmatpush1.msra.mxu0 %v1826
        %2551 = vmatprep.subr.mxu0 %v1831
        %2552 = vmatpush1.msra.mxu0 %v1830
        %2553 = vmatprep.subr.mxu0 %v1835
        %2554 = vmatpush1.msra.mxu0 %v1834
        %2555 = vmatprep.subr.mxu0 %v1839
        %2556 = vmatpush1.msra.mxu0 %v1838
        %2557 = vmatprep.subr.mxu0 %v1843
        %2558 = vmatpush1.msra.mxu0 %v1842
        %2559 = vmatprep.subr.mxu0 %v1847
        %2560 = vmatpush1.msra.mxu0 %v1846
        %2561 = vmatprep.subr.mxu0 %v1851
        %2562 = vmatpush1.msra.mxu0 %v1850
        %2563 = vmatprep.subr.mxu0 %v1855
        %2564 = vmatpush1.msra.mxu0 %v1854
        %2565 = vmatprep.subr.mxu0 %v1859
        %2566 = vmatpush1.msra.mxu0 %v1858
        %2567 = vmatprep.subr.mxu0 %v1863
        %2568 = vmatpush1.msra.mxu0 %v1862
        %2569 = vmatprep.mubr.f32.mxu0 %v1731
        %2570 = vmatmul.mubr.f32.gmra.mrb[0].mxu0 %v1730
        %v2571 = vpop.f32.mrb[0].mxu0
        %v2572 = vadd.f32 %v2357, %v2571
        %v2573 = vpop.f32.mrb[0].mxu0
        %v2574 = vadd.f32 %v2359, %v2573
        %2575 = vdwg.mxu0
        %2576 = vmatprep.subr.mxu0 %v1867
        %2577 = vmatpush1.msra.mxu0 %v1866
        %2578 = vmatprep.subr.mxu0 %v1871
        %2579 = vmatpush1.msra.mxu0 %v1870
        %2580 = vmatprep.subr.mxu0 %v1875
        %2581 = vmatpush1.msra.mxu0 %v1874
        %2582 = vmatprep.subr.mxu0 %v1879
        %2583 = vmatpush1.msra.mxu0 %v1878
        %2584 = vmatprep.subr.mxu0 %v1883
        %2585 = vmatpush1.msra.mxu0 %v1882
        %2586 = vmatprep.subr.mxu0 %v1887
        %2587 = vmatpush1.msra.mxu0 %v1886
        %2588 = vmatprep.subr.mxu0 %v1891
        %2589 = vmatpush1.msra.mxu0 %v1890
        %2590 = vmatprep.subr.mxu0 %v1895
        %2591 = vmatpush1.msra.mxu0 %v1894
        %2592 = vmatprep.subr.mxu0 0.0
        %2593 = vmatpush1.msra.mxu0 0.0
        %2594 = vmatprep.subr.mxu0 0.0
        %2595 = vmatpush1.msra.mxu0 0.0
        %2596 = vmatprep.subr.mxu0 0.0
        %2597 = vmatpush1.msra.mxu0 0.0
        %2598 = vmatprep.subr.mxu0 0.0
        %2599 = vmatpush1.msra.mxu0 0.0
        %2600 = vmatprep.subr.mxu0 0.0
        %2601 = vmatpush1.msra.mxu0 0.0
        %2602 = vmatprep.subr.mxu0 0.0
        %2603 = vmatpush1.msra.mxu0 0.0
        %2604 = vmatprep.subr.mxu0 0.0
        %2605 = vmatpush1.msra.mxu0 0.0
        %2606 = vmatprep.subr.mxu0 0.0
        %2607 = vmatpush1.msra.mxu0 0.0
        %2608 = vmatprep.subr.mxu0 0.0
        %2609 = vmatpush1.msra.mxu0 0.0
        %2610 = vmatprep.subr.mxu0 0.0
        %2611 = vmatpush1.msra.mxu0 0.0
        %2612 = vmatprep.subr.mxu0 0.0
        %2613 = vmatpush1.msra.mxu0 0.0
        %2614 = vmatprep.subr.mxu0 0.0
        %2615 = vmatpush1.msra.mxu0 0.0
        %2616 = vmatprep.subr.mxu0 0.0
        %2617 = vmatpush1.msra.mxu0 0.0
        %2618 = vmatprep.subr.mxu0 0.0
        %2619 = vmatpush1.msra.mxu0 0.0
        %2620 = vmatprep.subr.mxu0 0.0
        %2621 = vmatpush1.msra.mxu0 0.0
        %2622 = vmatprep.subr.mxu0 0.0
        %2623 = vmatpush1.msra.mxu0 0.0
        %2624 = vmatprep.subr.mxu0 0.0
        %2625 = vmatpush1.msra.mxu0 0.0
        %2626 = vmatprep.subr.mxu0 0.0
        %2627 = vmatpush1.msra.mxu0 0.0
        %2628 = vmatprep.subr.mxu0 0.0
        %2629 = vmatpush1.msra.mxu0 0.0
        %2630 = vmatprep.subr.mxu0 0.0
        %2631 = vmatpush1.msra.mxu0 0.0
        %2632 = vmatprep.subr.mxu0 0.0
        %2633 = vmatpush1.msra.mxu0 0.0
        %2634 = vmatprep.subr.mxu0 0.0
        %2635 = vmatpush1.msra.mxu0 0.0
        %2636 = vmatprep.subr.mxu0 0.0
        %2637 = vmatpush1.msra.mxu0 0.0
        %2638 = vmatprep.subr.mxu0 0.0
        %2639 = vmatpush1.msra.mxu0 0.0
        %2640 = vmatprep.mubr.f32.mxu0 0.0
        %2641 = vmatmul.mubr.f32.gmra.mrb[0].mxu0 %v2361
        %v2642 = vpop.f32.mrb[0].mxu0
        %v2643 = vadd.f32 %v2572, %v2642
        %v2644 = vpop.f32.mrb[0].mxu0
        %v2645 = vadd.f32 %v2574, %v2644
        %2646 = vdwg.mxu0
        %s2647 = scalar_lea.vmem [#allocation9], 2560
        %v2648 = vld [vmem:[%s2647] sm:$0xff]
        %v2649 = vld [vmem:[%s2647 + $0x8] sm:$0xff]
        %v2650 = vld [vmem:[%s2647 + $0x10] sm:$0xff]
        %v2651 = vld [vmem:[%s2647 + $0x18] sm:$0xff]
        %v2652 = vld [vmem:[%s2647 + $0x20] sm:$0xff]
        %v2653 = vld [vmem:[%s2647 + $0x28] sm:$0xff]
        %v2654 = vld [vmem:[%s2647 + $0x30] sm:$0xff]
        %v2655 = vld [vmem:[%s2647 + $0x38] sm:$0xff]
        %v2656 = vld [vmem:[%s2647 + $0x40] sm:$0xff]
        %v2657 = vld [vmem:[%s2647 + $0x48] sm:$0xff]
        %v2658 = vld [vmem:[%s2647 + $0x50] sm:$0xff]
        %v2659 = vld [vmem:[%s2647 + $0x58] sm:$0xff]
        %v2660 = vld [vmem:[%s2647 + $0x60] sm:$0xff]
        %v2661 = vld [vmem:[%s2647 + $0x68] sm:$0xff]
        %v2662 = vld [vmem:[%s2647 + $0x70] sm:$0xff]
        %v2663 = vld [vmem:[%s2647 + $0x78] sm:$0xff]
        %v2664 = vld [vmem:[%s2647 + $0x80] sm:$0xff]
        %v2665 = vld [vmem:[%s2647 + $0x88] sm:$0xff]
        %v2666 = vld [vmem:[%s2647 + $0x90] sm:$0xff]
        %v2667 = vld [vmem:[%s2647 + $0x98] sm:$0xff]
        %v2668 = vld [vmem:[%s2647 + $0xa0] sm:$0xff]
        %v2669 = vld [vmem:[%s2647 + $0xa8] sm:$0xff]
        %v2670 = vld [vmem:[%s2647 + $0xb0] sm:$0xff]
        %v2671 = vld [vmem:[%s2647 + $0xb8] sm:$0xff]
        %v2672 = vld [vmem:[%s2647 + $0xc0] sm:$0xff]
        %v2673 = vld [vmem:[%s2647 + $0xc8] sm:$0xff]
        %v2674 = vld [vmem:[%s2647 + $0xd0] sm:$0xff]
        %v2675 = vld [vmem:[%s2647 + $0xd8] sm:$0xff]
        %v2676 = vld [vmem:[%s2647 + $0xe0] sm:$0xff]
        %v2677 = vld [vmem:[%s2647 + $0xe8] sm:$0xff]
        %v2678 = vld [vmem:[%s2647 + $0xf0] sm:$0xff]
        %v2679 = vld [vmem:[%s2647 + $0xf8] sm:$0xff]
        %v2680 = vld [vmem:[%s2647 + $0x100] sm:$0xff]
        %v2681 = vld [vmem:[%s2647 + $0x108] sm:$0xff]
        %v2682 = vld [vmem:[%s2647 + $0x110] sm:$0xff]
        %v2683 = vld [vmem:[%s2647 + $0x118] sm:$0xff]
        %v2684 = vld [vmem:[%s2647 + $0x120] sm:$0xff]
        %v2685 = vld [vmem:[%s2647 + $0x128] sm:$0xff]
        %v2686 = vld [vmem:[%s2647 + $0x130] sm:$0xff]
        %v2687 = vld [vmem:[%s2647 + $0x138] sm:$0xff]
        %v2688 = vld [vmem:[%s2647 + $0x140] sm:$0xff]
        %v2689 = vld [vmem:[%s2647 + $0x148] sm:$0xff]
        %v2690 = vld [vmem:[%s2647 + $0x150] sm:$0xff]
        %v2691 = vld [vmem:[%s2647 + $0x158] sm:$0xff]
        %v2692 = vld [vmem:[%s2647 + $0x160] sm:$0xff]
        %v2693 = vld [vmem:[%s2647 + $0x168] sm:$0xff]
        %v2694 = vld [vmem:[%s2647 + $0x170] sm:$0xff]
        %v2695 = vld [vmem:[%s2647 + $0x178] sm:$0xff]
        %v2696 = vld [vmem:[%s2647 + $0x180] sm:$0xff]
        %v2697 = vld [vmem:[%s2647 + $0x188] sm:$0xff]
        %v2698 = vld [vmem:[%s2647 + $0x190] sm:$0xff]
        %v2699 = vld [vmem:[%s2647 + $0x198] sm:$0xff]
        %v2700 = vld [vmem:[%s2647 + $0x1a0] sm:$0xff]
        %v2701 = vld [vmem:[%s2647 + $0x1a8] sm:$0xff]
        %v2702 = vld [vmem:[%s2647 + $0x1b0] sm:$0xff]
        %v2703 = vld [vmem:[%s2647 + $0x1b8] sm:$0xff]
        %v2704 = vld [vmem:[%s2647 + $0x1c0] sm:$0xff]
        %v2705 = vld [vmem:[%s2647 + $0x1c8] sm:$0xff]
        %v2706 = vld [vmem:[%s2647 + $0x1d0] sm:$0xff]
        %v2707 = vld [vmem:[%s2647 + $0x1d8] sm:$0xff]
        %v2708 = vld [vmem:[%s2647 + $0x1e0] sm:$0xff]
        %v2709 = vld [vmem:[%s2647 + $0x1e8] sm:$0xff]
        %v2710 = vld [vmem:[%s2647 + $0x1f0] sm:$0xff]
        %v2711 = vld [vmem:[%s2647 + $0x1f8] sm:$0xff]
        %v2712 = vld [vmem:[%s2647 + $0x200] sm:$0xff]
        %v2713 = vld [vmem:[%s2647 + $0x208] sm:$0xff]
        %v2714 = vld [vmem:[%s2647 + $0x210] sm:$0xff]
        %v2715 = vld [vmem:[%s2647 + $0x218] sm:$0xff]
        %v2716 = vld [vmem:[%s2647 + $0x220] sm:$0xff]
        %v2717 = vld [vmem:[%s2647 + $0x228] sm:$0xff]
        %v2718 = vld [vmem:[%s2647 + $0x230] sm:$0xff]
        %v2719 = vld [vmem:[%s2647 + $0x238] sm:$0xff]
        %v2720 = vld [vmem:[%s2647 + $0x240] sm:$0xff]
        %v2721 = vld [vmem:[%s2647 + $0x248] sm:$0xff]
        %v2722 = vld [vmem:[%s2647 + $0x250] sm:$0xff]
        %v2723 = vld [vmem:[%s2647 + $0x258] sm:$0xff]
        %v2724 = vld [vmem:[%s2647 + $0x260] sm:$0xff]
        %v2725 = vld [vmem:[%s2647 + $0x268] sm:$0xff]
        %v2726 = vld [vmem:[%s2647 + $0x270] sm:$0xff]
        %v2727 = vld [vmem:[%s2647 + $0x278] sm:$0xff]
        %v2728 = vld [vmem:[%s2647 + $0x280] sm:$0xff]
        %v2729 = vld [vmem:[%s2647 + $0x288] sm:$0xff]
        %v2730 = vld [vmem:[%s2647 + $0x290] sm:$0xff]
        %v2731 = vld [vmem:[%s2647 + $0x298] sm:$0xff]
        %v2732 = vld [vmem:[%s2647 + $0x2a0] sm:$0xff]
        %v2733 = vld [vmem:[%s2647 + $0x2a8] sm:$0xff]
        %v2734 = vld [vmem:[%s2647 + $0x2b0] sm:$0xff]
        %v2735 = vld [vmem:[%s2647 + $0x2b8] sm:$0xff]
        %v2736 = vld [vmem:[%s2647 + $0x2c0] sm:$0xff]
        %v2737 = vld [vmem:[%s2647 + $0x2c8] sm:$0xff]
        %v2738 = vld [vmem:[%s2647 + $0x2d0] sm:$0xff]
        %v2739 = vld [vmem:[%s2647 + $0x2d8] sm:$0xff]
        %v2740 = vld [vmem:[%s2647 + $0x2e0] sm:$0xff]
        %v2741 = vld [vmem:[%s2647 + $0x2e8] sm:$0xff]
        %v2742 = vld [vmem:[%s2647 + $0x2f0] sm:$0xff]
        %v2743 = vld [vmem:[%s2647 + $0x2f8] sm:$0xff]
        %v2744 = vld [vmem:[%s2647 + $0x300] sm:$0xff]
        %v2745 = vld [vmem:[%s2647 + $0x308] sm:$0xff]
        %v2746 = vld [vmem:[%s2647 + $0x310] sm:$0xff]
        %v2747 = vld [vmem:[%s2647 + $0x318] sm:$0xff]
        %v2748 = vld [vmem:[%s2647 + $0x320] sm:$0xff]
        %v2749 = vld [vmem:[%s2647 + $0x328] sm:$0xff]
        %v2750 = vld [vmem:[%s2647 + $0x330] sm:$0xff]
        %v2751 = vld [vmem:[%s2647 + $0x338] sm:$0xff]
        %v2752 = vld [vmem:[%s2647 + $0x340] sm:$0xff]
        %v2753 = vld [vmem:[%s2647 + $0x348] sm:$0xff]
        %v2754 = vld [vmem:[%s2647 + $0x350] sm:$0xff]
        %v2755 = vld [vmem:[%s2647 + $0x358] sm:$0xff]
        %v2756 = vld [vmem:[%s2647 + $0x360] sm:$0xff]
        %v2757 = vld [vmem:[%s2647 + $0x368] sm:$0xff]
        %v2758 = vld [vmem:[%s2647 + $0x370] sm:$0xff]
        %v2759 = vld [vmem:[%s2647 + $0x378] sm:$0xff]
        %v2760 = vld [vmem:[%s2647 + $0x380] sm:$0xff]
        %v2761 = vld [vmem:[%s2647 + $0x388] sm:$0xff]
        %v2762 = vld [vmem:[%s2647 + $0x390] sm:$0xff]
        %v2763 = vld [vmem:[%s2647 + $0x398] sm:$0xff]
        %v2764 = vld [vmem:[%s2647 + $0x3a0] sm:$0xff]
        %v2765 = vld [vmem:[%s2647 + $0x3a8] sm:$0xff]
        %v2766 = vld [vmem:[%s2647 + $0x3b0] sm:$0xff]
        %v2767 = vld [vmem:[%s2647 + $0x3b8] sm:$0xff]
        %v2768 = vld [vmem:[%s2647 + $0x3c0] sm:$0xff]
        %v2769 = vld [vmem:[%s2647 + $0x3c8] sm:$0xff]
        %v2770 = vld [vmem:[%s2647 + $0x3d0] sm:$0xff]
        %v2771 = vld [vmem:[%s2647 + $0x3d8] sm:$0xff]
        %v2772 = vld [vmem:[%s2647 + $0x3e0] sm:$0xff]
        %v2773 = vld [vmem:[%s2647 + $0x3e8] sm:$0xff]
        %v2774 = vld [vmem:[%s2647 + $0x3f0] sm:$0xff]
        %v2775 = vld [vmem:[%s2647 + $0x3f8] sm:$0xff]
        %v2776 = vld [vmem:[%s2647 + $0x400] sm:$0xff]
        %v2777 = vld [vmem:[%s2647 + $0x408] sm:$0xff]
        %v2778 = vld [vmem:[%s2647 + $0x410] sm:$0xff]
        %v2779 = vld [vmem:[%s2647 + $0x418] sm:$0xff]
        %v2780 = vld [vmem:[%s2647 + $0x420] sm:$0xff]
        %v2781 = vld [vmem:[%s2647 + $0x428] sm:$0xff]
        %v2782 = vld [vmem:[%s2647 + $0x430] sm:$0xff]
        %v2783 = vld [vmem:[%s2647 + $0x438] sm:$0xff]
        %v2784 = vld [vmem:[%s2647 + $0x440] sm:$0xff]
        %v2785 = vld [vmem:[%s2647 + $0x448] sm:$0xff]
        %v2786 = vld [vmem:[%s2647 + $0x450] sm:$0xff]
        %v2787 = vld [vmem:[%s2647 + $0x458] sm:$0xff]
        %v2788 = vld [vmem:[%s2647 + $0x460] sm:$0xff]
        %v2789 = vld [vmem:[%s2647 + $0x468] sm:$0xff]
        %v2790 = vld [vmem:[%s2647 + $0x470] sm:$0xff]
        %v2791 = vld [vmem:[%s2647 + $0x478] sm:$0xff]
        %v2792 = vld [vmem:[%s2647 + $0x480] sm:$0xff]
        %v2793 = vld [vmem:[%s2647 + $0x488] sm:$0xff]
        %v2794 = vld [vmem:[%s2647 + $0x490] sm:$0xff]
        %v2795 = vld [vmem:[%s2647 + $0x498] sm:$0xff]
        %v2796 = vld [vmem:[%s2647 + $0x4a0] sm:$0xff]
        %v2797 = vld [vmem:[%s2647 + $0x4a8] sm:$0xff]
        %v2798 = vld [vmem:[%s2647 + $0x4b0] sm:$0xff]
        %v2799 = vld [vmem:[%s2647 + $0x4b8] sm:$0xff]
        %v2800 = vld [vmem:[%s2647 + $0x4c0] sm:$0xff]
        %v2801 = vld [vmem:[%s2647 + $0x4c8] sm:$0xff]
        %v2802 = vld [vmem:[%s2647 + $0x4d0] sm:$0xff]
        %v2803 = vld [vmem:[%s2647 + $0x4d8] sm:$0xff]
        %v2804 = vld [vmem:[%s2647 + $0x4e0] sm:$0xff]
        %v2805 = vld [vmem:[%s2647 + $0x4e8] sm:$0xff]
        %v2806 = vld [vmem:[%s2647 + $0x4f0] sm:$0xff]
        %v2807 = vld [vmem:[%s2647 + $0x4f8] sm:$0xff]
        %v2808 = vrot.slane %v1730, 2
        %v2809 = vrot.slane %v1733, 2
        %v2810 = vsel %vm801, %v2808, %v2809
        %v2811 = vrot.slane %v1731, 2
        %v2812 = vrot.slane %v1734, 2
        %v2813 = vsel %vm801, %v2811, %v2812
        %v2814 = vrot.slane %v1732, 2
        %v2815 = vrot.slane %v1735, 2
        %v2816 = vsel %vm801, %v2814, %v2815
        %v2819 = vsel %vm2074, %v2816, 0
        %2821 = vmatprep.subr.mxu0 %v2649
        %2822 = vmatpush1.msra.mxu0 %v2648
        %2823 = vmatprep.subr.mxu0 %v2653
        %2824 = vmatpush1.msra.mxu0 %v2652
        %2825 = vmatprep.subr.mxu0 %v2657
        %2826 = vmatpush1.msra.mxu0 %v2656
        %2827 = vmatprep.subr.mxu0 %v2661
        %2828 = vmatpush1.msra.mxu0 %v2660
        %2829 = vmatprep.subr.mxu0 %v2665
        %2830 = vmatpush1.msra.mxu0 %v2664
        %2831 = vmatprep.subr.mxu0 %v2669
        %2832 = vmatpush1.msra.mxu0 %v2668
        %2833 = vmatprep.subr.mxu0 %v2673
        %2834 = vmatpush1.msra.mxu0 %v2672
        %2835 = vmatprep.subr.mxu0 %v2677
        %2836 = vmatpush1.msra.mxu0 %v2676
        %2837 = vmatprep.subr.mxu0 %v2681
        %2838 = vmatpush1.msra.mxu0 %v2680
        %2839 = vmatprep.subr.mxu0 %v2685
        %2840 = vmatpush1.msra.mxu0 %v2684
        %2841 = vmatprep.subr.mxu0 %v2689
        %2842 = vmatpush1.msra.mxu0 %v2688
        %2843 = vmatprep.subr.mxu0 %v2693
        %2844 = vmatpush1.msra.mxu0 %v2692
        %2845 = vmatprep.subr.mxu0 %v2697
        %2846 = vmatpush1.msra.mxu0 %v2696
        %2847 = vmatprep.subr.mxu0 %v2701
        %2848 = vmatpush1.msra.mxu0 %v2700
        %2849 = vmatprep.subr.mxu0 %v2705
        %2850 = vmatpush1.msra.mxu0 %v2704
        %2851 = vmatprep.subr.mxu0 %v2709
        %2852 = vmatpush1.msra.mxu0 %v2708
        %2853 = vmatprep.subr.mxu0 %v2713
        %2854 = vmatpush1.msra.mxu0 %v2712
        %2855 = vmatprep.subr.mxu0 %v2717
        %2856 = vmatpush1.msra.mxu0 %v2716
        %2857 = vmatprep.subr.mxu0 %v2721
        %2858 = vmatpush1.msra.mxu0 %v2720
        %2859 = vmatprep.subr.mxu0 %v2725
        %2860 = vmatpush1.msra.mxu0 %v2724
        %2861 = vmatprep.subr.mxu0 %v2729
        %2862 = vmatpush1.msra.mxu0 %v2728
        %2863 = vmatprep.subr.mxu0 %v2733
        %2864 = vmatpush1.msra.mxu0 %v2732
        %2865 = vmatprep.subr.mxu0 %v2737
        %2866 = vmatpush1.msra.mxu0 %v2736
        %2867 = vmatprep.subr.mxu0 %v2741
        %2868 = vmatpush1.msra.mxu0 %v2740
        %2869 = vmatprep.subr.mxu0 %v2745
        %2870 = vmatpush1.msra.mxu0 %v2744
        %2871 = vmatprep.subr.mxu0 %v2749
        %2872 = vmatpush1.msra.mxu0 %v2748
        %2873 = vmatprep.subr.mxu0 %v2753
        %2874 = vmatpush1.msra.mxu0 %v2752
        %2875 = vmatprep.subr.mxu0 %v2757
        %2876 = vmatpush1.msra.mxu0 %v2756
        %2877 = vmatprep.subr.mxu0 %v2761
        %2878 = vmatpush1.msra.mxu0 %v2760
        %2879 = vmatprep.subr.mxu0 %v2765
        %2880 = vmatpush1.msra.mxu0 %v2764
        %2881 = vmatprep.subr.mxu0 %v2769
        %2882 = vmatpush1.msra.mxu0 %v2768
        %2883 = vmatprep.subr.mxu0 %v2773
        %2884 = vmatpush1.msra.mxu0 %v2772
        %2885 = vmatprep.mubr.f32.mxu0 %v2813
        %2886 = vmatmul.mubr.f32.gmra.mrb[0].mxu0 %v2810
        %v2887 = vpop.f32.mrb[0].mxu0
        %v2888 = vadd.f32 0.0, %v2887
        %v2889 = vpop.f32.mrb[0].mxu0
        %v2890 = vadd.f32 0.0, %v2889
        %2891 = vdwg.mxu0
        %2892 = vmatprep.subr.mxu0 %v2777
        %2893 = vmatpush1.msra.mxu0 %v2776
        %2894 = vmatprep.subr.mxu0 %v2781
        %2895 = vmatpush1.msra.mxu0 %v2780
        %2896 = vmatprep.subr.mxu0 %v2785
        %2897 = vmatpush1.msra.mxu0 %v2784
        %2898 = vmatprep.subr.mxu0 %v2789
        %2899 = vmatpush1.msra.mxu0 %v2788
        %2900 = vmatprep.subr.mxu0 %v2793
        %2901 = vmatpush1.msra.mxu0 %v2792
        %2902 = vmatprep.subr.mxu0 %v2797
        %2903 = vmatpush1.msra.mxu0 %v2796
        %2904 = vmatprep.subr.mxu0 %v2801
        %2905 = vmatpush1.msra.mxu0 %v2800
        %2906 = vmatprep.subr.mxu0 %v2805
        %2907 = vmatpush1.msra.mxu0 %v2804
        %2908 = vmatprep.subr.mxu0 0.0
        %2909 = vmatpush1.msra.mxu0 0.0
        %2910 = vmatprep.subr.mxu0 0.0
        %2911 = vmatpush1.msra.mxu0 0.0
        %2912 = vmatprep.subr.mxu0 0.0
        %2913 = vmatpush1.msra.mxu0 0.0
        %2914 = vmatprep.subr.mxu0 0.0
        %2915 = vmatpush1.msra.mxu0 0.0
        %2916 = vmatprep.subr.mxu0 0.0
        %2917 = vmatpush1.msra.mxu0 0.0
        %2918 = vmatprep.subr.mxu0 0.0
        %2919 = vmatpush1.msra.mxu0 0.0
        %2920 = vmatprep.subr.mxu0 0.0
        %2921 = vmatpush1.msra.mxu0 0.0
        %2922 = vmatprep.subr.mxu0 0.0
        %2923 = vmatpush1.msra.mxu0 0.0
        %2924 = vmatprep.subr.mxu0 0.0
        %2925 = vmatpush1.msra.mxu0 0.0
        %2926 = vmatprep.subr.mxu0 0.0
        %2927 = vmatpush1.msra.mxu0 0.0
        %2928 = vmatprep.subr.mxu0 0.0
        %2929 = vmatpush1.msra.mxu0 0.0
        %2930 = vmatprep.subr.mxu0 0.0
        %2931 = vmatpush1.msra.mxu0 0.0
        %2932 = vmatprep.subr.mxu0 0.0
        %2933 = vmatpush1.msra.mxu0 0.0
        %2934 = vmatprep.subr.mxu0 0.0
        %2935 = vmatpush1.msra.mxu0 0.0
        %2936 = vmatprep.subr.mxu0 0.0
        %2937 = vmatpush1.msra.mxu0 0.0
        %2938 = vmatprep.subr.mxu0 0.0
        %2939 = vmatpush1.msra.mxu0 0.0
        %2940 = vmatprep.subr.mxu0 0.0
        %2941 = vmatpush1.msra.mxu0 0.0
        %2942 = vmatprep.subr.mxu0 0.0
        %2943 = vmatpush1.msra.mxu0 0.0
        %2944 = vmatprep.subr.mxu0 0.0
        %2945 = vmatpush1.msra.mxu0 0.0
        %2946 = vmatprep.subr.mxu0 0.0
        %2947 = vmatpush1.msra.mxu0 0.0
        %2948 = vmatprep.subr.mxu0 0.0
        %2949 = vmatpush1.msra.mxu0 0.0
        %2950 = vmatprep.subr.mxu0 0.0
        %2951 = vmatpush1.msra.mxu0 0.0
        %2952 = vmatprep.subr.mxu0 0.0
        %2953 = vmatpush1.msra.mxu0 0.0
        %2954 = vmatprep.subr.mxu0 0.0
        %2955 = vmatpush1.msra.mxu0 0.0
        %2956 = vmatprep.mubr.f32.mxu0 0.0
        %2957 = vmatmul.mubr.f32.gmra.mrb[0].mxu0 %v2819
        %v2958 = vpop.f32.mrb[0].mxu0
        %v2959 = vadd.f32 %v2888, %v2958
        %v2960 = vpop.f32.mrb[0].mxu0
        %v2961 = vadd.f32 %v2890, %v2960
        %2962 = vdwg.mxu0
        %2963 = vmatprep.subr.mxu0 %v2651
        %2964 = vmatpush1.msra.mxu0 %v2650
        %2965 = vmatprep.subr.mxu0 %v2655
        %2966 = vmatpush1.msra.mxu0 %v2654
        %2967 = vmatprep.subr.mxu0 %v2659
        %2968 = vmatpush1.msra.mxu0 %v2658
        %2969 = vmatprep.subr.mxu0 %v2663
        %2970 = vmatpush1.msra.mxu0 %v2662
        %2971 = vmatprep.subr.mxu0 %v2667
        %2972 = vmatpush1.msra.mxu0 %v2666
        %2973 = vmatprep.subr.mxu0 %v2671
        %2974 = vmatpush1.msra.mxu0 %v2670
        %2975 = vmatprep.subr.mxu0 %v2675
        %2976 = vmatpush1.msra.mxu0 %v2674
        %2977 = vmatprep.subr.mxu0 %v2679
        %2978 = vmatpush1.msra.mxu0 %v2678
        %2979 = vmatprep.subr.mxu0 %v2683
        %2980 = vmatpush1.msra.mxu0 %v2682
        %2981 = vmatprep.subr.mxu0 %v2687
        %2982 = vmatpush1.msra.mxu0 %v2686
        %2983 = vmatprep.subr.mxu0 %v2691
        %2984 = vmatpush1.msra.mxu0 %v2690
        %2985 = vmatprep.subr.mxu0 %v2695
        %2986 = vmatpush1.msra.mxu0 %v2694
        %2987 = vmatprep.subr.mxu0 %v2699
        %2988 = vmatpush1.msra.mxu0 %v2698
        %2989 = vmatprep.subr.mxu0 %v2703
        %2990 = vmatpush1.msra.mxu0 %v2702
        %2991 = vmatprep.subr.mxu0 %v2707
        %2992 = vmatpush1.msra.mxu0 %v2706
        %2993 = vmatprep.subr.mxu0 %v2711
        %2994 = vmatpush1.msra.mxu0 %v2710
        %2995 = vmatprep.subr.mxu0 %v2715
        %2996 = vmatpush1.msra.mxu0 %v2714
        %2997 = vmatprep.subr.mxu0 %v2719
        %2998 = vmatpush1.msra.mxu0 %v2718
        %2999 = vmatprep.subr.mxu0 %v2723
        %3000 = vmatpush1.msra.mxu0 %v2722
        %3001 = vmatprep.subr.mxu0 %v2727
        %3002 = vmatpush1.msra.mxu0 %v2726
        %3003 = vmatprep.subr.mxu0 %v2731
        %3004 = vmatpush1.msra.mxu0 %v2730
        %3005 = vmatprep.subr.mxu0 %v2735
        %3006 = vmatpush1.msra.mxu0 %v2734
        %3007 = vmatprep.subr.mxu0 %v2739
        %3008 = vmatpush1.msra.mxu0 %v2738
        %3009 = vmatprep.subr.mxu0 %v2743
        %3010 = vmatpush1.msra.mxu0 %v2742
        %3011 = vmatprep.subr.mxu0 %v2747
        %3012 = vmatpush1.msra.mxu0 %v2746
        %3013 = vmatprep.subr.mxu0 %v2751
        %3014 = vmatpush1.msra.mxu0 %v2750
        %3015 = vmatprep.subr.mxu0 %v2755
        %3016 = vmatpush1.msra.mxu0 %v2754
        %3017 = vmatprep.subr.mxu0 %v2759
        %3018 = vmatpush1.msra.mxu0 %v2758
        %3019 = vmatprep.subr.mxu0 %v2763
        %3020 = vmatpush1.msra.mxu0 %v2762
        %3021 = vmatprep.subr.mxu0 %v2767
        %3022 = vmatpush1.msra.mxu0 %v2766
        %3023 = vmatprep.subr.mxu0 %v2771
        %3024 = vmatpush1.msra.mxu0 %v2770
        %3025 = vmatprep.subr.mxu0 %v2775
        %3026 = vmatpush1.msra.mxu0 %v2774
        %3027 = vmatprep.mubr.f32.mxu0 %v2813
        %3028 = vmatmul.mubr.f32.gmra.mrb[0].mxu0 %v2810
        %v3029 = vpop.f32.mrb[0].mxu0
        %v3030 = vadd.f32 0.0, %v3029
        %v3031 = vpop.f32.mrb[0].mxu0
        %v3032 = vadd.f32 0.0, %v3031
        %3033 = vdwg.mxu0
        %3034 = vmatprep.subr.mxu0 %v2779
        %3035 = vmatpush1.msra.mxu0 %v2778
        %3036 = vmatprep.subr.mxu0 %v2783
        %3037 = vmatpush1.msra.mxu0 %v2782
        %3038 = vmatprep.subr.mxu0 %v2787
        %3039 = vmatpush1.msra.mxu0 %v2786
        %3040 = vmatprep.subr.mxu0 %v2791
        %3041 = vmatpush1.msra.mxu0 %v2790
        %3042 = vmatprep.subr.mxu0 %v2795
        %3043 = vmatpush1.msra.mxu0 %v2794
        %3044 = vmatprep.subr.mxu0 %v2799
        %3045 = vmatpush1.msra.mxu0 %v2798
        %3046 = vmatprep.subr.mxu0 %v2803
        %3047 = vmatpush1.msra.mxu0 %v2802
        %3048 = vmatprep.subr.mxu0 %v2807
        %3049 = vmatpush1.msra.mxu0 %v2806
        %3050 = vmatprep.subr.mxu0 0.0
        %3051 = vmatpush1.msra.mxu0 0.0
        %3052 = vmatprep.subr.mxu0 0.0
        %3053 = vmatpush1.msra.mxu0 0.0
        %3054 = vmatprep.subr.mxu0 0.0
        %3055 = vmatpush1.msra.mxu0 0.0
        %3056 = vmatprep.subr.mxu0 0.0
        %3057 = vmatpush1.msra.mxu0 0.0
        %3058 = vmatprep.subr.mxu0 0.0
        %3059 = vmatpush1.msra.mxu0 0.0
        %3060 = vmatprep.subr.mxu0 0.0
        %3061 = vmatpush1.msra.mxu0 0.0
        %3062 = vmatprep.subr.mxu0 0.0
        %3063 = vmatpush1.msra.mxu0 0.0
        %3064 = vmatprep.subr.mxu0 0.0
        %3065 = vmatpush1.msra.mxu0 0.0
        %3066 = vmatprep.subr.mxu0 0.0
        %3067 = vmatpush1.msra.mxu0 0.0
        %3068 = vmatprep.subr.mxu0 0.0
        %3069 = vmatpush1.msra.mxu0 0.0
        %3070 = vmatprep.subr.mxu0 0.0
        %3071 = vmatpush1.msra.mxu0 0.0
        %3072 = vmatprep.subr.mxu0 0.0
        %3073 = vmatpush1.msra.mxu0 0.0
        %3074 = vmatprep.subr.mxu0 0.0
        %3075 = vmatpush1.msra.mxu0 0.0
        %3076 = vmatprep.subr.mxu0 0.0
        %3077 = vmatpush1.msra.mxu0 0.0
        %3078 = vmatprep.subr.mxu0 0.0
        %3079 = vmatpush1.msra.mxu0 0.0
        %3080 = vmatprep.subr.mxu0 0.0
        %3081 = vmatpush1.msra.mxu0 0.0
        %3082 = vmatprep.subr.mxu0 0.0
        %3083 = vmatpush1.msra.mxu0 0.0
        %3084 = vmatprep.subr.mxu0 0.0
        %3085 = vmatpush1.msra.mxu0 0.0
        %3086 = vmatprep.subr.mxu0 0.0
        %3087 = vmatpush1.msra.mxu0 0.0
        %3088 = vmatprep.subr.mxu0 0.0
        %3089 = vmatpush1.msra.mxu0 0.0
        %3090 = vmatprep.subr.mxu0 0.0
        %3091 = vmatpush1.msra.mxu0 0.0
        %3092 = vmatprep.subr.mxu0 0.0
        %3093 = vmatpush1.msra.mxu0 0.0
        %3094 = vmatprep.subr.mxu0 0.0
        %3095 = vmatpush1.msra.mxu0 0.0
        %3096 = vmatprep.subr.mxu0 0.0
        %3097 = vmatpush1.msra.mxu0 0.0
        %3098 = vmatprep.mubr.f32.mxu0 0.0
        %3099 = vmatmul.mubr.f32.gmra.mrb[0].mxu0 %v2819
        %v3100 = vpop.f32.mrb[0].mxu0
        %v3101 = vadd.f32 %v3030, %v3100
        %v3102 = vpop.f32.mrb[0].mxu0
        %v3103 = vadd.f32 %v3032, %v3102
        %3104 = vdwg.mxu0
        %v3105 = vadd.f32 %v2501, %v2959
        %v3106 = vadd.f32 %v2503, %v2961
        %v3107 = vadd.f32 %v2643, %v3101
        %v3108 = vadd.f32 %v2645, %v3103
        %v3109 = vld [vmem:[#allocation10] sm:$0xf]
        %v3111 = vlaneseq
        %v3112 = vshrl.u32 %v3111, 7
        %v3113 = vsub.s32 0, %v3112
        %v3114 = vrot.slane %v3109, %v3113
        %v3115 = vlaneseq
        %v3116 = vshrl.u32 %v3115, 7
        %v3117 = vsub.s32 1, %v3116
        %v3118 = vrot.slane %v3109, %v3117
        %v3119 = vlaneseq
        %v3120 = vshrl.u32 %v3119, 7
        %v3121 = vsub.s32 2, %v3120
        %v3122 = vrot.slane %v3109, %v3121
        %v3123 = vlaneseq
        %v3124 = vshrl.u32 %v3123, 7
        %v3125 = vsub.s32 3, %v3124
        %v3126 = vrot.slane %v3109, %v3125
        %v3131 = vadd.f32 %v3105, %v3114
        %v3132 = vadd.f32 %v3106, %v3118
        %v3133 = vadd.f32 %v3107, %v3122
        %v3134 = vadd.f32 %v3108, %v3126
        %v3135 = vmax.f32 %v3131, 0.0
        %v3136 = vmax.f32 %v3132, 0.0
        %v3137 = vmax.f32 %v3133, 0.0
        %v3138 = vmax.f32 %v3134, 0.0
        %v3139 = vmax.f32 %v3135, %v3137
        %v3140 = vmax.f32 %v3136, %v3138
        %3141 = vst [vmem:[#allocation2] sm:$0xff] %v3139
        %3142 = vst [vmem:[#allocation2 + $0x8] sm:$0xff] %v3140
        %v3143 = vld [vmem:[#allocation2] ss:$8 sm:$0x3]
        %s3144 = scalar_lea.vmem [#allocation2], 1
        %v3145 = vld [vmem:[%s3144] ss:$8 sm:$0x3]
        %v3146 = vmax.f32 %v3143, %v3145
        %v3147 = vlaneseq
        %vm3148 = vcmp.ge.s32.totalorder %v3147, 0
        %vm3149 = vcmp.lt.s32.totalorder %v3147, 256
        %vm3150 = vmand %vm3148, %vm3149
        %3151 = vst.msk [vmem:[#allocation3] ss:$4 sm:$0x3] %vm3150, %v3146
        %s3152 = scalar_lea.vmem [#allocation2], 2
        %v3153 = vld [vmem:[%s3152] ss:$8 sm:$0x3]
        %s3154 = scalar_lea.vmem [#allocation2], 3
        %v3155 = vld [vmem:[%s3154] ss:$8 sm:$0x3]
        %v3156 = vmax.f32 %v3153, %v3155
        %s3157 = scalar_lea.vmem [#allocation3], 1
        %3158 = vst.msk [vmem:[%s3157] ss:$4 sm:$0x3] %vm3150, %v3156
        %s3159 = scalar_lea.vmem [#allocation2], 4
        %v3160 = vld [vmem:[%s3159] ss:$8 sm:$0x3]
        %s3161 = scalar_lea.vmem [#allocation2], 5
        %v3162 = vld [vmem:[%s3161] ss:$8 sm:$0x3]
        %v3163 = vmax.f32 %v3160, %v3162
        %s3164 = scalar_lea.vmem [#allocation3], 2
        %3165 = vst.msk [vmem:[%s3164] ss:$4 sm:$0x3] %vm3150, %v3163
        %s3166 = scalar_lea.vmem [#allocation2], 6
        %v3167 = vld [vmem:[%s3166] ss:$8 sm:$0x3]
        %s3168 = scalar_lea.vmem [#allocation2], 7
        %v3169 = vld [vmem:[%s3168] ss:$8 sm:$0x3]
        %v3170 = vmax.f32 %v3167, %v3169
        %s3171 = scalar_lea.vmem [#allocation3], 3
        %3172 = vst.msk [vmem:[%s3171] ss:$4 sm:$0x3] %vm3150, %v3170
        %v3173 = vld [vmem:[#allocation3] sm:$0xff]
        %v3174 = vld [vmem:[#allocation12] sm:$0xff]
        %v3175 = vld [vmem:[#allocation12 + $0x8] sm:$0xff]
        %v3176 = vld [vmem:[#allocation12 + $0x10] sm:$0xff]
        %v3177 = vld [vmem:[#allocation12 + $0x18] sm:$0xff]
        %v3178 = vld [vmem:[#allocation12 + $0x20] sm:$0xff]
        %v3179 = vld [vmem:[#allocation12 + $0x28] sm:$0xff]
        %v3180 = vld [vmem:[#allocation12 + $0x30] sm:$0xff]
        %v3181 = vld [vmem:[#allocation12 + $0x38] sm:$0xff]
        %v3182 = vld [vmem:[#allocation12 + $0x40] sm:$0xff]
        %v3183 = vld [vmem:[#allocation12 + $0x48] sm:$0xff]
        %v3184 = vld [vmem:[#allocation12 + $0x50] sm:$0xff]
        %v3185 = vld [vmem:[#allocation12 + $0x58] sm:$0xff]
        %v3186 = vld [vmem:[#allocation12 + $0x60] sm:$0xff]
        %v3187 = vld [vmem:[#allocation12 + $0x68] sm:$0xff]
        %v3188 = vld [vmem:[#allocation12 + $0x70] sm:$0xff]
        %v3189 = vld [vmem:[#allocation12 + $0x78] sm:$0xff]
        %v3190 = vld [vmem:[#allocation12 + $0x80] sm:$0xff]
        %v3191 = vld [vmem:[#allocation12 + $0x88] sm:$0xff]
        %v3192 = vld [vmem:[#allocation12 + $0x90] sm:$0xff]
        %v3193 = vld [vmem:[#allocation12 + $0x98] sm:$0xff]
        %v3194 = vld [vmem:[#allocation12 + $0xa0] sm:$0xff]
        %v3195 = vld [vmem:[#allocation12 + $0xa8] sm:$0xff]
        %v3196 = vld [vmem:[#allocation12 + $0xb0] sm:$0xff]
        %v3197 = vld [vmem:[#allocation12 + $0xb8] sm:$0xff]
        %v3198 = vld [vmem:[#allocation12 + $0xc0] sm:$0xff]
        %v3199 = vld [vmem:[#allocation12 + $0xc8] sm:$0xff]
        %v3200 = vld [vmem:[#allocation12 + $0xd0] sm:$0xff]
        %v3201 = vld [vmem:[#allocation12 + $0xd8] sm:$0xff]
        %v3202 = vld [vmem:[#allocation12 + $0xe0] sm:$0xff]
        %v3203 = vld [vmem:[#allocation12 + $0xe8] sm:$0xff]
        %v3204 = vld [vmem:[#allocation12 + $0xf0] sm:$0xff]
        %v3205 = vld [vmem:[#allocation12 + $0xf8] sm:$0xff]
        %v3206 = vld [vmem:[#allocation12 + $0x100] sm:$0xff]
        %v3207 = vld [vmem:[#allocation12 + $0x108] sm:$0xff]
        %v3208 = vld [vmem:[#allocation12 + $0x110] sm:$0xff]
        %v3209 = vld [vmem:[#allocation12 + $0x118] sm:$0xff]
        %v3210 = vld [vmem:[#allocation12 + $0x120] sm:$0xff]
        %v3211 = vld [vmem:[#allocation12 + $0x128] sm:$0xff]
        %v3212 = vld [vmem:[#allocation12 + $0x130] sm:$0xff]
        %v3213 = vld [vmem:[#allocation12 + $0x138] sm:$0xff]
        %v3214 = vld [vmem:[#allocation12 + $0x140] sm:$0xff]
        %v3215 = vld [vmem:[#allocation12 + $0x148] sm:$0xff]
        %v3216 = vld [vmem:[#allocation12 + $0x150] sm:$0xff]
        %v3217 = vld [vmem:[#allocation12 + $0x158] sm:$0xff]
        %v3218 = vld [vmem:[#allocation12 + $0x160] sm:$0xff]
        %v3219 = vld [vmem:[#allocation12 + $0x168] sm:$0xff]
        %v3220 = vld [vmem:[#allocation12 + $0x170] sm:$0xff]
        %v3221 = vld [vmem:[#allocation12 + $0x178] sm:$0xff]
        %v3222 = vld [vmem:[#allocation12 + $0x180] sm:$0xff]
        %v3223 = vld [vmem:[#allocation12 + $0x188] sm:$0xff]
        %v3224 = vld [vmem:[#allocation12 + $0x190] sm:$0xff]
        %v3225 = vld [vmem:[#allocation12 + $0x198] sm:$0xff]
        %v3226 = vld [vmem:[#allocation12 + $0x1a0] sm:$0xff]
        %v3227 = vld [vmem:[#allocation12 + $0x1a8] sm:$0xff]
        %v3228 = vld [vmem:[#allocation12 + $0x1b0] sm:$0xff]
        %v3229 = vld [vmem:[#allocation12 + $0x1b8] sm:$0xff]
        %v3230 = vld [vmem:[#allocation12 + $0x1c0] sm:$0xff]
        %v3231 = vld [vmem:[#allocation12 + $0x1c8] sm:$0xff]
        %v3232 = vld [vmem:[#allocation12 + $0x1d0] sm:$0xff]
        %v3233 = vld [vmem:[#allocation12 + $0x1d8] sm:$0xff]
        %v3234 = vld [vmem:[#allocation12 + $0x1e0] sm:$0xff]
        %v3235 = vld [vmem:[#allocation12 + $0x1e8] sm:$0xff]
        %v3236 = vld [vmem:[#allocation12 + $0x1f0] sm:$0xff]
        %v3237 = vld [vmem:[#allocation12 + $0x1f8] sm:$0xff]
        %s3238 = scalar_lea.vmem [#allocation12], 512
        %v3239 = vld [vmem:[%s3238] sm:$0xff]
        %v3240 = vld [vmem:[%s3238 + $0x8] sm:$0xff]
        %v3241 = vld [vmem:[%s3238 + $0x10] sm:$0xff]
        %v3242 = vld [vmem:[%s3238 + $0x18] sm:$0xff]
        %v3243 = vld [vmem:[%s3238 + $0x20] sm:$0xff]
        %v3244 = vld [vmem:[%s3238 + $0x28] sm:$0xff]
        %v3245 = vld [vmem:[%s3238 + $0x30] sm:$0xff]
        %v3246 = vld [vmem:[%s3238 + $0x38] sm:$0xff]
        %v3247 = vld [vmem:[%s3238 + $0x40] sm:$0xff]
        %v3248 = vld [vmem:[%s3238 + $0x48] sm:$0xff]
        %v3249 = vld [vmem:[%s3238 + $0x50] sm:$0xff]
        %v3250 = vld [vmem:[%s3238 + $0x58] sm:$0xff]
        %v3251 = vld [vmem:[%s3238 + $0x60] sm:$0xff]
        %v3252 = vld [vmem:[%s3238 + $0x68] sm:$0xff]
        %v3253 = vld [vmem:[%s3238 + $0x70] sm:$0xff]
        %v3254 = vld [vmem:[%s3238 + $0x78] sm:$0xff]
        %v3255 = vld [vmem:[%s3238 + $0x80] sm:$0xff]
        %v3256 = vld [vmem:[%s3238 + $0x88] sm:$0xff]
        %v3257 = vld [vmem:[%s3238 + $0x90] sm:$0xff]
        %v3258 = vld [vmem:[%s3238 + $0x98] sm:$0xff]
        %v3259 = vld [vmem:[%s3238 + $0xa0] sm:$0xff]
        %v3260 = vld [vmem:[%s3238 + $0xa8] sm:$0xff]
        %v3261 = vld [vmem:[%s3238 + $0xb0] sm:$0xff]
        %v3262 = vld [vmem:[%s3238 + $0xb8] sm:$0xff]
        %v3263 = vld [vmem:[%s3238 + $0xc0] sm:$0xff]
        %v3264 = vld [vmem:[%s3238 + $0xc8] sm:$0xff]
        %v3265 = vld [vmem:[%s3238 + $0xd0] sm:$0xff]
        %v3266 = vld [vmem:[%s3238 + $0xd8] sm:$0xff]
        %v3267 = vld [vmem:[%s3238 + $0xe0] sm:$0xff]
        %v3268 = vld [vmem:[%s3238 + $0xe8] sm:$0xff]
        %v3269 = vld [vmem:[%s3238 + $0xf0] sm:$0xff]
        %v3270 = vld [vmem:[%s3238 + $0xf8] sm:$0xff]
        %v3271 = vld [vmem:[%s3238 + $0x100] sm:$0xff]
        %v3272 = vld [vmem:[%s3238 + $0x108] sm:$0xff]
        %v3273 = vld [vmem:[%s3238 + $0x110] sm:$0xff]
        %v3274 = vld [vmem:[%s3238 + $0x118] sm:$0xff]
        %v3275 = vld [vmem:[%s3238 + $0x120] sm:$0xff]
        %v3276 = vld [vmem:[%s3238 + $0x128] sm:$0xff]
        %v3277 = vld [vmem:[%s3238 + $0x130] sm:$0xff]
        %v3278 = vld [vmem:[%s3238 + $0x138] sm:$0xff]
        %v3279 = vld [vmem:[%s3238 + $0x140] sm:$0xff]
        %v3280 = vld [vmem:[%s3238 + $0x148] sm:$0xff]
        %v3281 = vld [vmem:[%s3238 + $0x150] sm:$0xff]
        %v3282 = vld [vmem:[%s3238 + $0x158] sm:$0xff]
        %v3283 = vld [vmem:[%s3238 + $0x160] sm:$0xff]
        %v3284 = vld [vmem:[%s3238 + $0x168] sm:$0xff]
        %v3285 = vld [vmem:[%s3238 + $0x170] sm:$0xff]
        %v3286 = vld [vmem:[%s3238 + $0x178] sm:$0xff]
        %v3287 = vld [vmem:[%s3238 + $0x180] sm:$0xff]
        %v3288 = vld [vmem:[%s3238 + $0x188] sm:$0xff]
        %v3289 = vld [vmem:[%s3238 + $0x190] sm:$0xff]
        %v3290 = vld [vmem:[%s3238 + $0x198] sm:$0xff]
        %v3291 = vld [vmem:[%s3238 + $0x1a0] sm:$0xff]
        %v3292 = vld [vmem:[%s3238 + $0x1a8] sm:$0xff]
        %v3293 = vld [vmem:[%s3238 + $0x1b0] sm:$0xff]
        %v3294 = vld [vmem:[%s3238 + $0x1b8] sm:$0xff]
        %v3295 = vld [vmem:[%s3238 + $0x1c0] sm:$0xff]
        %v3296 = vld [vmem:[%s3238 + $0x1c8] sm:$0xff]
        %v3297 = vld [vmem:[%s3238 + $0x1d0] sm:$0xff]
        %v3298 = vld [vmem:[%s3238 + $0x1d8] sm:$0xff]
        %v3299 = vld [vmem:[%s3238 + $0x1e0] sm:$0xff]
        %v3300 = vld [vmem:[%s3238 + $0x1e8] sm:$0xff]
        %v3301 = vld [vmem:[%s3238 + $0x1f0] sm:$0xff]
        %v3302 = vld [vmem:[%s3238 + $0x1f8] sm:$0xff]
        %v3304 = vcombine.high %v3173, %v3173
        %v3305 = vrot.slane %v3173, 1
        %v3306 = vrot.slane %v3304, 1
        %3309 = vmatprep.subr.mxu0 %v3240
        %3310 = vmatpush1.msra.mxu0 %v3239
        %3311 = vmatprep.subr.mxu0 %v3242
        %3312 = vmatpush1.msra.mxu0 %v3241
        %3313 = vmatprep.subr.mxu0 %v3244
        %3314 = vmatpush1.msra.mxu0 %v3243
        %3315 = vmatprep.subr.mxu0 %v3246
        %3316 = vmatpush1.msra.mxu0 %v3245
        %3317 = vmatprep.subr.mxu0 %v3248
        %3318 = vmatpush1.msra.mxu0 %v3247
        %3319 = vmatprep.subr.mxu0 %v3250
        %3320 = vmatpush1.msra.mxu0 %v3249
        %3321 = vmatprep.subr.mxu0 %v3252
        %3322 = vmatpush1.msra.mxu0 %v3251
        %3323 = vmatprep.subr.mxu0 %v3254
        %3324 = vmatpush1.msra.mxu0 %v3253
        %3325 = vmatprep.subr.mxu0 %v3256
        %3326 = vmatpush1.msra.mxu0 %v3255
        %3327 = vmatprep.subr.mxu0 %v3258
        %3328 = vmatpush1.msra.mxu0 %v3257
        %3329 = vmatprep.subr.mxu0 %v3260
        %3330 = vmatpush1.msra.mxu0 %v3259
        %3331 = vmatprep.subr.mxu0 %v3262
        %3332 = vmatpush1.msra.mxu0 %v3261
        %3333 = vmatprep.subr.mxu0 %v3264
        %3334 = vmatpush1.msra.mxu0 %v3263
        %3335 = vmatprep.subr.mxu0 %v3266
        %3336 = vmatpush1.msra.mxu0 %v3265
        %3337 = vmatprep.subr.mxu0 %v3268
        %3338 = vmatpush1.msra.mxu0 %v3267
        %3339 = vmatprep.subr.mxu0 %v3270
        %3340 = vmatpush1.msra.mxu0 %v3269
        %3341 = vmatprep.subr.mxu0 %v3272
        %3342 = vmatpush1.msra.mxu0 %v3271
        %3343 = vmatprep.subr.mxu0 %v3274
        %3344 = vmatpush1.msra.mxu0 %v3273
        %3345 = vmatprep.subr.mxu0 %v3276
        %3346 = vmatpush1.msra.mxu0 %v3275
        %3347 = vmatprep.subr.mxu0 %v3278
        %3348 = vmatpush1.msra.mxu0 %v3277
        %3349 = vmatprep.subr.mxu0 %v3280
        %3350 = vmatpush1.msra.mxu0 %v3279
        %3351 = vmatprep.subr.mxu0 %v3282
        %3352 = vmatpush1.msra.mxu0 %v3281
        %3353 = vmatprep.subr.mxu0 %v3284
        %3354 = vmatpush1.msra.mxu0 %v3283
        %3355 = vmatprep.subr.mxu0 %v3286
        %3356 = vmatpush1.msra.mxu0 %v3285
        %3357 = vmatprep.subr.mxu0 %v3288
        %3358 = vmatpush1.msra.mxu0 %v3287
        %3359 = vmatprep.subr.mxu0 %v3290
        %3360 = vmatpush1.msra.mxu0 %v3289
        %3361 = vmatprep.subr.mxu0 %v3292
        %3362 = vmatpush1.msra.mxu0 %v3291
        %3363 = vmatprep.subr.mxu0 %v3294
        %3364 = vmatpush1.msra.mxu0 %v3293
        %3365 = vmatprep.subr.mxu0 %v3296
        %3366 = vmatpush1.msra.mxu0 %v3295
        %3367 = vmatprep.subr.mxu0 %v3298
        %3368 = vmatpush1.msra.mxu0 %v3297
        %3369 = vmatprep.subr.mxu0 %v3300
        %3370 = vmatpush1.msra.mxu0 %v3299
        %3371 = vmatprep.subr.mxu0 %v3302
        %3372 = vmatpush1.msra.mxu0 %v3301
        %3373 = vmatprep.mubr.f32.mxu0 %v3306
        %3374 = vmatmul.mubr.f32.gmra.mrb[0].mxu0 %v3305
        %v3375 = vpop.f32.mrb[0].mxu0
        %v3376 = vadd.f32 0.0, %v3375
        %v3377 = vpop.f32.mrb[0].mxu0
        %v3378 = vadd.f32 0.0, %v3377
        %3379 = vdwg.mxu0
        %3381 = vmatprep.subr.mxu0 %v3175
        %3382 = vmatpush1.msra.mxu0 %v3174
        %3383 = vmatprep.subr.mxu0 %v3177
        %3384 = vmatpush1.msra.mxu0 %v3176
        %3385 = vmatprep.subr.mxu0 %v3179
        %3386 = vmatpush1.msra.mxu0 %v3178
        %3387 = vmatprep.subr.mxu0 %v3181
        %3388 = vmatpush1.msra.mxu0 %v3180
        %3389 = vmatprep.subr.mxu0 %v3183
        %3390 = vmatpush1.msra.mxu0 %v3182
        %3391 = vmatprep.subr.mxu0 %v3185
        %3392 = vmatpush1.msra.mxu0 %v3184
        %3393 = vmatprep.subr.mxu0 %v3187
        %3394 = vmatpush1.msra.mxu0 %v3186
        %3395 = vmatprep.subr.mxu0 %v3189
        %3396 = vmatpush1.msra.mxu0 %v3188
        %3397 = vmatprep.subr.mxu0 %v3191
        %3398 = vmatpush1.msra.mxu0 %v3190
        %3399 = vmatprep.subr.mxu0 %v3193
        %3400 = vmatpush1.msra.mxu0 %v3192
        %3401 = vmatprep.subr.mxu0 %v3195
        %3402 = vmatpush1.msra.mxu0 %v3194
        %3403 = vmatprep.subr.mxu0 %v3197
        %3404 = vmatpush1.msra.mxu0 %v3196
        %3405 = vmatprep.subr.mxu0 %v3199
        %3406 = vmatpush1.msra.mxu0 %v3198
        %3407 = vmatprep.subr.mxu0 %v3201
        %3408 = vmatpush1.msra.mxu0 %v3200
        %3409 = vmatprep.subr.mxu0 %v3203
        %3410 = vmatpush1.msra.mxu0 %v3202
        %3411 = vmatprep.subr.mxu0 %v3205
        %3412 = vmatpush1.msra.mxu0 %v3204
        %3413 = vmatprep.subr.mxu0 %v3207
        %3414 = vmatpush1.msra.mxu0 %v3206
        %3415 = vmatprep.subr.mxu0 %v3209
        %3416 = vmatpush1.msra.mxu0 %v3208
        %3417 = vmatprep.subr.mxu0 %v3211
        %3418 = vmatpush1.msra.mxu0 %v3210
        %3419 = vmatprep.subr.mxu0 %v3213
        %3420 = vmatpush1.msra.mxu0 %v3212
        %3421 = vmatprep.subr.mxu0 %v3215
        %3422 = vmatpush1.msra.mxu0 %v3214
        %3423 = vmatprep.subr.mxu0 %v3217
        %3424 = vmatpush1.msra.mxu0 %v3216
        %3425 = vmatprep.subr.mxu0 %v3219
        %3426 = vmatpush1.msra.mxu0 %v3218
        %3427 = vmatprep.subr.mxu0 %v3221
        %3428 = vmatpush1.msra.mxu0 %v3220
        %3429 = vmatprep.subr.mxu0 %v3223
        %3430 = vmatpush1.msra.mxu0 %v3222
        %3431 = vmatprep.subr.mxu0 %v3225
        %3432 = vmatpush1.msra.mxu0 %v3224
        %3433 = vmatprep.subr.mxu0 %v3227
        %3434 = vmatpush1.msra.mxu0 %v3226
        %3435 = vmatprep.subr.mxu0 %v3229
        %3436 = vmatpush1.msra.mxu0 %v3228
        %3437 = vmatprep.subr.mxu0 %v3231
        %3438 = vmatpush1.msra.mxu0 %v3230
        %3439 = vmatprep.subr.mxu0 %v3233
        %3440 = vmatpush1.msra.mxu0 %v3232
        %3441 = vmatprep.subr.mxu0 %v3235
        %3442 = vmatpush1.msra.mxu0 %v3234
        %3443 = vmatprep.subr.mxu0 %v3237
        %3444 = vmatpush1.msra.mxu0 %v3236
        %3445 = vmatprep.mubr.f32.mxu0 %v3304
        %3446 = vmatmul.mubr.f32.gmra.mrb[0].mxu0 %v3173
        %v3447 = vpop.f32.mrb[0].mxu0
        %v3448 = vadd.f32 %v3376, %v3447
        %v3449 = vpop.f32.mrb[0].mxu0
        %v3450 = vadd.f32 %v3378, %v3449
        %3451 = vdwg.mxu0
        %s3452 = scalar_lea.vmem [#allocation12], 1024
        %v3453 = vld [vmem:[%s3452] sm:$0xff]
        %v3454 = vld [vmem:[%s3452 + $0x8] sm:$0xff]
        %v3455 = vld [vmem:[%s3452 + $0x10] sm:$0xff]
        %v3456 = vld [vmem:[%s3452 + $0x18] sm:$0xff]
        %v3457 = vld [vmem:[%s3452 + $0x20] sm:$0xff]
        %v3458 = vld [vmem:[%s3452 + $0x28] sm:$0xff]
        %v3459 = vld [vmem:[%s3452 + $0x30] sm:$0xff]
        %v3460 = vld [vmem:[%s3452 + $0x38] sm:$0xff]
        %v3461 = vld [vmem:[%s3452 + $0x40] sm:$0xff]
        %v3462 = vld [vmem:[%s3452 + $0x48] sm:$0xff]
        %v3463 = vld [vmem:[%s3452 + $0x50] sm:$0xff]
        %v3464 = vld [vmem:[%s3452 + $0x58] sm:$0xff]
        %v3465 = vld [vmem:[%s3452 + $0x60] sm:$0xff]
        %v3466 = vld [vmem:[%s3452 + $0x68] sm:$0xff]
        %v3467 = vld [vmem:[%s3452 + $0x70] sm:$0xff]
        %v3468 = vld [vmem:[%s3452 + $0x78] sm:$0xff]
        %v3469 = vld [vmem:[%s3452 + $0x80] sm:$0xff]
        %v3470 = vld [vmem:[%s3452 + $0x88] sm:$0xff]
        %v3471 = vld [vmem:[%s3452 + $0x90] sm:$0xff]
        %v3472 = vld [vmem:[%s3452 + $0x98] sm:$0xff]
        %v3473 = vld [vmem:[%s3452 + $0xa0] sm:$0xff]
        %v3474 = vld [vmem:[%s3452 + $0xa8] sm:$0xff]
        %v3475 = vld [vmem:[%s3452 + $0xb0] sm:$0xff]
        %v3476 = vld [vmem:[%s3452 + $0xb8] sm:$0xff]
        %v3477 = vld [vmem:[%s3452 + $0xc0] sm:$0xff]
        %v3478 = vld [vmem:[%s3452 + $0xc8] sm:$0xff]
        %v3479 = vld [vmem:[%s3452 + $0xd0] sm:$0xff]
        %v3480 = vld [vmem:[%s3452 + $0xd8] sm:$0xff]
        %v3481 = vld [vmem:[%s3452 + $0xe0] sm:$0xff]
        %v3482 = vld [vmem:[%s3452 + $0xe8] sm:$0xff]
        %v3483 = vld [vmem:[%s3452 + $0xf0] sm:$0xff]
        %v3484 = vld [vmem:[%s3452 + $0xf8] sm:$0xff]
        %v3485 = vld [vmem:[%s3452 + $0x100] sm:$0xff]
        %v3486 = vld [vmem:[%s3452 + $0x108] sm:$0xff]
        %v3487 = vld [vmem:[%s3452 + $0x110] sm:$0xff]
        %v3488 = vld [vmem:[%s3452 + $0x118] sm:$0xff]
        %v3489 = vld [vmem:[%s3452 + $0x120] sm:$0xff]
        %v3490 = vld [vmem:[%s3452 + $0x128] sm:$0xff]
        %v3491 = vld [vmem:[%s3452 + $0x130] sm:$0xff]
        %v3492 = vld [vmem:[%s3452 + $0x138] sm:$0xff]
        %v3493 = vld [vmem:[%s3452 + $0x140] sm:$0xff]
        %v3494 = vld [vmem:[%s3452 + $0x148] sm:$0xff]
        %v3495 = vld [vmem:[%s3452 + $0x150] sm:$0xff]
        %v3496 = vld [vmem:[%s3452 + $0x158] sm:$0xff]
        %v3497 = vld [vmem:[%s3452 + $0x160] sm:$0xff]
        %v3498 = vld [vmem:[%s3452 + $0x168] sm:$0xff]
        %v3499 = vld [vmem:[%s3452 + $0x170] sm:$0xff]
        %v3500 = vld [vmem:[%s3452 + $0x178] sm:$0xff]
        %v3501 = vld [vmem:[%s3452 + $0x180] sm:$0xff]
        %v3502 = vld [vmem:[%s3452 + $0x188] sm:$0xff]
        %v3503 = vld [vmem:[%s3452 + $0x190] sm:$0xff]
        %v3504 = vld [vmem:[%s3452 + $0x198] sm:$0xff]
        %v3505 = vld [vmem:[%s3452 + $0x1a0] sm:$0xff]
        %v3506 = vld [vmem:[%s3452 + $0x1a8] sm:$0xff]
        %v3507 = vld [vmem:[%s3452 + $0x1b0] sm:$0xff]
        %v3508 = vld [vmem:[%s3452 + $0x1b8] sm:$0xff]
        %v3509 = vld [vmem:[%s3452 + $0x1c0] sm:$0xff]
        %v3510 = vld [vmem:[%s3452 + $0x1c8] sm:$0xff]
        %v3511 = vld [vmem:[%s3452 + $0x1d0] sm:$0xff]
        %v3512 = vld [vmem:[%s3452 + $0x1d8] sm:$0xff]
        %v3513 = vld [vmem:[%s3452 + $0x1e0] sm:$0xff]
        %v3514 = vld [vmem:[%s3452 + $0x1e8] sm:$0xff]
        %v3515 = vld [vmem:[%s3452 + $0x1f0] sm:$0xff]
        %v3516 = vld [vmem:[%s3452 + $0x1f8] sm:$0xff]
        %v3517 = vrot.slane %v3173, 2
        %v3518 = vrot.slane %v3304, 2
        %3521 = vmatprep.subr.mxu0 %v3454
        %3522 = vmatpush1.msra.mxu0 %v3453
        %3523 = vmatprep.subr.mxu0 %v3456
        %3524 = vmatpush1.msra.mxu0 %v3455
        %3525 = vmatprep.subr.mxu0 %v3458
        %3526 = vmatpush1.msra.mxu0 %v3457
        %3527 = vmatprep.subr.mxu0 %v3460
        %3528 = vmatpush1.msra.mxu0 %v3459
        %3529 = vmatprep.subr.mxu0 %v3462
        %3530 = vmatpush1.msra.mxu0 %v3461
        %3531 = vmatprep.subr.mxu0 %v3464
        %3532 = vmatpush1.msra.mxu0 %v3463
        %3533 = vmatprep.subr.mxu0 %v3466
        %3534 = vmatpush1.msra.mxu0 %v3465
        %3535 = vmatprep.subr.mxu0 %v3468
        %3536 = vmatpush1.msra.mxu0 %v3467
        %3537 = vmatprep.subr.mxu0 %v3470
        %3538 = vmatpush1.msra.mxu0 %v3469
        %3539 = vmatprep.subr.mxu0 %v3472
        %3540 = vmatpush1.msra.mxu0 %v3471
        %3541 = vmatprep.subr.mxu0 %v3474
        %3542 = vmatpush1.msra.mxu0 %v3473
        %3543 = vmatprep.subr.mxu0 %v3476
        %3544 = vmatpush1.msra.mxu0 %v3475
        %3545 = vmatprep.subr.mxu0 %v3478
        %3546 = vmatpush1.msra.mxu0 %v3477
        %3547 = vmatprep.subr.mxu0 %v3480
        %3548 = vmatpush1.msra.mxu0 %v3479
        %3549 = vmatprep.subr.mxu0 %v3482
        %3550 = vmatpush1.msra.mxu0 %v3481
        %3551 = vmatprep.subr.mxu0 %v3484
        %3552 = vmatpush1.msra.mxu0 %v3483
        %3553 = vmatprep.subr.mxu0 %v3486
        %3554 = vmatpush1.msra.mxu0 %v3485
        %3555 = vmatprep.subr.mxu0 %v3488
        %3556 = vmatpush1.msra.mxu0 %v3487
        %3557 = vmatprep.subr.mxu0 %v3490
        %3558 = vmatpush1.msra.mxu0 %v3489
        %3559 = vmatprep.subr.mxu0 %v3492
        %3560 = vmatpush1.msra.mxu0 %v3491
        %3561 = vmatprep.subr.mxu0 %v3494
        %3562 = vmatpush1.msra.mxu0 %v3493
        %3563 = vmatprep.subr.mxu0 %v3496
        %3564 = vmatpush1.msra.mxu0 %v3495
        %3565 = vmatprep.subr.mxu0 %v3498
        %3566 = vmatpush1.msra.mxu0 %v3497
        %3567 = vmatprep.subr.mxu0 %v3500
        %3568 = vmatpush1.msra.mxu0 %v3499
        %3569 = vmatprep.subr.mxu0 %v3502
        %3570 = vmatpush1.msra.mxu0 %v3501
        %3571 = vmatprep.subr.mxu0 %v3504
        %3572 = vmatpush1.msra.mxu0 %v3503
        %3573 = vmatprep.subr.mxu0 %v3506
        %3574 = vmatpush1.msra.mxu0 %v3505
        %3575 = vmatprep.subr.mxu0 %v3508
        %3576 = vmatpush1.msra.mxu0 %v3507
        %3577 = vmatprep.subr.mxu0 %v3510
        %3578 = vmatpush1.msra.mxu0 %v3509
        %3579 = vmatprep.subr.mxu0 %v3512
        %3580 = vmatpush1.msra.mxu0 %v3511
        %3581 = vmatprep.subr.mxu0 %v3514
        %3582 = vmatpush1.msra.mxu0 %v3513
        %3583 = vmatprep.subr.mxu0 %v3516
        %3584 = vmatpush1.msra.mxu0 %v3515
        %3585 = vmatprep.mubr.f32.mxu0 %v3518
        %3586 = vmatmul.mubr.f32.gmra.mrb[0].mxu0 %v3517
        %v3587 = vpop.f32.mrb[0].mxu0
        %v3588 = vadd.f32 0.0, %v3587
        %v3589 = vpop.f32.mrb[0].mxu0
        %v3590 = vadd.f32 0.0, %v3589
        %3591 = vdwg.mxu0
        %v3592 = vadd.f32 %v3448, %v3588
        %v3593 = vadd.f32 %v3450, %v3590
        %v3594 = vld [vmem:[#allocation13] sm:$0x3]
        %v3596 = vlaneseq
        %v3597 = vshrl.u32 %v3596, 7
        %v3598 = vsub.s32 0, %v3597
        %v3599 = vrot.slane %v3594, %v3598
        %v3600 = vlaneseq
        %v3601 = vshrl.u32 %v3600, 7
        %v3602 = vsub.s32 1, %v3601
        %v3603 = vrot.slane %v3594, %v3602
        %v3606 = vadd.f32 %v3592, %v3599
        %v3607 = vadd.f32 %v3593, %v3603
        %v3608 = vmax.f32 %v3606, 0.0
        %v3609 = vmax.f32 %v3607, 0.0
        %v3610 = vmax.f32 %v3608, %v3609
        %v3612 = vrot.slane %v3610, 1
        %v3614 = vmax.f32 %v3610, %v3612
        %v3615 = vld [vmem:[%s7] sm:$0xff]
        %v3616 = vld [vmem:[%s7 + $0x8] sm:$0xff]
        %v3617 = vld [vmem:[%s7 + $0x10] sm:$0xff]
        %v3618 = vld [vmem:[%s7 + $0x18] sm:$0xff]
        %v3619 = vld [vmem:[%s7 + $0x20] sm:$0xff]
        %v3620 = vld [vmem:[%s7 + $0x28] sm:$0xff]
        %v3621 = vld [vmem:[%s7 + $0x30] sm:$0xff]
        %v3622 = vld [vmem:[%s7 + $0x38] sm:$0xff]
        %v3623 = vld [vmem:[%s7 + $0x40] sm:$0xff]
        %v3624 = vld [vmem:[%s7 + $0x48] sm:$0xff]
        %v3625 = vld [vmem:[%s7 + $0x50] sm:$0xff]
        %v3626 = vld [vmem:[%s7 + $0x58] sm:$0xff]
        %v3627 = vld [vmem:[%s7 + $0x60] sm:$0xff]
        %v3628 = vld [vmem:[%s7 + $0x68] sm:$0xff]
        %v3629 = vld [vmem:[%s7 + $0x70] sm:$0xff]
        %v3630 = vld [vmem:[%s7 + $0x78] sm:$0xff]
        %v3631 = vld [vmem:[#allocation15] sm:$0x1]
        %3632 = vmatprep.subr.mxu0 0.0
        %3633 = vmatpush1.msra.mxu0 %v3615
        %3634 = vmatprep.subr.mxu0 0.0
        %3635 = vmatpush1.msra.mxu0 %v3616
        %3636 = vmatprep.subr.mxu0 0.0
        %3637 = vmatpush1.msra.mxu0 %v3617
        %3638 = vmatprep.subr.mxu0 0.0
        %3639 = vmatpush1.msra.mxu0 %v3618
        %3640 = vmatprep.subr.mxu0 0.0
        %3641 = vmatpush1.msra.mxu0 %v3619
        %3642 = vmatprep.subr.mxu0 0.0
        %3643 = vmatpush1.msra.mxu0 %v3620
        %3644 = vmatprep.subr.mxu0 0.0
        %3645 = vmatpush1.msra.mxu0 %v3621
        %3646 = vmatprep.subr.mxu0 0.0
        %3647 = vmatpush1.msra.mxu0 %v3622
        %3648 = vmatprep.subr.mxu0 0.0
        %3649 = vmatpush1.msra.mxu0 %v3623
        %3650 = vmatprep.subr.mxu0 0.0
        %3651 = vmatpush1.msra.mxu0 %v3624
        %3652 = vmatprep.subr.mxu0 0.0
        %3653 = vmatpush1.msra.mxu0 %v3625
        %3654 = vmatprep.subr.mxu0 0.0
        %3655 = vmatpush1.msra.mxu0 %v3626
        %3656 = vmatprep.subr.mxu0 0.0
        %3657 = vmatpush1.msra.mxu0 %v3627
        %3658 = vmatprep.subr.mxu0 0.0
        %3659 = vmatpush1.msra.mxu0 %v3628
        %3660 = vmatprep.subr.mxu0 0.0
        %3661 = vmatpush1.msra.mxu0 %v3629
        %3662 = vmatprep.subr.mxu0 0.0
        %3663 = vmatpush1.msra.mxu0 %v3630
        %3664 = vmatprep.subr.mxu0 0.0
        %3665 = vmatpush1.msra.mxu0 0.0
        %3666 = vmatprep.subr.mxu0 0.0
        %3667 = vmatpush1.msra.mxu0 0.0
        %3668 = vmatprep.subr.mxu0 0.0
        %3669 = vmatpush1.msra.mxu0 0.0
        %3670 = vmatprep.subr.mxu0 0.0
        %3671 = vmatpush1.msra.mxu0 0.0
        %3672 = vmatprep.subr.mxu0 0.0
        %3673 = vmatpush1.msra.mxu0 0.0
        %3674 = vmatprep.subr.mxu0 0.0
        %3675 = vmatpush1.msra.mxu0 0.0
        %3676 = vmatprep.subr.mxu0 0.0
        %3677 = vmatpush1.msra.mxu0 0.0
        %3678 = vmatprep.subr.mxu0 0.0
        %3679 = vmatpush1.msra.mxu0 0.0
        %3680 = vmatprep.subr.mxu0 0.0
        %3681 = vmatpush1.msra.mxu0 0.0
        %3682 = vmatprep.subr.mxu0 0.0
        %3683 = vmatpush1.msra.mxu0 0.0
        %3684 = vmatprep.subr.mxu0 0.0
        %3685 = vmatpush1.msra.mxu0 0.0
        %3686 = vmatprep.subr.mxu0 0.0
        %3687 = vmatpush1.msra.mxu0 0.0
        %3688 = vmatprep.subr.mxu0 0.0
        %3689 = vmatpush1.msra.mxu0 0.0
        %3690 = vmatprep.subr.mxu0 0.0
        %3691 = vmatpush1.msra.mxu0 0.0
        %3692 = vmatprep.subr.mxu0 0.0
        %3693 = vmatpush1.msra.mxu0 0.0
        %3694 = vmatprep.subr.mxu0 0.0
        %3695 = vmatpush1.msra.mxu0 0.0
        %3696 = vmatprep.mubr.f32.mxu0 0.0
        %3697 = vmatmul.mubr.f32.gmra.mrb[0].mxu0 %v3614
        %v3698 = vpop.f32.mrb[0].mxu0
        %v3699 = vadd.f32 %v3631, %v3698
        %v3700 = vpop.f32.mrb[0].mxu0
        %3701 = vdwg.mxu0
        %vm3702 = vcmask 73728
        %3703 = vst.msk [vmem:[%s418] sm:$0x1] %vm3702, %v3699
        %s3704 = sand.u32 %s229, 1
        %s3705 = scalar_lea.sflag [#allocation6], %s3704
        %s3706 = sand.u32 %s229, 1
        %s3707 = scalar_lea.vmem [#allocation16], %s3706
        // Predicated region
        $region85: #{forward.1} parent=55 // pred_check
          %p3708 = pneg %p239
        $region86: #{forward.1} parent=55 // pred_check_branch
          %3710 = sbr.rel (%p3708) target = $region88
        $region87: #{forward.1} parent=55 // pred_region
          %s3712 = ssub.s32 16, 16
          %3713 = vsyncadd %s3705, %s3712
          %s3714 = smul.addr %s27, 16
          %s3715 = scalar_lea.hbm %s9, %s3714
          %s3717 = sshll.u32 %s3707, 4
          %s3718 = int_to_ptr.vmem [resolvable:$true] %s3717
          %3720 = dma.vmem_to_hbm [thread:$0]  %s3718, 16, %s3715, %s3705
        $region88: #{forward.1} parent=55 // pred_fallthru
          _
      $region56: #{forward.1} parent=5 // pred_fallthru
        _
      %p3721 = scmp.le.s32.totalorder 2, %s22
      // Predicated region
      $region89: #{forward.1} parent=5 // pred_check
        %p3722 = pneg %p3721
      $region90: #{forward.1} parent=5 // pred_check_branch
        %3724 = sbr.rel (%p3722) target = $region92
      $region91: #{forward.1} parent=5 // pred_region
        %s3725 = ssub.s32 %s22, 2
        // Predicated region
        $region93: #{forward.1} parent=91 // pred_check
          %p3726 = pneg %p245
        $region94: #{forward.1} parent=91 // pred_check_branch
          %3728 = sbr.rel (%p3726) target = $region96
        $region95: #{forward.1} parent=91 // pred_region
          %s3729 = sand.u32 %s230, 1
          %s3730 = scalar_lea.sflag [#allocation6], %s3729
          %s3731 = sand.u32 %s230, 1
          %s3732 = scalar_lea.vmem [#allocation16], %s3731
          %3733 = dma.done %s3730, 16
        $region96: #{forward.1} parent=91 // pred_fallthru
          _
      $region92: #{forward.1} parent=5 // pred_fallthru
        _
    $region6: #{forward.1} parent=1 // loop_footer
      %s26 = sadd.s32 1, %s22
    $region7: #{forward.1} parent=1 // loop_footer_branch
      %21 = sbr.rel target = $region3
    $region8: #{forward.1} parent=1 // loop_exit
      _
    %3734 = vsyncpa [#allocation5], 1
    %s3735 = scalar_lea.sflag [#allocation5], 1
    %3736 = vsyncpa %s3735, 1
    %3737 = vsyncpa [#allocation8], 1
    %3738 = vsyncpa [#allocation11], 1
    %3739 = vsyncpa [#allocation14], 1
    %3740 = vsyncpa [#allocation6], 1
    %s3741 = scalar_lea.sflag [#allocation6], 1
    %3742 = vsyncpa %s3741, 1

</llo_original>
